<compile_context>
chip_gen: v7x
topology: tpu7x:2x2x1
jax: 0.10.0
libtpu: 0.0.40
codegen_flags: <defaults>
</compile_context>

<pallas_src>
import functools
import math

import jax
import jax.numpy as jnp
from jax.experimental import pallas as pl
from jax.experimental.pallas import tpu as pltpu

# ----------------------------- hyper-parameters --------------------------------
IN_CHANNELS = 128          # in_channels == filter_channels in the module
KERNEL_SIZE = 3
N_FLOWS = 4
NUM_BINS = 10
TAIL_BOUND = 5.0
P_DROPOUT = 0.5            # dropout is identity in eval-mode forward
LN_EPS = 1e-5
_GELU_C = math.sqrt(2.0 / math.pi)

_MIN_BIN_WIDTH = 1e-3
_MIN_BIN_HEIGHT = 1e-3
_MIN_DERIVATIVE = 1e-3


def _round_up(x, m):
    return ((x + m - 1) // m) * m


def _gelu(x):
    # TODO(synk): torch F.gelu uses the exact erf form; tanh approximation used
    # here (max abs err ~1e-3) since erf is not a guaranteed Mosaic lowering.
    return 0.5 * x * (1.0 + jnp.tanh(_GELU_C * (x + 0.044715 * x * x * x)))


# ----------------------------- Pallas kernels ----------------------------------
def _linear_kernel(x_ref, w_ref, b_ref, o_ref):
    acc = jnp.dot(x_ref[...].astype(jnp.bfloat16), w_ref[...],
                  preferred_element_type=jnp.float32)
    o_ref[...] = (acc + b_ref[...]).astype(o_ref.dtype)


def _linear_mask_kernel(x_ref, w_ref, b_ref, m_ref, o_ref):
    acc = jnp.dot(x_ref[...].astype(jnp.bfloat16), w_ref[...],
                  preferred_element_type=jnp.float32)
    o_ref[...] = ((acc + b_ref[...]) * m_ref[...]).astype(o_ref.dtype)


def _dds_block_kernel(x_ref, m_ref, *refs, ksize, n_layers, dils, t_len, off, has_g):
    """Whole DDSConv stack fused; the activation never leaves VMEM.

    Per layer: y = gelu(LN(dwconv(x*mask))); y = gelu(LN(y @ W + b)); x = x + y.
    The optional conditioning add (x + g) and the trailing `* mask` are folded in.
    """
    if has_g:
        g_ref = refs[0]
        refs = refs[1:]
    (dww_ref, dwb_ref, g1_ref, b1_ref,
     pww_ref, pwb_ref, g2_ref, b2_ref, o_ref, buf_ref) = refs

    csz = x_ref.shape[-1]
    m = m_ref[...]                                   # (T, 1) f32
    x = x_ref[...].astype(jnp.float32)               # (T, C) running activation
    if has_g:
        x = x + g_ref[...].astype(jnp.float32)

    # Zero only the halo rows of the conv scratch; rows [off, off+T) are
    # rewritten every layer, so the halos stay zero for every shifted tap.
    zpad = jnp.zeros((off, csz), jnp.float32)
    buf_ref[0:off, :] = zpad
    buf_ref[off + t_len:off + t_len + off, :] = zpad

    for l in range(n_layers):
        d = dils[l]
        p = (d * (ksize - 1)) // 2
        # masked conv input staged into VMEM at an 8-aligned offset
        buf_ref[off:off + t_len, :] = x * m
        # depthwise dilated conv: shifted taps read straight from the scratch ref
        y = buf_ref[off - p:off - p + t_len, :] * dww_ref[l * ksize]
        for k in range(1, ksize):
            s = off + k * d - p
            y = y + buf_ref[s:s + t_len, :] * dww_ref[l * ksize + k]
        y = y + dwb_ref[l]
        # LayerNorm over channels (one-pass stats) + GELU
        mu = jnp.mean(y, axis=-1, keepdims=True)
        var = jnp.mean(y * y, axis=-1, keepdims=True) - mu * mu
        y = (y - mu) * jax.lax.rsqrt(var + LN_EPS)
        y = _gelu(y * g1_ref[l] + b1_ref[l]).astype(jnp.bfloat16)
        # 1x1 conv on the MXU: bf16 operands, f32 accumulation
        y2 = jnp.dot(y, pww_ref[l], preferred_element_type=jnp.float32) + pwb_ref[l]
        mu2 = jnp.mean(y2, axis=-1, keepdims=True)
        var2 = jnp.mean(y2 * y2, axis=-1, keepdims=True) - mu2 * mu2
        y2 = (y2 - mu2) * jax.lax.rsqrt(var2 + LN_EPS)
        y2 = _gelu(y2 * g2_ref[l] + b2_ref[l])
        # TODO(synk): dropout(p=0.5) between GELU and residual is identity (eval).
        x = x + y2

    o_ref[...] = (x * m).astype(o_ref.dtype)


# ----------------------------- Pallas wrappers ----------------------------------
def linear_1x1(x_btc, lin, mask_bt1=None, out_dtype=jnp.float32):
    """1x1 Conv1d as GEMM: (B,T,Cin) @ (Cin,Nout) + b, optional per-frame mask."""
    B, T, C = x_btc.shape
    w, b, nvalid = lin["w"], lin["b"], lin["n"]
    Kdim, Np = w.shape
    assert Kdim == C
    M = B * T
    x2 = x_btc.reshape(M, C)

    # Pad rows only to a multiple of 8 and pick the largest power-of-two tile
    # (<=512) dividing it -> no padded-tile waste; keep >=2 grid steps when
    # rows allow it (v7x megacore / double-buffer overlap).
    Mp = _round_up(M, 8)
    tm = 8
    while tm < 512 and Mp % (tm * 2) == 0:
        tm *= 2
    if tm < 128 and Mp > 1024:
        tm = 128                       # avoid many tiny steps; <=127 padded rows
        Mp = _round_up(M, tm)
    if Mp // tm < 2 and tm >= 16:
        tm //= 2

    if Mp != M:
        x2 = jnp.pad(x2, ((0, Mp - M), (0, 0)))
    grid = (Mp // tm,)
    cp = pltpu.CompilerParams(dimension_semantics=("parallel",))

    if mask_bt1 is None:
        out = pl.pallas_call(
            _linear_kernel,
            out_shape=jax.ShapeDtypeStruct((Mp, Np), out_dtype),
            grid=grid,
            in_specs=[
                pl.BlockSpec((tm, C), lambda i: (i, 0)),
                pl.BlockSpec((C, Np), lambda i: (0, 0)),
                pl.BlockSpec((1, Np), lambda i: (0, 0)),
            ],
            out_specs=pl.BlockSpec((tm, Np), lambda i: (i, 0)),
            compiler_params=cp,
        )(x2, w, b)
    else:
        m2 = mask_bt1.reshape(M, 1)
        if Mp != M:
            m2 = jnp.pad(m2, ((0, Mp - M), (0, 0)))
        out = pl.pallas_call(
            _linear_mask_kernel,
            out_shape=jax.ShapeDtypeStruct((Mp, Np), out_dtype),
            grid=grid,
            in_specs=[
                pl.BlockSpec((tm, C), lambda i: (i, 0)),
                pl.BlockSpec((C, Np), lambda i: (0, 0)),
                pl.BlockSpec((1, Np), lambda i: (0, 0)),
                pl.BlockSpec((tm, 1), lambda i: (i, 0)),
            ],
            out_specs=pl.BlockSpec((tm, Np), lambda i: (i, 0)),
            compiler_params=cp,
        )(x2, w, b, m2)

    if Mp != M:
        out = out[:M]
    if nvalid != Np:
        out = out[:, :nvalid]
    return out.reshape(B, T, nvalid)


def dds_block(x_btc, mask_bt1, dds, g_btc=None, out_dtype=jnp.bfloat16):
    """Whole DDSConv stack (all layers fused) as one pallas_call, batch-parallel."""
    B, T, C = x_btc.shape
    ksize, n_layers, dils = dds["ksize"], dds["n_layers"], dds["dils"]
    max_pad = (dils[-1] * (ksize - 1)) // 2
    off = _round_up(max(max_pad, 1), 8)        # 8-aligned halo offset
    tpad = T + 2 * off
    has_g = g_btc is not None

    kern = functools.partial(_dds_block_kernel, ksize=ksize, n_layers=n_layers,
                             dils=dils, t_len=T, off=off, has_g=has_g)

    in_specs = [
        pl.BlockSpec((None, T, C), lambda b: (b, 0, 0)),      # x
        pl.BlockSpec((None, T, 1), lambda b: (b, 0, 0)),      # mask
    ]
    args = [x_btc, mask_bt1]
    if has_g:
        in_specs.append(pl.BlockSpec((None, T, C), lambda b: (b, 0, 0)))
        args.append(g_btc)
    in_specs += [
        pl.BlockSpec((n_layers * ksize, C), lambda b: (0, 0)),   # dw_w
        pl.BlockSpec((n_layers, C), lambda b: (0, 0)),           # dw_b
        pl.BlockSpec((n_layers, C), lambda b: (0, 0)),           # ln1 gamma
        pl.BlockSpec((n_layers, C), lambda b: (0, 0)),           # ln1 beta
        pl.BlockSpec((n_layers, C, C), lambda b: (0, 0, 0)),     # pw_w (bf16)
        pl.BlockSpec((n_layers, C), lambda b: (0, 0)),           # pw_b
        pl.BlockSpec((n_layers, C), lambda b: (0, 0)),           # ln2 gamma
        pl.BlockSpec((n_layers, C), lambda b: (0, 0)),           # ln2 beta
    ]
    args += [dds["dw_w"], dds["dw_b"], dds["g1"], dds["b1"],
             dds["pw_w"], dds["pw_b"], dds["g2"], dds["b2"]]

    # Whole-T blocks: raise the scoped-VMEM limit only if long utterances need it.
    # TODO(synk): for very long T (v7x has 64 MiB VMEM) tile the time axis with a
    # cross-layer halo instead of whole-T blocks; also gives >B grid steps.
    bpe_in = jnp.dtype(x_btc.dtype).itemsize
    bpe_out = jnp.dtype(out_dtype).itemsize
    vmem_est = (2 * T * C * (bpe_in + (4 if has_g else 0) + bpe_out)
                + tpad * C * 4 + 2 * n_layers * C * C * 2 + (4 << 20))
    cp_kwargs = dict(dimension_semantics=("parallel",))
    if vmem_est > (24 << 20):
        cp_kwargs["vmem_limit_bytes"] = int(min(2 * vmem_est, 64 << 20))

    return pl.pallas_call(
        kern,
        out_shape=jax.ShapeDtypeStruct((B, T, C), out_dtype),
        grid=(B,),                                   # batch-parallel grid steps
        in_specs=in_specs,
        out_specs=pl.BlockSpec((None, T, C), lambda b: (b, 0, 0)),
        scratch_shapes=[pltpu.VMEM((tpad, C), jnp.float32)],
        compiler_params=pltpu.CompilerParams(**cp_kwargs),
    )(*args)


# ----------------------------- parameter init ----------------------------------
def _uniform(key, shape, bound):
    return jax.random.uniform(key, shape, jnp.float32, -bound, bound)


def make_linear(key, cin, cout, zero_init=False):
    npad = _round_up(cout, 128)
    if zero_init:
        w = jnp.zeros((cin, cout), jnp.float32)
        b = jnp.zeros((cout,), jnp.float32)
    else:
        k1, k2 = jax.random.split(key)
        bound = 1.0 / math.sqrt(cin)
        w = _uniform(k1, (cin, cout), bound)
        b = _uniform(k2, (cout,), bound)
    # pad N to a lane multiple ONCE at init (zero columns), store bf16 weights
    w = jnp.pad(w, ((0, 0), (0, npad - cout))).astype(jnp.bfloat16)
    b = jnp.pad(b, (0, npad - cout)).reshape(1, npad)
    return {"w": w, "b": b, "n": cout}


def make_vec_conv(key, cout):
    # Conv1d(1, cout, 1): fan_in = 1 -> bound = 1  (just a broadcast, no GEMM)
    k1, k2 = jax.random.split(key)
    return _uniform(k1, (cout,), 1.0), _uniform(k2, (cout,), 1.0)


def init_ddsconv(key, channels, ksize, n_layers):
    keys = jax.random.split(key, n_layers)
    dw_w, dw_b, pw_w, pw_b = [], [], [], []
    bdw = 1.0 / math.sqrt(ksize)        # depthwise Conv1d: fan_in = ksize
    bpw = 1.0 / math.sqrt(channels)     # 1x1 Conv1d:       fan_in = channels
    for i in range(n_layers):
        k1, k2, k3, k4 = jax.random.split(keys[i], 4)
        dw_w.append(_uniform(k1, (ksize, channels), bdw))
        dw_b.append(_uniform(k2, (channels,), bdw))
        pw_w.append(_uniform(k3, (channels, channels), bpw))
        pw_b.append(_uniform(k4, (channels,), bpw))
    return {
        "ksize": ksize, "n_layers": n_layers,
        "dils": tuple(ksize ** i for i in range(n_layers)),
        "dw_w": jnp.concatenate(dw_w, axis=0),                 # (L*K, C)
        "dw_b": jnp.stack(dw_b, axis=0),                       # (L, C)
        "g1": jnp.ones((n_layers, channels), jnp.float32),
        "b1": jnp.zeros((n_layers, channels), jnp.float32),
        "pw_w": jnp.stack(pw_w, axis=0).astype(jnp.bfloat16),  # (L, C, C)
        "pw_b": jnp.stack(pw_b, axis=0),
        "g2": jnp.ones((n_layers, channels), jnp.float32),
        "b2": jnp.zeros((n_layers, channels), jnp.float32),
    }


def init_convflow(key, filter_channels, ksize):
    k1, k2 = jax.random.split(key)
    pre_w, pre_b = make_vec_conv(k1, filter_channels)
    return {
        "kind": "convflow",
        "pre_w": pre_w, "pre_b": pre_b,
        "dds": init_ddsconv(k2, filter_channels, ksize, 3),
        # proj is zero-initialized in VITS ConvFlow
        "proj": make_linear(None, filter_channels, 3 * NUM_BINS - 1, zero_init=True),
        "filter_channels": filter_channels,
    }


def init_sdp_params(key, in_channels, ksize, n_flows):
    filter_channels = in_channels   # as in the module
    ks = jax.random.split(key, 8)

    def flow_list(k, n_cf):
        kk = jax.random.split(k, n_cf)
        fl = [{"kind": "ea",
               "m": jnp.zeros((2, 1), jnp.float32),
               "logs": jnp.zeros((2, 1), jnp.float32)}]
        for i in range(n_cf):
            fl.append(init_convflow(kk[i], filter_channels, ksize))
            fl.append({"kind": "flip"})
        return fl

    post_pre_w, post_pre_b = make_vec_conv(ks[3], filter_channels)
    return {
        "pre": make_linear(ks[0], in_channels, filter_channels),
        "proj": make_linear(ks[1], filter_channels, filter_channels),
        "convs": init_ddsconv(ks[2], filter_channels, ksize, 3),
        "post_pre_w": post_pre_w, "post_pre_b": post_pre_b,
        "post_proj": make_linear(ks[4], filter_channels, filter_channels),
        "post_convs": init_ddsconv(ks[5], filter_channels, ksize, 3),
        "flows": flow_list(ks[6], n_flows),
        "post_flows": flow_list(ks[7], 4),
    }


# ------------------- rational-quadratic spline (plain JAX glue) -----------------
def _searchsorted(bin_locations, inputs, eps=1e-6):
    bin_locations = bin_locations.at[..., -1].add(eps)
    return jnp.sum((inputs[..., None] >= bin_locations).astype(jnp.int32), axis=-1) - 1


def _rational_quadratic_spline(inputs, uw, uh, ud, inverse, left, right, bottom, top):
    num_bins = uw.shape[-1]

    widths = jax.nn.softmax(uw, axis=-1)
    widths = _MIN_BIN_WIDTH + (1.0 - _MIN_BIN_WIDTH * num_bins) * widths
    cumwidths = jnp.cumsum(widths, axis=-1)
    cumwidths = jnp.pad(cumwidths, [(0, 0)] * (cumwidths.ndim - 1) + [(1, 0)])
    cumwidths = (right - left) * cumwidths + left
    cumwidths = cumwidths.at[..., 0].set(left)
    cumwidths = cumwidths.at[..., -1].set(right)
    widths = cumwidths[..., 1:] - cumwidths[..., :-1]

    derivatives = _MIN_DERIVATIVE + jax.nn.softplus(ud)

    heights = jax.nn.softmax(uh, axis=-1)
    heights = _MIN_BIN_HEIGHT + (1.0 - _MIN_BIN_HEIGHT * num_bins) * heights
    cumheights = jnp.cumsum(heights, axis=-1)
    cumheights = jnp.pad(cumheights, [(0, 0)] * (cumheights.ndim - 1) + [(1, 0)])
    cumheights = (top - bottom) * cumheights + bottom
    cumheights = cumheights.at[..., 0].set(bottom)
    cumheights = cumheights.at[..., -1].set(top)
    heights = cumheights[..., 1:] - cumheights[..., :-1]

    bin_idx = _searchsorted(cumheights if inverse else cumwidths, inputs)[..., None]

    def gather(t):
        return jnp.take_along_axis(t, bin_idx, axis=-1)[..., 0]

    input_cumwidths = gather(cumwidths)
    input_bin_widths = gather(widths)
    input_cumheights = gather(cumheights)
    delta = heights / widths
    input_delta = gather(delta)
    input_derivatives = gather(derivatives)
    input_derivatives_p1 = gather(derivatives[..., 1:])
    input_heights = gather(heights)

    dsum = input_derivatives + input_derivatives_p1 - 2.0 * input_delta
    if inverse:
        a = (inputs - input_cumheights) * dsum + input_heights * (input_delta - input_derivatives)
        b = input_heights * input_derivatives - (inputs - input_cumheights) * dsum
        c = -input_delta * (inputs - input_cumheights)
        discriminant = b * b - 4.0 * a * c
        root = (2.0 * c) / (-b - jnp.sqrt(discriminant))
        outputs = root * input_bin_widths + input_cumwidths
        tomt = root * (1.0 - root)
        denominator = input_delta + dsum * tomt
        dnum = (input_delta ** 2) * (input_derivatives_p1 * root ** 2
                                     + 2.0 * input_delta * tomt
                                     + input_derivatives * (1.0 - root) ** 2)
        logabsdet = jnp.log(dnum) - 2.0 * jnp.log(denominator)
        return outputs, -logabsdet
    theta = (inputs - input_cumwidths) / input_bin_widths
    tomt = theta * (1.0 - theta)
    numerator = input_heights * (input_delta * theta ** 2 + input_derivatives * tomt)
    denominator = input_delta + dsum * tomt
    outputs = input_cumheights + numerator / denominator
    dnum = (input_delta ** 2) * (input_derivatives_p1 * theta ** 2
                                 + 2.0 * input_delta * tomt
                                 + input_derivatives * (1.0 - theta) ** 2)
    logabsdet = jnp.log(dnum) - 2.0 * jnp.log(denominator)
    return outputs, logabsdet


def _unconstrained_rqs(inputs, uw, uh, ud, inverse, tail_bound):
    inside = (inputs >= -tail_bound) & (inputs <= tail_bound)
    constant = math.log(math.exp(1.0 - _MIN_DERIVATIVE) - 1.0)
    ud = jnp.pad(ud, [(0, 0)] * (ud.ndim - 1) + [(1, 1)], constant_values=constant)
    out_in, lad_in = _rational_quadratic_spline(
        jnp.clip(inputs, -tail_bound, tail_bound), uw, uh, ud, inverse,
        left=-tail_bound, right=tail_bound, bottom=-tail_bound, top=tail_bound)
    outputs = jnp.where(inside, out_in, inputs)
    logabsdet = jnp.where(inside, lad_in, jnp.zeros_like(inputs))
    return outputs, logabsdet


# ------------------------------- flow modules -----------------------------------
def convflow_apply(flow, z, x_mask_b1t, g_btc, mask_bt1, reverse):
    x0 = z[:, 0:1, :]
    x1 = z[:, 1:2, :]
    # pre: Conv1d(1, filter, 1) == broadcast
    h = jnp.transpose(x0, (0, 2, 1)) * flow["pre_w"] + flow["pre_b"]      # (B,T,C)
    h = dds_block(h, mask_bt1, flow["dds"], g_btc=g_btc)                  # fused DDS
    h = linear_1x1(h, flow["proj"], mask_bt1)                             # (B,T,3*nb-1) f32
    h = h[:, None, :, :]                                                  # (B,1,T,3*nb-1)
    sf = math.sqrt(flow["filter_channels"])
    uw = h[..., :NUM_BINS] / sf
    uh = h[..., NUM_BINS:2 * NUM_BINS] / sf
    ud = h[..., 2 * NUM_BINS:]
    x1_new, logabsdet = _unconstrained_rqs(x1, uw, uh, ud, inverse=reverse,
                                           tail_bound=TAIL_BOUND)
    z_out = jnp.concatenate([x0, x1_new], axis=1) * x_mask_b1t
    if reverse:
        return z_out
    logdet = jnp.sum(logabsdet * x_mask_b1t, axis=(1, 2))
    return z_out, logdet


def flow_apply(flow, z, x_mask_b1t, g_btc, mask_bt1, reverse):
    kind = flow["kind"]
    if kind == "ea":                                   # ElementwiseAffine(2)
        m, logs = flow["m"], flow["logs"]
        if not reverse:
            y = (m + jnp.exp(logs) * z) * x_mask_b1t
            return y, jnp.sum(logs * x_mask_b1t, axis=(1, 2))
        return (z - m) * jnp.exp(-logs) * x_mask_b1t
    if kind == "flip":                                 # Flip
        y = z[:, ::-1, :]
        if not reverse:
            return y, jnp.zeros((z.shape[0],), z.dtype)
        return y
    return convflow_apply(flow, z, x_mask_b1t, g_btc, mask_bt1, reverse)


# --------------------------------- SDP forward ----------------------------------
def sdp_forward(params, x_bct, x_mask_b1t, w_b1t, rng, reverse=False, noise_scale=1.0):
    # single transpose at the PyTorch (B,C,T) boundary -> channel-last internals
    x = jnp.transpose(x_bct, (0, 2, 1))                 # (B,T,C)
    mask_bt1 = jnp.transpose(x_mask_b1t, (0, 2, 1))     # (B,T,1)
    B, T, _ = x.shape

    x = linear_1x1(x, params["pre"], out_dtype=jnp.bfloat16)     # self.pre (gin == 0)
    x = dds_block(x, mask_bt1, params["convs"])                  # self.convs (fused, bf16)
    x = linear_1x1(x, params["proj"], mask_bt1)                  # self.proj * x_mask (f32)

    if not reverse:
        # h_w path
        h_w = jnp.transpose(w_b1t, (0, 2, 1)) * params["post_pre_w"] + params["post_pre_b"]
        h_w = dds_block(h_w, mask_bt1, params["post_convs"])
        h_w = linear_1x1(h_w, params["post_proj"], mask_bt1)

        e_q = jax.random.normal(rng, (B, 2, T), jnp.float32) * x_mask_b1t
        z_q = e_q
        logdet_tot_q = jnp.zeros((B,), jnp.float32)
        g_post = x + h_w
        for flow in params["post_flows"]:
            z_q, ld = flow_apply(flow, z_q, x_mask_b1t, g_post, mask_bt1, reverse=False)
            logdet_tot_q = logdet_tot_q + ld

        z_u = z_q[:, 0:1, :]
        z1 = z_q[:, 1:2, :]
        u = jax.nn.sigmoid(z_u) * x_mask_b1t
        z0 = (w_b1t - u) * x_mask_b1t
        logdet_tot_q = logdet_tot_q + jnp.sum(
            (jax.nn.log_sigmoid(z_u) + jax.nn.log_sigmoid(-z_u)) * x_mask_b1t, axis=(1, 2))
        logq = jnp.sum(-0.5 * (math.log(2 * math.pi) + e_q ** 2) * x_mask_b1t,
                       axis=(1, 2)) - logdet_tot_q

        # Log flow
        z0 = jnp.log(jnp.maximum(z0, 1e-5)) * x_mask_b1t
        logdet_tot = jnp.sum(-z0, axis=(1, 2))
        z = jnp.concatenate([z0, z1], axis=1)
        for flow in params["flows"]:
            z, ld = flow_apply(flow, z, x_mask_b1t, x, mask_bt1, reverse=False)
            logdet_tot = logdet_tot + ld
        nll = jnp.sum(0.5 * (math.log(2 * math.pi) + z ** 2) * x_mask_b1t,
                      axis=(1, 2)) - logdet_tot
        return nll + logq

    # reverse (inference) path
    flows = list(reversed(params["flows"]))
    flows = flows[:-2] + [flows[-1]]                    # drop the unused ConvFlow
    z = jax.random.normal(rng, (B, 2, T), jnp.float32) * noise_scale
    for flow in flows:
        z = flow_apply(flow, z, x_mask_b1t, x, mask_bt1, reverse=True)
    return z[:, 0:1, :]                                 # logw


# ------------------------------------ main ---------------------------------------
if __name__ == "__main__":
    root = jax.random.PRNGKey(0)
    k_param, k_x, k_w, k_eq, k_z = jax.random.split(root, 5)

    B, T = 2, 8
    params = init_sdp_params(k_param, IN_CHANNELS, KERNEL_SIZE, N_FLOWS)

    x = jax.random.normal(k_x, (B, IN_CHANNELS, T), jnp.float32)
    lengths = jnp.array([T, T - 2])
    x_mask = (jnp.arange(T)[None, :] < lengths[:, None]).astype(jnp.float32)[:, None, :]
    w = jnp.abs(jax.random.normal(k_w, (B, 1, T), jnp.float32)) * 3.0 + 1.0

    # params are closed over (static structure: dilations, flow kinds, etc.)
    nll_fn = jax.jit(lambda xx, mm, ww, kk: sdp_forward(params, xx, mm, ww, kk, reverse=False))
    logw_fn = jax.jit(lambda xx, mm, kk: sdp_forward(params, xx, mm, None, kk,
                                                     reverse=True, noise_scale=1.0))

    nll = nll_fn(x, x_mask, w, k_eq)          # training path: NLL + logq, shape (B,)
    logw = logw_fn(x, x_mask, k_z)            # inference path: logw, shape (B,1,T)
    jax.block_until_ready((nll, logw))

    assert nll.shape == (B,) and bool(jnp.all(jnp.isfinite(nll)))
    assert logw.shape == (B, 1, T) and bool(jnp.all(jnp.isfinite(logw)))
    print("KERNEL_OK")
</pallas_src>

<mosaic_0001>
module attributes {stable_mosaic.version = 11 : i64} {
  func.func @_linear_mask_kernel(%arg0: i32, %arg1: memref<8x128xbf16, #tpu.memory_space<vmem>>, %arg2: memref<128x128xbf16, #tpu.memory_space<vmem>>, %arg3: memref<1x128xf32, #tpu.memory_space<vmem>>, %arg4: memref<8x1xf32, #tpu.memory_space<vmem>>, %arg5: memref<8x128xf32, #tpu.memory_space<vmem>>) attributes {dimension_semantics = [#tpu.dimension_semantics<parallel>], iteration_bounds = array<i64: 2>, scalar_prefetch = 0 : i64, scratch_operands = 0 : i64, tpu.core_type = #tpu.core_type<tc>, window_params = [{transform_indices = @transform_0, window_bounds = array<i64: 8, 128>}, {pipeline_mode = #tpu.pipeline_mode<synchronous>, transform_indices = @transform_1, window_bounds = array<i64: 128, 128>}, {pipeline_mode = #tpu.pipeline_mode<synchronous>, transform_indices = @transform_2, window_bounds = array<i64: 1, 128>}, {transform_indices = @transform_3, window_bounds = array<i64: 8, 1>}, {transform_indices = @transform_4, window_bounds = array<i64: 8, 128>}]} {
    %c0 = arith.constant 0 : index
    %c0_0 = arith.constant 0 : index
    %0 = vector.load %arg1[%c0, %c0_0] : memref<8x128xbf16, #tpu.memory_space<vmem>>, vector<8x128xbf16>
    %c0_1 = arith.constant 0 : index
    %c0_2 = arith.constant 0 : index
    %1 = vector.load %arg2[%c0_1, %c0_2] : memref<128x128xbf16, #tpu.memory_space<vmem>>, vector<128x128xbf16>
    %cst = arith.constant dense<0.000000e+00> : vector<8x128xf32>
    %2 = tpu.matmul %0, %1, %cst {dimension_numbers = #tpu.dot_dimension_numbers<[1], [0], [0], [1], [0, 0, 1, 1], [], []>} : vector<8x128xbf16>, vector<128x128xbf16>, vector<8x128xf32> -> vector<8x128xf32>
    %c0_3 = arith.constant 0 : index
    %c0_4 = arith.constant 0 : index
    %3 = vector.load %arg3[%c0_3, %c0_4] : memref<1x128xf32, #tpu.memory_space<vmem>>, vector<1x128xf32>
    %4 = vector.broadcast %3 : vector<1x128xf32> to vector<8x128xf32>
    %5 = arith.addf %2, %4 : vector<8x128xf32>
    %c0_5 = arith.constant 0 : index
    %c0_6 = arith.constant 0 : index
    %6 = vector.load %arg4[%c0_5, %c0_6] : memref<8x1xf32, #tpu.memory_space<vmem>>, vector<8x1xf32>
    %7 = vector.broadcast %6 : vector<8x1xf32> to vector<8x128xf32>
    %8 = arith.mulf %5, %7 : vector<8x128xf32>
    %c0_7 = arith.constant 0 : index
    %c0_8 = arith.constant 0 : index
    %9 = vector.load %arg5[%c0_7, %c0_8] : memref<8x128xf32, #tpu.memory_space<vmem>>, vector<8x128xf32>
    tpu.vector_store %arg5[%c0_7, %c0_8], %8 {strides = array<i32>} : memref<8x128xf32, #tpu.memory_space<vmem>>, vector<8x128xf32>,
    return
  }
  func.func @transform_0(%arg0: i32) -> (i32, i32) {
    %c0_i32 = arith.constant 0 : i32
    %c0_i32_0 = arith.constant 0 : i32
    return %arg0, %c0_i32 : i32, i32
  }
  func.func @transform_1(%arg0: i32) -> (i32, i32) {
    %c0_i32 = arith.constant 0 : i32
    %c0_i32_0 = arith.constant 0 : i32
    %c0_i32_1 = arith.constant 0 : i32
    return %c0_i32, %c0_i32_0 : i32, i32
  }
  func.func @transform_2(%arg0: i32) -> (i32, i32) {
    %c0_i32 = arith.constant 0 : i32
    %c0_i32_0 = arith.constant 0 : i32
    %c0_i32_1 = arith.constant 0 : i32
    return %c0_i32, %c0_i32_0 : i32, i32
  }
  func.func @transform_3(%arg0: i32) -> (i32, i32) {
    %c0_i32 = arith.constant 0 : i32
    %c0_i32_0 = arith.constant 0 : i32
    return %arg0, %c0_i32 : i32, i32
  }
  func.func @transform_4(%arg0: i32) -> (i32, i32) {
    %c0_i32 = arith.constant 0 : i32
    %c0_i32_0 = arith.constant 0 : i32
    return %arg0, %c0_i32 : i32, i32
  }
}

module attributes {stable_mosaic.version = 11 : i64} {
  func.func @_linear_kernel(%arg0: i32, %arg1: memref<8x128xf32, #tpu.memory_space<vmem>>, %arg2: memref<128x128xbf16, #tpu.memory_space<vmem>>, %arg3: memref<1x128xf32, #tpu.memory_space<vmem>>, %arg4: memref<8x128xbf16, #tpu.memory_space<vmem>>) attributes {dimension_semantics = [#tpu.dimension_semantics<parallel>], iteration_bounds = array<i64: 2>, scalar_prefetch = 0 : i64, scratch_operands = 0 : i64, tpu.core_type = #tpu.core_type<tc>, window_params = [{transform_indices = @transform_0, window_bounds = array<i64: 8, 128>}, {pipeline_mode = #tpu.pipeline_mode<synchronous>, transform_indices = @transform_1, window_bounds = array<i64: 128, 128>}, {pipeline_mode = #tpu.pipeline_mode<synchronous>, transform_indices = @transform_2, window_bounds = array<i64: 1, 128>}, {transform_indices = @transform_3, window_bounds = array<i64: 8, 128>}]} {
    %c0 = arith.constant 0 : index
    %c0_0 = arith.constant 0 : index
    %0 = vector.load %arg1[%c0, %c0_0] : memref<8x128xf32, #tpu.memory_space<vmem>>, vector<8x128xf32>
    %1 = arith.truncf %0 : vector<8x128xf32> to vector<8x128xbf16>
    %c0_1 = arith.constant 0 : index
    %c0_2 = arith.constant 0 : index
    %2 = vector.load %arg2[%c0_1, %c0_2] : memref<128x128xbf16, #tpu.memory_space<vmem>>, vector<128x128xbf16>
    %cst = arith.constant dense<0.000000e+00> : vector<8x128xf32>
    %3 = tpu.matmul %1, %2, %cst {dimension_numbers = #tpu.dot_dimension_numbers<[1], [0], [0], [1], [0, 0, 1, 1], [], []>} : vector<8x128xbf16>, vector<128x128xbf16>, vector<8x128xf32> -> vector<8x128xf32>
    %c0_3 = arith.constant 0 : index
    %c0_4 = arith.constant 0 : index
    %4 = vector.load %arg3[%c0_3, %c0_4] : memref<1x128xf32, #tpu.memory_space<vmem>>, vector<1x128xf32>
    %5 = vector.broadcast %4 : vector<1x128xf32> to vector<8x128xf32>
    %6 = arith.addf %3, %5 : vector<8x128xf32>
    %7 = arith.truncf %6 : vector<8x128xf32> to vector<8x128xbf16>
    %c0_5 = arith.constant 0 : index
    %c0_6 = arith.constant 0 : index
    %8 = vector.load %arg4[%c0_5, %c0_6] : memref<8x128xbf16, #tpu.memory_space<vmem>>, vector<8x128xbf16>
    tpu.vector_store %arg4[%c0_5, %c0_6], %7 {strides = array<i32>} : memref<8x128xbf16, #tpu.memory_space<vmem>>, vector<8x128xbf16>,
    return
  }
  func.func @transform_0(%arg0: i32) -> (i32, i32) {
    %c0_i32 = arith.constant 0 : i32
    %c0_i32_0 = arith.constant 0 : i32
    return %arg0, %c0_i32 : i32, i32
  }
  func.func @transform_1(%arg0: i32) -> (i32, i32) {
    %c0_i32 = arith.constant 0 : i32
    %c0_i32_0 = arith.constant 0 : i32
    %c0_i32_1 = arith.constant 0 : i32
    return %c0_i32, %c0_i32_0 : i32, i32
  }
  func.func @transform_2(%arg0: i32) -> (i32, i32) {
    %c0_i32 = arith.constant 0 : i32
    %c0_i32_0 = arith.constant 0 : i32
    %c0_i32_1 = arith.constant 0 : i32
    return %c0_i32, %c0_i32_0 : i32, i32
  }
  func.func @transform_3(%arg0: i32) -> (i32, i32) {
    %c0_i32 = arith.constant 0 : i32
    %c0_i32_0 = arith.constant 0 : i32
    return %arg0, %c0_i32 : i32, i32
  }
}

module attributes {stable_mosaic.version = 11 : i64} {
  func.func @_dds_block_kernel(%arg0: i32, %arg1: memref<1x8x128xbf16, #tpu.memory_space<vmem>>, %arg2: memref<1x8x1xf32, #tpu.memory_space<vmem>>, %arg3: memref<9x128xf32, #tpu.memory_space<vmem>>, %arg4: memref<3x128xf32, #tpu.memory_space<vmem>>, %arg5: memref<3x128xf32, #tpu.memory_space<vmem>>, %arg6: memref<3x128xf32, #tpu.memory_space<vmem>>, %arg7: memref<3x128x128xbf16, #tpu.memory_space<vmem>>, %arg8: memref<3x128xf32, #tpu.memory_space<vmem>>, %arg9: memref<3x128xf32, #tpu.memory_space<vmem>>, %arg10: memref<3x128xf32, #tpu.memory_space<vmem>>, %arg11: memref<1x8x128xbf16, #tpu.memory_space<vmem>>, %arg12: memref<40x128xf32, #tpu.memory_space<vmem>>) attributes {dimension_semantics = [#tpu.dimension_semantics<parallel>], iteration_bounds = array<i64: 2>, scalar_prefetch = 0 : i64, scratch_operands = 1 : i64, tpu.core_type = #tpu.core_type<tc>, window_params = [{transform_indices = @transform_0, window_bounds = array<i64: 1, 8, 128>}, {transform_indices = @transform_1, window_bounds = array<i64: 1, 8, 1>}, {pipeline_mode = #tpu.pipeline_mode<synchronous>, transform_indices = @transform_2, window_bounds = array<i64: 9, 128>}, {pipeline_mode = #tpu.pipeline_mode<synchronous>, transform_indices = @transform_3, window_bounds = array<i64: 3, 128>}, {pipeline_mode = #tpu.pipeline_mode<synchronous>, transform_indices = @transform_4, window_bounds = array<i64: 3, 128>}, {pipeline_mode = #tpu.pipeline_mode<synchronous>, transform_indices = @transform_5, window_bounds = array<i64: 3, 128>}, {pipeline_mode = #tpu.pipeline_mode<synchronous>, transform_indices = @transform_6, window_bounds = array<i64: 3, 128, 128>}, {pipeline_mode = #tpu.pipeline_mode<synchronous>, transform_indices = @transform_7, window_bounds = array<i64: 3, 128>}, {pipeline_mode = #tpu.pipeline_mode<synchronous>, transform_indices = @transform_8, window_bounds = array<i64: 3, 128>}, {pipeline_mode = #tpu.pipeline_mode<synchronous>, transform_indices = @transform_9, window_bounds = array<i64: 3, 128>}, {transform_indices = @transform_10, window_bounds = array<i64: 1, 8, 128>}]} {
    %c0 = arith.constant 0 : index
    %c0_0 = arith.constant 0 : index
    %c0_1 = arith.constant 0 : index
    %0 = vector.load %arg2[%c0, %c0_0, %c0_1] : memref<1x8x1xf32, #tpu.memory_space<vmem>>, vector<1x8x1xf32>
    %1 = vector.shape_cast %0 : vector<1x8x1xf32> to vector<8x1xf32>
    %c0_2 = arith.constant 0 : index
    %c0_3 = arith.constant 0 : index
    %c0_4 = arith.constant 0 : index
    %2 = vector.load %arg1[%c0_2, %c0_3, %c0_4] : memref<1x8x128xbf16, #tpu.memory_space<vmem>>, vector<1x8x128xbf16>
    %3 = vector.shape_cast %2 : vector<1x8x128xbf16> to vector<8x128xbf16>
    %4 = arith.extf %3 : vector<8x128xbf16> to vector<8x128xf32>
    %cst = arith.constant 0.000000e+00 : f32
    %5 = vector.broadcast %cst : f32 to vector<16x128xf32>
    %c0_5 = arith.constant 0 : index
    %c0_6 = arith.constant 0 : index
    %6 = vector.load %arg12[%c0_5, %c0_6] : memref<40x128xf32, #tpu.memory_space<vmem>>, vector<16x128xf32>
    tpu.vector_store %arg12[%c0_5, %c0_6], %5 {strides = array<i32>} : memref<40x128xf32, #tpu.memory_space<vmem>>, vector<16x128xf32>,
    %c24 = arith.constant 24 : index
    %c0_7 = arith.constant 0 : index
    %7 = vector.load %arg12[%c24, %c0_7] : memref<40x128xf32, #tpu.memory_space<vmem>>, vector<16x128xf32>
    tpu.vector_store %arg12[%c24, %c0_7], %5 {strides = array<i32>} : memref<40x128xf32, #tpu.memory_space<vmem>>, vector<16x128xf32>,
    %8 = vector.broadcast %1 : vector<8x1xf32> to vector<8x128xf32>
    %9 = arith.mulf %4, %8 : vector<8x128xf32>
    %c16 = arith.constant 16 : index
    %c0_8 = arith.constant 0 : index
    %10 = vector.load %arg12[%c16, %c0_8] : memref<40x128xf32, #tpu.memory_space<vmem>>, vector<8x128xf32>
    tpu.vector_store %arg12[%c16, %c0_8], %9 {strides = array<i32>} : memref<40x128xf32, #tpu.memory_space<vmem>>, vector<8x128xf32>,
    %c15 = arith.constant 15 : index
    %c0_9 = arith.constant 0 : index
    %11 = vector.load %arg12[%c15, %c0_9] : memref<40x128xf32, #tpu.memory_space<vmem>>, vector<8x128xf32>
    %c0_10 = arith.constant 0 : index
    %c0_11 = arith.constant 0 : index
    %12 = vector.load %arg3[%c0_10, %c0_11] : memref<9x128xf32, #tpu.memory_space<vmem>>, vector<1x128xf32>
    %13 = vector.shape_cast %12 : vector<1x128xf32> to vector<128xf32>
    %14 = vector.shape_cast %13 : vector<128xf32> to vector<1x128xf32>
    %15 = vector.broadcast %14 : vector<1x128xf32> to vector<8x128xf32>
    %16 = arith.mulf %11, %15 : vector<8x128xf32>
    %c16_12 = arith.constant 16 : index
    %c0_13 = arith.constant 0 : index
    %17 = vector.load %arg12[%c16_12, %c0_13] : memref<40x128xf32, #tpu.memory_space<vmem>>, vector<8x128xf32>
    %c1 = arith.constant 1 : index
    %c0_14 = arith.constant 0 : index
    %18 = vector.load %arg3[%c1, %c0_14] : memref<9x128xf32, #tpu.memory_space<vmem>>, vector<1x128xf32>
    %19 = vector.shape_cast %18 : vector<1x128xf32> to vector<128xf32>
    %20 = vector.shape_cast %19 : vector<128xf32> to vector<1x128xf32>
    %21 = vector.broadcast %20 : vector<1x128xf32> to vector<8x128xf32>
    %22 = arith.mulf %17, %21 : vector<8x128xf32>
    %23 = arith.addf %16, %22 : vector<8x128xf32>
    %c17 = arith.constant 17 : index
    %c0_15 = arith.constant 0 : index
    %24 = vector.load %arg12[%c17, %c0_15] : memref<40x128xf32, #tpu.memory_space<vmem>>, vector<8x128xf32>
    %c2 = arith.constant 2 : index
    %c0_16 = arith.constant 0 : index
    %25 = vector.load %arg3[%c2, %c0_16] : memref<9x128xf32, #tpu.memory_space<vmem>>, vector<1x128xf32>
    %26 = vector.shape_cast %25 : vector<1x128xf32> to vector<128xf32>
    %27 = vector.shape_cast %26 : vector<128xf32> to vector<1x128xf32>
    %28 = vector.broadcast %27 : vector<1x128xf32> to vector<8x128xf32>
    %29 = arith.mulf %24, %28 : vector<8x128xf32>
    %30 = arith.addf %23, %29 : vector<8x128xf32>
    %c0_17 = arith.constant 0 : index
    %c0_18 = arith.constant 0 : index
    %31 = vector.load %arg4[%c0_17, %c0_18] : memref<3x128xf32, #tpu.memory_space<vmem>>, vector<1x128xf32>
    %32 = vector.shape_cast %31 : vector<1x128xf32> to vector<128xf32>
    %33 = vector.shape_cast %32 : vector<128xf32> to vector<1x128xf32>
    %34 = vector.broadcast %33 : vector<1x128xf32> to vector<8x128xf32>
    %35 = arith.addf %30, %34 : vector<8x128xf32>
    %cst_19 = arith.constant dense<0.000000e+00> : vector<8xf32>
    %36 = vector.multi_reduction <add>, %35, %cst_19 [1] : vector<8x128xf32> to vector<8xf32>
    %37 = vector.shape_cast %36 : vector<8xf32> to vector<8x1xf32>
    %cst_20 = arith.constant 1.280000e+02 : f32
    %38 = vector.broadcast %cst_20 : f32 to vector<8x1xf32>
    %39 = arith.divf %37, %38 : vector<8x1xf32>
    %40 = arith.mulf %35, %35 : vector<8x128xf32>
    %cst_21 = arith.constant dense<0.000000e+00> : vector<8xf32>
    %41 = vector.multi_reduction <add>, %40, %cst_21 [1] : vector<8x128xf32> to vector<8xf32>
    %42 = vector.shape_cast %41 : vector<8xf32> to vector<8x1xf32>
    %cst_22 = arith.constant 1.280000e+02 : f32
    %43 = vector.broadcast %cst_22 : f32 to vector<8x1xf32>
    %44 = arith.divf %42, %43 : vector<8x1xf32>
    %45 = arith.mulf %39, %39 : vector<8x1xf32>
    %46 = arith.subf %44, %45 : vector<8x1xf32>
    %47 = vector.broadcast %39 : vector<8x1xf32> to vector<8x128xf32>
    %48 = arith.subf %35, %47 : vector<8x128xf32>
    %cst_23 = arith.constant 9.99999974E-6 : f32
    %49 = vector.broadcast %cst_23 : f32 to vector<8x1xf32>
    %50 = arith.addf %46, %49 : vector<8x1xf32>
    %51 = math.rsqrt %50 : vector<8x1xf32>
    %52 = vector.broadcast %51 : vector<8x1xf32> to vector<8x128xf32>
    %53 = arith.mulf %48, %52 : vector<8x128xf32>
    %c0_24 = arith.constant 0 : index
    %c0_25 = arith.constant 0 : index
    %54 = vector.load %arg5[%c0_24, %c0_25] : memref<3x128xf32, #tpu.memory_space<vmem>>, vector<1x128xf32>
    %55 = vector.shape_cast %54 : vector<1x128xf32> to vector<128xf32>
    %56 = vector.shape_cast %55 : vector<128xf32> to vector<1x128xf32>
    %57 = vector.broadcast %56 : vector<1x128xf32> to vector<8x128xf32>
    %58 = arith.mulf %53, %57 : vector<8x128xf32>
    %c0_26 = arith.constant 0 : index
    %c0_27 = arith.constant 0 : index
    %59 = vector.load %arg6[%c0_26, %c0_27] : memref<3x128xf32, #tpu.memory_space<vmem>>, vector<1x128xf32>
    %60 = vector.shape_cast %59 : vector<1x128xf32> to vector<128xf32>
    %61 = vector.shape_cast %60 : vector<128xf32> to vector<1x128xf32>
    %62 = vector.broadcast %61 : vector<1x128xf32> to vector<8x128xf32>
    %63 = arith.addf %58, %62 : vector<8x128xf32>
    %cst_28 = arith.constant 5.000000e-01 : f32
    %64 = vector.broadcast %cst_28 : f32 to vector<8x128xf32>
    %65 = arith.mulf %64, %63 : vector<8x128xf32>
    %cst_29 = arith.constant 4.471500e-02 : f32
    %66 = vector.broadcast %cst_29 : f32 to vector<8x128xf32>
    %67 = arith.mulf %66, %63 : vector<8x128xf32>
    %68 = arith.mulf %67, %63 : vector<8x128xf32>
    %69 = arith.mulf %68, %63 : vector<8x128xf32>
    %70 = arith.addf %63, %69 : vector<8x128xf32>
    %cst_30 = arith.constant 0.797884583 : f32
    %71 = vector.broadcast %cst_30 : f32 to vector<8x128xf32>
    %72 = arith.mulf %71, %70 : vector<8x128xf32>
    %73 = math.tanh %72 : vector<8x128xf32>
    %cst_31 = arith.constant 1.000000e+00 : f32
    %74 = vector.broadcast %cst_31 : f32 to vector<8x128xf32>
    %75 = arith.addf %74, %73 : vector<8x128xf32>
    %76 = arith.mulf %65, %75 : vector<8x128xf32>
    %77 = arith.truncf %76 : vector<8x128xf32> to vector<8x128xbf16>
    %c0_32 = arith.constant 0 : index
    %c0_33 = arith.constant 0 : index
    %c0_34 = arith.constant 0 : index
    %78 = vector.load %arg7[%c0_32, %c0_33, %c0_34] : memref<3x128x128xbf16, #tpu.memory_space<vmem>>, vector<1x128x128xbf16>
    %79 = vector.shape_cast %78 : vector<1x128x128xbf16> to vector<128x128xbf16>
    %cst_35 = arith.constant dense<0.000000e+00> : vector<8x128xf32>
    %80 = tpu.matmul %77, %79, %cst_35 {dimension_numbers = #tpu.dot_dimension_numbers<[1], [0], [0], [1], [0, 0, 1, 1], [], []>} : vector<8x128xbf16>, vector<128x128xbf16>, vector<8x128xf32> -> vector<8x128xf32>
    %c0_36 = arith.constant 0 : index
    %c0_37 = arith.constant 0 : index
    %81 = vector.load %arg8[%c0_36, %c0_37] : memref<3x128xf32, #tpu.memory_space<vmem>>, vector<1x128xf32>
    %82 = vector.shape_cast %81 : vector<1x128xf32> to vector<128xf32>
    %83 = vector.shape_cast %82 : vector<128xf32> to vector<1x128xf32>
    %84 = vector.broadcast %83 : vector<1x128xf32> to vector<8x128xf32>
    %85 = arith.addf %80, %84 : vector<8x128xf32>
    %cst_38 = arith.constant dense<0.000000e+00> : vector<8xf32>
    %86 = vector.multi_reduction <add>, %85, %cst_38 [1] : vector<8x128xf32> to vector<8xf32>
    %87 = vector.shape_cast %86 : vector<8xf32> to vector<8x1xf32>
    %cst_39 = arith.constant 1.280000e+02 : f32
    %88 = vector.broadcast %cst_39 : f32 to vector<8x1xf32>
    %89 = arith.divf %87, %88 : vector<8x1xf32>
    %90 = arith.mulf %85, %85 : vector<8x128xf32>
    %cst_40 = arith.constant dense<0.000000e+00> : vector<8xf32>
    %91 = vector.multi_reduction <add>, %90, %cst_40 [1] : vector<8x128xf32> to vector<8xf32>
    %92 = vector.shape_cast %91 : vector<8xf32> to vector<8x1xf32>
    %cst_41 = arith.constant 1.280000e+02 : f32
    %93 = vector.broadcast %cst_41 : f32 to vector<8x1xf32>
    %94 = arith.divf %92, %93 : vector<8x1xf32>
    %95 = arith.mulf %89, %89 : vector<8x1xf32>
    %96 = arith.subf %94, %95 : vector<8x1xf32>
    %97 = vector.broadcast %89 : vector<8x1xf32> to vector<8x128xf32>
    %98 = arith.subf %85, %97 : vector<8x128xf32>
    %cst_42 = arith.constant 9.99999974E-6 : f32
    %99 = vector.broadcast %cst_42 : f32 to vector<8x1xf32>
    %100 = arith.addf %96, %99 : vector<8x1xf32>
    %101 = math.rsqrt %100 : vector<8x1xf32>
    %102 = vector.broadcast %101 : vector<8x1xf32> to vector<8x128xf32>
    %103 = arith.mulf %98, %102 : vector<8x128xf32>
    %c0_43 = arith.constant 0 : index
    %c0_44 = arith.constant 0 : index
    %104 = vector.load %arg9[%c0_43, %c0_44] : memref<3x128xf32, #tpu.memory_space<vmem>>, vector<1x128xf32>
    %105 = vector.shape_cast %104 : vector<1x128xf32> to vector<128xf32>
    %106 = vector.shape_cast %105 : vector<128xf32> to vector<1x128xf32>
    %107 = vector.broadcast %106 : vector<1x128xf32> to vector<8x128xf32>
    %108 = arith.mulf %103, %107 : vector<8x128xf32>
    %c0_45 = arith.constant 0 : index
    %c0_46 = arith.constant 0 : index
    %109 = vector.load %arg10[%c0_45, %c0_46] : memref<3x128xf32, #tpu.memory_space<vmem>>, vector<1x128xf32>
    %110 = vector.shape_cast %109 : vector<1x128xf32> to vector<128xf32>
    %111 = vector.shape_cast %110 : vector<128xf32> to vector<1x128xf32>
    %112 = vector.broadcast %111 : vector<1x128xf32> to vector<8x128xf32>
    %113 = arith.addf %108, %112 : vector<8x128xf32>
    %cst_47 = arith.constant 5.000000e-01 : f32
    %114 = vector.broadcast %cst_47 : f32 to vector<8x128xf32>
    %115 = arith.mulf %114, %113 : vector<8x128xf32>
    %cst_48 = arith.constant 4.471500e-02 : f32
    %116 = vector.broadcast %cst_48 : f32 to vector<8x128xf32>
    %117 = arith.mulf %116, %113 : vector<8x128xf32>
    %118 = arith.mulf %117, %113 : vector<8x128xf32>
    %119 = arith.mulf %118, %113 : vector<8x128xf32>
    %120 = arith.addf %113, %119 : vector<8x128xf32>
    %cst_49 = arith.constant 0.797884583 : f32
    %121 = vector.broadcast %cst_49 : f32 to vector<8x128xf32>
    %122 = arith.mulf %121, %120 : vector<8x128xf32>
    %123 = math.tanh %122 : vector<8x128xf32>
    %cst_50 = arith.constant 1.000000e+00 : f32
    %124 = vector.broadcast %cst_50 : f32 to vector<8x128xf32>
    %125 = arith.addf %124, %123 : vector<8x128xf32>
    %126 = arith.mulf %115, %125 : vector<8x128xf32>
    %127 = arith.addf %4, %126 : vector<8x128xf32>
    %128 = vector.broadcast %1 : vector<8x1xf32> to vector<8x128xf32>
    %129 = arith.mulf %127, %128 : vector<8x128xf32>
    %c16_51 = arith.constant 16 : index
    %c0_52 = arith.constant 0 : index
    %130 = vector.load %arg12[%c16_51, %c0_52] : memref<40x128xf32, #tpu.memory_space<vmem>>, vector<8x128xf32>
    tpu.vector_store %arg12[%c16_51, %c0_52], %129 {strides = array<i32>} : memref<40x128xf32, #tpu.memory_space<vmem>>, vector<8x128xf32>,
    %c13 = arith.constant 13 : index
    %c0_53 = arith.constant 0 : index
    %131 = vector.load %arg12[%c13, %c0_53] : memref<40x128xf32, #tpu.memory_space<vmem>>, vector<8x128xf32>
    %c3 = arith.constant 3 : index
    %c0_54 = arith.constant 0 : index
    %132 = vector.load %arg3[%c3, %c0_54] : memref<9x128xf32, #tpu.memory_space<vmem>>, vector<1x128xf32>
    %133 = vector.shape_cast %132 : vector<1x128xf32> to vector<128xf32>
    %134 = vector.shape_cast %133 : vector<128xf32> to vector<1x128xf32>
    %135 = vector.broadcast %134 : vector<1x128xf32> to vector<8x128xf32>
    %136 = arith.mulf %131, %135 : vector<8x128xf32>
    %c16_55 = arith.constant 16 : index
    %c0_56 = arith.constant 0 : index
    %137 = vector.load %arg12[%c16_55, %c0_56] : memref<40x128xf32, #tpu.memory_space<vmem>>, vector<8x128xf32>
    %c4 = arith.constant 4 : index
    %c0_57 = arith.constant 0 : index
    %138 = vector.load %arg3[%c4, %c0_57] : memref<9x128xf32, #tpu.memory_space<vmem>>, vector<1x128xf32>
    %139 = vector.shape_cast %138 : vector<1x128xf32> to vector<128xf32>
    %140 = vector.shape_cast %139 : vector<128xf32> to vector<1x128xf32>
    %141 = vector.broadcast %140 : vector<1x128xf32> to vector<8x128xf32>
    %142 = arith.mulf %137, %141 : vector<8x128xf32>
    %143 = arith.addf %136, %142 : vector<8x128xf32>
    %c19 = arith.constant 19 : index
    %c0_58 = arith.constant 0 : index
    %144 = vector.load %arg12[%c19, %c0_58] : memref<40x128xf32, #tpu.memory_space<vmem>>, vector<8x128xf32>
    %c5 = arith.constant 5 : index
    %c0_59 = arith.constant 0 : index
    %145 = vector.load %arg3[%c5, %c0_59] : memref<9x128xf32, #tpu.memory_space<vmem>>, vector<1x128xf32>
    %146 = vector.shape_cast %145 : vector<1x128xf32> to vector<128xf32>
    %147 = vector.shape_cast %146 : vector<128xf32> to vector<1x128xf32>
    %148 = vector.broadcast %147 : vector<1x128xf32> to vector<8x128xf32>
    %149 = arith.mulf %144, %148 : vector<8x128xf32>
    %150 = arith.addf %143, %149 : vector<8x128xf32>
    %c1_60 = arith.constant 1 : index
    %c0_61 = arith.constant 0 : index
    %151 = vector.load %arg4[%c1_60, %c0_61] : memref<3x128xf32, #tpu.memory_space<vmem>>, vector<1x128xf32>
    %152 = vector.shape_cast %151 : vector<1x128xf32> to vector<128xf32>
    %153 = vector.shape_cast %152 : vector<128xf32> to vector<1x128xf32>
    %154 = vector.broadcast %153 : vector<1x128xf32> to vector<8x128xf32>
    %155 = arith.addf %150, %154 : vector<8x128xf32>
    %cst_62 = arith.constant dense<0.000000e+00> : vector<8xf32>
    %156 = vector.multi_reduction <add>, %155, %cst_62 [1] : vector<8x128xf32> to vector<8xf32>
    %157 = vector.shape_cast %156 : vector<8xf32> to vector<8x1xf32>
    %cst_63 = arith.constant 1.280000e+02 : f32
    %158 = vector.broadcast %cst_63 : f32 to vector<8x1xf32>
    %159 = arith.divf %157, %158 : vector<8x1xf32>
    %160 = arith.mulf %155, %155 : vector<8x128xf32>
    %cst_64 = arith.constant dense<0.000000e+00> : vector<8xf32>
    %161 = vector.multi_reduction <add>, %160, %cst_64 [1] : vector<8x128xf32> to vector<8xf32>
    %162 = vector.shape_cast %161 : vector<8xf32> to vector<8x1xf32>
    %cst_65 = arith.constant 1.280000e+02 : f32
    %163 = vector.broadcast %cst_65 : f32 to vector<8x1xf32>
    %164 = arith.divf %162, %163 : vector<8x1xf32>
    %165 = arith.mulf %159, %159 : vector<8x1xf32>
    %166 = arith.subf %164, %165 : vector<8x1xf32>
    %167 = vector.broadcast %159 : vector<8x1xf32> to vector<8x128xf32>
    %168 = arith.subf %155, %167 : vector<8x128xf32>
    %cst_66 = arith.constant 9.99999974E-6 : f32
    %169 = vector.broadcast %cst_66 : f32 to vector<8x1xf32>
    %170 = arith.addf %166, %169 : vector<8x1xf32>
    %171 = math.rsqrt %170 : vector<8x1xf32>
    %172 = vector.broadcast %171 : vector<8x1xf32> to vector<8x128xf32>
    %173 = arith.mulf %168, %172 : vector<8x128xf32>
    %c1_67 = arith.constant 1 : index
    %c0_68 = arith.constant 0 : index
    %174 = vector.load %arg5[%c1_67, %c0_68] : memref<3x128xf32, #tpu.memory_space<vmem>>, vector<1x128xf32>
    %175 = vector.shape_cast %174 : vector<1x128xf32> to vector<128xf32>
    %176 = vector.shape_cast %175 : vector<128xf32> to vector<1x128xf32>
    %177 = vector.broadcast %176 : vector<1x128xf32> to vector<8x128xf32>
    %178 = arith.mulf %173, %177 : vector<8x128xf32>
    %c1_69 = arith.constant 1 : index
    %c0_70 = arith.constant 0 : index
    %179 = vector.load %arg6[%c1_69, %c0_70] : memref<3x128xf32, #tpu.memory_space<vmem>>, vector<1x128xf32>
    %180 = vector.shape_cast %179 : vector<1x128xf32> to vector<128xf32>
    %181 = vector.shape_cast %180 : vector<128xf32> to vector<1x128xf32>
    %182 = vector.broadcast %181 : vector<1x128xf32> to vector<8x128xf32>
    %183 = arith.addf %178, %182 : vector<8x128xf32>
    %cst_71 = arith.constant 5.000000e-01 : f32
    %184 = vector.broadcast %cst_71 : f32 to vector<8x128xf32>
    %185 = arith.mulf %184, %183 : vector<8x128xf32>
    %cst_72 = arith.constant 4.471500e-02 : f32
    %186 = vector.broadcast %cst_72 : f32 to vector<8x128xf32>
    %187 = arith.mulf %186, %183 : vector<8x128xf32>
    %188 = arith.mulf %187, %183 : vector<8x128xf32>
    %189 = arith.mulf %188, %183 : vector<8x128xf32>
    %190 = arith.addf %183, %189 : vector<8x128xf32>
    %cst_73 = arith.constant 0.797884583 : f32
    %191 = vector.broadcast %cst_73 : f32 to vector<8x128xf32>
    %192 = arith.mulf %191, %190 : vector<8x128xf32>
    %193 = math.tanh %192 : vector<8x128xf32>
    %cst_74 = arith.constant 1.000000e+00 : f32
    %194 = vector.broadcast %cst_74 : f32 to vector<8x128xf32>
    %195 = arith.addf %194, %193 : vector<8x128xf32>
    %196 = arith.mulf %185, %195 : vector<8x128xf32>
    %197 = arith.truncf %196 : vector<8x128xf32> to vector<8x128xbf16>
    %c1_75 = arith.constant 1 : index
    %c0_76 = arith.constant 0 : index
    %c0_77 = arith.constant 0 : index
    %198 = vector.load %arg7[%c1_75, %c0_76, %c0_77] : memref<3x128x128xbf16, #tpu.memory_space<vmem>>, vector<1x128x128xbf16>
    %199 = vector.shape_cast %198 : vector<1x128x128xbf16> to vector<128x128xbf16>
    %cst_78 = arith.constant dense<0.000000e+00> : vector<8x128xf32>
    %200 = tpu.matmul %197, %199, %cst_78 {dimension_numbers = #tpu.dot_dimension_numbers<[1], [0], [0], [1], [0, 0, 1, 1], [], []>} : vector<8x128xbf16>, vector<128x128xbf16>, vector<8x128xf32> -> vector<8x128xf32>
    %c1_79 = arith.constant 1 : index
    %c0_80 = arith.constant 0 : index
    %201 = vector.load %arg8[%c1_79, %c0_80] : memref<3x128xf32, #tpu.memory_space<vmem>>, vector<1x128xf32>
    %202 = vector.shape_cast %201 : vector<1x128xf32> to vector<128xf32>
    %203 = vector.shape_cast %202 : vector<128xf32> to vector<1x128xf32>
    %204 = vector.broadcast %203 : vector<1x128xf32> to vector<8x128xf32>
    %205 = arith.addf %200, %204 : vector<8x128xf32>
    %cst_81 = arith.constant dense<0.000000e+00> : vector<8xf32>
    %206 = vector.multi_reduction <add>, %205, %cst_81 [1] : vector<8x128xf32> to vector<8xf32>
    %207 = vector.shape_cast %206 : vector<8xf32> to vector<8x1xf32>
    %cst_82 = arith.constant 1.280000e+02 : f32
    %208 = vector.broadcast %cst_82 : f32 to vector<8x1xf32>
    %209 = arith.divf %207, %208 : vector<8x1xf32>
    %210 = arith.mulf %205, %205 : vector<8x128xf32>
    %cst_83 = arith.constant dense<0.000000e+00> : vector<8xf32>
    %211 = vector.multi_reduction <add>, %210, %cst_83 [1] : vector<8x128xf32> to vector<8xf32>
    %212 = vector.shape_cast %211 : vector<8xf32> to vector<8x1xf32>
    %cst_84 = arith.constant 1.280000e+02 : f32
    %213 = vector.broadcast %cst_84 : f32 to vector<8x1xf32>
    %214 = arith.divf %212, %213 : vector<8x1xf32>
    %215 = arith.mulf %209, %209 : vector<8x1xf32>
    %216 = arith.subf %214, %215 : vector<8x1xf32>
    %217 = vector.broadcast %209 : vector<8x1xf32> to vector<8x128xf32>
    %218 = arith.subf %205, %217 : vector<8x128xf32>
    %cst_85 = arith.constant 9.99999974E-6 : f32
    %219 = vector.broadcast %cst_85 : f32 to vector<8x1xf32>
    %220 = arith.addf %216, %219 : vector<8x1xf32>
    %221 = math.rsqrt %220 : vector<8x1xf32>
    %222 = vector.broadcast %221 : vector<8x1xf32> to vector<8x128xf32>
    %223 = arith.mulf %218, %222 : vector<8x128xf32>
    %c1_86 = arith.constant 1 : index
    %c0_87 = arith.constant 0 : index
    %224 = vector.load %arg9[%c1_86, %c0_87] : memref<3x128xf32, #tpu.memory_space<vmem>>, vector<1x128xf32>
    %225 = vector.shape_cast %224 : vector<1x128xf32> to vector<128xf32>
    %226 = vector.shape_cast %225 : vector<128xf32> to vector<1x128xf32>
    %227 = vector.broadcast %226 : vector<1x128xf32> to vector<8x128xf32>
    %228 = arith.mulf %223, %227 : vector<8x128xf32>
    %c1_88 = arith.constant 1 : index
    %c0_89 = arith.constant 0 : index
    %229 = vector.load %arg10[%c1_88, %c0_89] : memref<3x128xf32, #tpu.memory_space<vmem>>, vector<1x128xf32>
    %230 = vector.shape_cast %229 : vector<1x128xf32> to vector<128xf32>
    %231 = vector.shape_cast %230 : vector<128xf32> to vector<1x128xf32>
    %232 = vector.broadcast %231 : vector<1x128xf32> to vector<8x128xf32>
    %233 = arith.addf %228, %232 : vector<8x128xf32>
    %cst_90 = arith.constant 5.000000e-01 : f32
    %234 = vector.broadcast %cst_90 : f32 to vector<8x128xf32>
    %235 = arith.mulf %234, %233 : vector<8x128xf32>
    %cst_91 = arith.constant 4.471500e-02 : f32
    %236 = vector.broadcast %cst_91 : f32 to vector<8x128xf32>
    %237 = arith.mulf %236, %233 : vector<8x128xf32>
    %238 = arith.mulf %237, %233 : vector<8x128xf32>
    %239 = arith.mulf %238, %233 : vector<8x128xf32>
    %240 = arith.addf %233, %239 : vector<8x128xf32>
    %cst_92 = arith.constant 0.797884583 : f32
    %241 = vector.broadcast %cst_92 : f32 to vector<8x128xf32>
    %242 = arith.mulf %241, %240 : vector<8x128xf32>
    %243 = math.tanh %242 : vector<8x128xf32>
    %cst_93 = arith.constant 1.000000e+00 : f32
    %244 = vector.broadcast %cst_93 : f32 to vector<8x128xf32>
    %245 = arith.addf %244, %243 : vector<8x128xf32>
    %246 = arith.mulf %235, %245 : vector<8x128xf32>
    %247 = arith.addf %127, %246 : vector<8x128xf32>
    %248 = vector.broadcast %1 : vector<8x1xf32> to vector<8x128xf32>
    %249 = arith.mulf %247, %248 : vector<8x128xf32>
    %c16_94 = arith.constant 16 : index
    %c0_95 = arith.constant 0 : index
    %250 = vector.load %arg12[%c16_94, %c0_95] : memref<40x128xf32, #tpu.memory_space<vmem>>, vector<8x128xf32>
    tpu.vector_store %arg12[%c16_94, %c0_95], %249 {strides = array<i32>} : memref<40x128xf32, #tpu.memory_space<vmem>>, vector<8x128xf32>,
    %c7 = arith.constant 7 : index
    %c0_96 = arith.constant 0 : index
    %251 = vector.load %arg12[%c7, %c0_96] : memref<40x128xf32, #tpu.memory_space<vmem>>, vector<8x128xf32>
    %c6 = arith.constant 6 : index
    %c0_97 = arith.constant 0 : index
    %252 = vector.load %arg3[%c6, %c0_97] : memref<9x128xf32, #tpu.memory_space<vmem>>, vector<1x128xf32>
    %253 = vector.shape_cast %252 : vector<1x128xf32> to vector<128xf32>
    %254 = vector.shape_cast %253 : vector<128xf32> to vector<1x128xf32>
    %255 = vector.broadcast %254 : vector<1x128xf32> to vector<8x128xf32>
    %256 = arith.mulf %251, %255 : vector<8x128xf32>
    %c16_98 = arith.constant 16 : index
    %c0_99 = arith.constant 0 : index
    %257 = vector.load %arg12[%c16_98, %c0_99] : memref<40x128xf32, #tpu.memory_space<vmem>>, vector<8x128xf32>
    %c7_100 = arith.constant 7 : index
    %c0_101 = arith.constant 0 : index
    %258 = vector.load %arg3[%c7_100, %c0_101] : memref<9x128xf32, #tpu.memory_space<vmem>>, vector<1x128xf32>
    %259 = vector.shape_cast %258 : vector<1x128xf32> to vector<128xf32>
    %260 = vector.shape_cast %259 : vector<128xf32> to vector<1x128xf32>
    %261 = vector.broadcast %260 : vector<1x128xf32> to vector<8x128xf32>
    %262 = arith.mulf %257, %261 : vector<8x128xf32>
    %263 = arith.addf %256, %262 : vector<8x128xf32>
    %c25 = arith.constant 25 : index
    %c0_102 = arith.constant 0 : index
    %264 = vector.load %arg12[%c25, %c0_102] : memref<40x128xf32, #tpu.memory_space<vmem>>, vector<8x128xf32>
    %c8 = arith.constant 8 : index
    %c0_103 = arith.constant 0 : index
    %265 = vector.load %arg3[%c8, %c0_103] : memref<9x128xf32, #tpu.memory_space<vmem>>, vector<1x128xf32>
    %266 = vector.shape_cast %265 : vector<1x128xf32> to vector<128xf32>
    %267 = vector.shape_cast %266 : vector<128xf32> to vector<1x128xf32>
    %268 = vector.broadcast %267 : vector<1x128xf32> to vector<8x128xf32>
    %269 = arith.mulf %264, %268 : vector<8x128xf32>
    %270 = arith.addf %263, %269 : vector<8x128xf32>
    %c2_104 = arith.constant 2 : index
    %c0_105 = arith.constant 0 : index
    %271 = vector.load %arg4[%c2_104, %c0_105] : memref<3x128xf32, #tpu.memory_space<vmem>>, vector<1x128xf32>
    %272 = vector.shape_cast %271 : vector<1x128xf32> to vector<128xf32>
    %273 = vector.shape_cast %272 : vector<128xf32> to vector<1x128xf32>
    %274 = vector.broadcast %273 : vector<1x128xf32> to vector<8x128xf32>
    %275 = arith.addf %270, %274 : vector<8x128xf32>
    %cst_106 = arith.constant dense<0.000000e+00> : vector<8xf32>
    %276 = vector.multi_reduction <add>, %275, %cst_106 [1] : vector<8x128xf32> to vector<8xf32>
    %277 = vector.shape_cast %276 : vector<8xf32> to vector<8x1xf32>
    %cst_107 = arith.constant 1.280000e+02 : f32
    %278 = vector.broadcast %cst_107 : f32 to vector<8x1xf32>
    %279 = arith.divf %277, %278 : vector<8x1xf32>
    %280 = arith.mulf %275, %275 : vector<8x128xf32>
    %cst_108 = arith.constant dense<0.000000e+00> : vector<8xf32>
    %281 = vector.multi_reduction <add>, %280, %cst_108 [1] : vector<8x128xf32> to vector<8xf32>
    %282 = vector.shape_cast %281 : vector<8xf32> to vector<8x1xf32>
    %cst_109 = arith.constant 1.280000e+02 : f32
    %283 = vector.broadcast %cst_109 : f32 to vector<8x1xf32>
    %284 = arith.divf %282, %283 : vector<8x1xf32>
    %285 = arith.mulf %279, %279 : vector<8x1xf32>
    %286 = arith.subf %284, %285 : vector<8x1xf32>
    %287 = vector.broadcast %279 : vector<8x1xf32> to vector<8x128xf32>
    %288 = arith.subf %275, %287 : vector<8x128xf32>
    %cst_110 = arith.constant 9.99999974E-6 : f32
    %289 = vector.broadcast %cst_110 : f32 to vector<8x1xf32>
    %290 = arith.addf %286, %289 : vector<8x1xf32>
    %291 = math.rsqrt %290 : vector<8x1xf32>
    %292 = vector.broadcast %291 : vector<8x1xf32> to vector<8x128xf32>
    %293 = arith.mulf %288, %292 : vector<8x128xf32>
    %c2_111 = arith.constant 2 : index
    %c0_112 = arith.constant 0 : index
    %294 = vector.load %arg5[%c2_111, %c0_112] : memref<3x128xf32, #tpu.memory_space<vmem>>, vector<1x128xf32>
    %295 = vector.shape_cast %294 : vector<1x128xf32> to vector<128xf32>
    %296 = vector.shape_cast %295 : vector<128xf32> to vector<1x128xf32>
    %297 = vector.broadcast %296 : vector<1x128xf32> to vector<8x128xf32>
    %298 = arith.mulf %293, %297 : vector<8x128xf32>
    %c2_113 = arith.constant 2 : index
    %c0_114 = arith.constant 0 : index
    %299 = vector.load %arg6[%c2_113, %c0_114] : memref<3x128xf32, #tpu.memory_space<vmem>>, vector<1x128xf32>
    %300 = vector.shape_cast %299 : vector<1x128xf32> to vector<128xf32>
    %301 = vector.shape_cast %300 : vector<128xf32> to vector<1x128xf32>
    %302 = vector.broadcast %301 : vector<1x128xf32> to vector<8x128xf32>
    %303 = arith.addf %298, %302 : vector<8x128xf32>
    %cst_115 = arith.constant 5.000000e-01 : f32
    %304 = vector.broadcast %cst_115 : f32 to vector<8x128xf32>
    %305 = arith.mulf %304, %303 : vector<8x128xf32>
    %cst_116 = arith.constant 4.471500e-02 : f32
    %306 = vector.broadcast %cst_116 : f32 to vector<8x128xf32>
    %307 = arith.mulf %306, %303 : vector<8x128xf32>
    %308 = arith.mulf %307, %303 : vector<8x128xf32>
    %309 = arith.mulf %308, %303 : vector<8x128xf32>
    %310 = arith.addf %303, %309 : vector<8x128xf32>
    %cst_117 = arith.constant 0.797884583 : f32
    %311 = vector.broadcast %cst_117 : f32 to vector<8x128xf32>
    %312 = arith.mulf %311, %310 : vector<8x128xf32>
    %313 = math.tanh %312 : vector<8x128xf32>
    %cst_118 = arith.constant 1.000000e+00 : f32
    %314 = vector.broadcast %cst_118 : f32 to vector<8x128xf32>
    %315 = arith.addf %314, %313 : vector<8x128xf32>
    %316 = arith.mulf %305, %315 : vector<8x128xf32>
    %317 = arith.truncf %316 : vector<8x128xf32> to vector<8x128xbf16>
    %c2_119 = arith.constant 2 : index
    %c0_120 = arith.constant 0 : index
    %c0_121 = arith.constant 0 : index
    %318 = vector.load %arg7[%c2_119, %c0_120, %c0_121] : memref<3x128x128xbf16, #tpu.memory_space<vmem>>, vector<1x128x128xbf16>
    %319 = vector.shape_cast %318 : vector<1x128x128xbf16> to vector<128x128xbf16>
    %cst_122 = arith.constant dense<0.000000e+00> : vector<8x128xf32>
    %320 = tpu.matmul %317, %319, %cst_122 {dimension_numbers = #tpu.dot_dimension_numbers<[1], [0], [0], [1], [0, 0, 1, 1], [], []>} : vector<8x128xbf16>, vector<128x128xbf16>, vector<8x128xf32> -> vector<8x128xf32>
    %c2_123 = arith.constant 2 : index
    %c0_124 = arith.constant 0 : index
    %321 = vector.load %arg8[%c2_123, %c0_124] : memref<3x128xf32, #tpu.memory_space<vmem>>, vector<1x128xf32>
    %322 = vector.shape_cast %321 : vector<1x128xf32> to vector<128xf32>
    %323 = vector.shape_cast %322 : vector<128xf32> to vector<1x128xf32>
    %324 = vector.broadcast %323 : vector<1x128xf32> to vector<8x128xf32>
    %325 = arith.addf %320, %324 : vector<8x128xf32>
    %cst_125 = arith.constant dense<0.000000e+00> : vector<8xf32>
    %326 = vector.multi_reduction <add>, %325, %cst_125 [1] : vector<8x128xf32> to vector<8xf32>
    %327 = vector.shape_cast %326 : vector<8xf32> to vector<8x1xf32>
    %cst_126 = arith.constant 1.280000e+02 : f32
    %328 = vector.broadcast %cst_126 : f32 to vector<8x1xf32>
    %329 = arith.divf %327, %328 : vector<8x1xf32>
    %330 = arith.mulf %325, %325 : vector<8x128xf32>
    %cst_127 = arith.constant dense<0.000000e+00> : vector<8xf32>
    %331 = vector.multi_reduction <add>, %330, %cst_127 [1] : vector<8x128xf32> to vector<8xf32>
    %332 = vector.shape_cast %331 : vector<8xf32> to vector<8x1xf32>
    %cst_128 = arith.constant 1.280000e+02 : f32
    %333 = vector.broadcast %cst_128 : f32 to vector<8x1xf32>
    %334 = arith.divf %332, %333 : vector<8x1xf32>
    %335 = arith.mulf %329, %329 : vector<8x1xf32>
    %336 = arith.subf %334, %335 : vector<8x1xf32>
    %337 = vector.broadcast %329 : vector<8x1xf32> to vector<8x128xf32>
    %338 = arith.subf %325, %337 : vector<8x128xf32>
    %cst_129 = arith.constant 9.99999974E-6 : f32
    %339 = vector.broadcast %cst_129 : f32 to vector<8x1xf32>
    %340 = arith.addf %336, %339 : vector<8x1xf32>
    %341 = math.rsqrt %340 : vector<8x1xf32>
    %342 = vector.broadcast %341 : vector<8x1xf32> to vector<8x128xf32>
    %343 = arith.mulf %338, %342 : vector<8x128xf32>
    %c2_130 = arith.constant 2 : index
    %c0_131 = arith.constant 0 : index
    %344 = vector.load %arg9[%c2_130, %c0_131] : memref<3x128xf32, #tpu.memory_space<vmem>>, vector<1x128xf32>
    %345 = vector.shape_cast %344 : vector<1x128xf32> to vector<128xf32>
    %346 = vector.shape_cast %345 : vector<128xf32> to vector<1x128xf32>
    %347 = vector.broadcast %346 : vector<1x128xf32> to vector<8x128xf32>
    %348 = arith.mulf %343, %347 : vector<8x128xf32>
    %c2_132 = arith.constant 2 : index
    %c0_133 = arith.constant 0 : index
    %349 = vector.load %arg10[%c2_132, %c0_133] : memref<3x128xf32, #tpu.memory_space<vmem>>, vector<1x128xf32>
    %350 = vector.shape_cast %349 : vector<1x128xf32> to vector<128xf32>
    %351 = vector.shape_cast %350 : vector<128xf32> to vector<1x128xf32>
    %352 = vector.broadcast %351 : vector<1x128xf32> to vector<8x128xf32>
    %353 = arith.addf %348, %352 : vector<8x128xf32>
    %cst_134 = arith.constant 5.000000e-01 : f32
    %354 = vector.broadcast %cst_134 : f32 to vector<8x128xf32>
    %355 = arith.mulf %354, %353 : vector<8x128xf32>
    %cst_135 = arith.constant 4.471500e-02 : f32
    %356 = vector.broadcast %cst_135 : f32 to vector<8x128xf32>
    %357 = arith.mulf %356, %353 : vector<8x128xf32>
    %358 = arith.mulf %357, %353 : vector<8x128xf32>
    %359 = arith.mulf %358, %353 : vector<8x128xf32>
    %360 = arith.addf %353, %359 : vector<8x128xf32>
    %cst_136 = arith.constant 0.797884583 : f32
    %361 = vector.broadcast %cst_136 : f32 to vector<8x128xf32>
    %362 = arith.mulf %361, %360 : vector<8x128xf32>
    %363 = math.tanh %362 : vector<8x128xf32>
    %cst_137 = arith.constant 1.000000e+00 : f32
    %364 = vector.broadcast %cst_137 : f32 to vector<8x128xf32>
    %365 = arith.addf %364, %363 : vector<8x128xf32>
    %366 = arith.mulf %355, %365 : vector<8x128xf32>
    %367 = arith.addf %247, %366 : vector<8x128xf32>
    %368 = vector.broadcast %1 : vector<8x1xf32> to vector<8x128xf32>
    %369 = arith.mulf %367, %368 : vector<8x128xf32>
    %370 = arith.truncf %369 : vector<8x128xf32> to vector<8x128xbf16>
    %c0_138 = arith.constant 0 : index
    %c0_139 = arith.constant 0 : index
    %c0_140 = arith.constant 0 : index
    %371 = vector.load %arg11[%c0_138, %c0_139, %c0_140] : memref<1x8x128xbf16, #tpu.memory_space<vmem>>, vector<1x8x128xbf16>
    %372 = vector.shape_cast %371 : vector<1x8x128xbf16> to vector<8x128xbf16>
    %373 = vector.shape_cast %370 : vector<8x128xbf16> to vector<1x8x128xbf16>
    tpu.vector_store %arg11[%c0_138, %c0_139, %c0_140], %373 {strides = array<i32>} : memref<1x8x128xbf16, #tpu.memory_space<vmem>>, vector<1x8x128xbf16>,
    return
  }
  func.func @transform_0(%arg0: i32) -> (i32, i32, i32) {
    %c0_i32 = arith.constant 0 : i32
    %c0_i32_0 = arith.constant 0 : i32
    %c0_i32_1 = arith.constant 0 : i32
    return %arg0, %c0_i32, %c0_i32_0 : i32, i32, i32
  }
  func.func @transform_1(%arg0: i32) -> (i32, i32, i32) {
    %c0_i32 = arith.constant 0 : i32
    %c0_i32_0 = arith.constant 0 : i32
    %c0_i32_1 = arith.constant 0 : i32
    return %arg0, %c0_i32, %c0_i32_0 : i32, i32, i32
  }
  func.func @transform_2(%arg0: i32) -> (i32, i32) {
    %c0_i32 = arith.constant 0 : i32
    %c0_i32_0 = arith.constant 0 : i32
    %c0_i32_1 = arith.constant 0 : i32
    return %c0_i32, %c0_i32_0 : i32, i32
  }
  func.func @transform_3(%arg0: i32) -> (i32, i32) {
    %c0_i32 = arith.constant 0 : i32
    %c0_i32_0 = arith.constant 0 : i32
    %c0_i32_1 = arith.constant 0 : i32
    return %c0_i32, %c0_i32_0 : i32, i32
  }
  func.func @transform_4(%arg0: i32) -> (i32, i32) {
    %c0_i32 = arith.constant 0 : i32
    %c0_i32_0 = arith.constant 0 : i32
    %c0_i32_1 = arith.constant 0 : i32
    return %c0_i32, %c0_i32_0 : i32, i32
  }
  func.func @transform_5(%arg0: i32) -> (i32, i32) {
    %c0_i32 = arith.constant 0 : i32
    %c0_i32_0 = arith.constant 0 : i32
    %c0_i32_1 = arith.constant 0 : i32
    return %c0_i32, %c0_i32_0 : i32, i32
  }
  func.func @transform_6(%arg0: i32) -> (i32, i32, i32) {
    %c0_i32 = arith.constant 0 : i32
    %c0_i32_0 = arith.constant 0 : i32
    %c0_i32_1 = arith.constant 0 : i32
    %c0_i32_2 = arith.constant 0 : i32
    return %c0_i32, %c0_i32_0, %c0_i32_1 : i32, i32, i32
  }
  func.func @transform_7(%arg0: i32) -> (i32, i32) {
    %c0_i32 = arith.constant 0 : i32
    %c0_i32_0 = arith.constant 0 : i32
    %c0_i32_1 = arith.constant 0 : i32
    return %c0_i32, %c0_i32_0 : i32, i32
  }
  func.func @transform_8(%arg0: i32) -> (i32, i32) {
    %c0_i32 = arith.constant 0 : i32
    %c0_i32_0 = arith.constant 0 : i32
    %c0_i32_1 = arith.constant 0 : i32
    return %c0_i32, %c0_i32_0 : i32, i32
  }
  func.func @transform_9(%arg0: i32) -> (i32, i32) {
    %c0_i32 = arith.constant 0 : i32
    %c0_i32_0 = arith.constant 0 : i32
    %c0_i32_1 = arith.constant 0 : i32
    return %c0_i32, %c0_i32_0 : i32, i32
  }
  func.func @transform_10(%arg0: i32) -> (i32, i32, i32) {
    %c0_i32 = arith.constant 0 : i32
    %c0_i32_0 = arith.constant 0 : i32
    %c0_i32_1 = arith.constant 0 : i32
    return %arg0, %c0_i32, %c0_i32_0 : i32, i32, i32
  }
}

module attributes {stable_mosaic.version = 11 : i64} {
  func.func @_dds_block_kernel(%arg0: i32, %arg1: memref<1x8x128xf32, #tpu.memory_space<vmem>>, %arg2: memref<1x8x1xf32, #tpu.memory_space<vmem>>, %arg3: memref<9x128xf32, #tpu.memory_space<vmem>>, %arg4: memref<3x128xf32, #tpu.memory_space<vmem>>, %arg5: memref<3x128xf32, #tpu.memory_space<vmem>>, %arg6: memref<3x128xf32, #tpu.memory_space<vmem>>, %arg7: memref<3x128x128xbf16, #tpu.memory_space<vmem>>, %arg8: memref<3x128xf32, #tpu.memory_space<vmem>>, %arg9: memref<3x128xf32, #tpu.memory_space<vmem>>, %arg10: memref<3x128xf32, #tpu.memory_space<vmem>>, %arg11: memref<1x8x128xbf16, #tpu.memory_space<vmem>>, %arg12: memref<40x128xf32, #tpu.memory_space<vmem>>) attributes {dimension_semantics = [#tpu.dimension_semantics<parallel>], iteration_bounds = array<i64: 2>, scalar_prefetch = 0 : i64, scratch_operands = 1 : i64, tpu.core_type = #tpu.core_type<tc>, window_params = [{transform_indices = @transform_0, window_bounds = array<i64: 1, 8, 128>}, {transform_indices = @transform_1, window_bounds = array<i64: 1, 8, 1>}, {pipeline_mode = #tpu.pipeline_mode<synchronous>, transform_indices = @transform_2, window_bounds = array<i64: 9, 128>}, {pipeline_mode = #tpu.pipeline_mode<synchronous>, transform_indices = @transform_3, window_bounds = array<i64: 3, 128>}, {pipeline_mode = #tpu.pipeline_mode<synchronous>, transform_indices = @transform_4, window_bounds = array<i64: 3, 128>}, {pipeline_mode = #tpu.pipeline_mode<synchronous>, transform_indices = @transform_5, window_bounds = array<i64: 3, 128>}, {pipeline_mode = #tpu.pipeline_mode<synchronous>, transform_indices = @transform_6, window_bounds = array<i64: 3, 128, 128>}, {pipeline_mode = #tpu.pipeline_mode<synchronous>, transform_indices = @transform_7, window_bounds = array<i64: 3, 128>}, {pipeline_mode = #tpu.pipeline_mode<synchronous>, transform_indices = @transform_8, window_bounds = array<i64: 3, 128>}, {pipeline_mode = #tpu.pipeline_mode<synchronous>, transform_indices = @transform_9, window_bounds = array<i64: 3, 128>}, {transform_indices = @transform_10, window_bounds = array<i64: 1, 8, 128>}]} {
    %c0 = arith.constant 0 : index
    %c0_0 = arith.constant 0 : index
    %c0_1 = arith.constant 0 : index
    %0 = vector.load %arg2[%c0, %c0_0, %c0_1] : memref<1x8x1xf32, #tpu.memory_space<vmem>>, vector<1x8x1xf32>
    %1 = vector.shape_cast %0 : vector<1x8x1xf32> to vector<8x1xf32>
    %c0_2 = arith.constant 0 : index
    %c0_3 = arith.constant 0 : index
    %c0_4 = arith.constant 0 : index
    %2 = vector.load %arg1[%c0_2, %c0_3, %c0_4] : memref<1x8x128xf32, #tpu.memory_space<vmem>>, vector<1x8x128xf32>
    %3 = vector.shape_cast %2 : vector<1x8x128xf32> to vector<8x128xf32>
    %cst = arith.constant 0.000000e+00 : f32
    %4 = vector.broadcast %cst : f32 to vector<16x128xf32>
    %c0_5 = arith.constant 0 : index
    %c0_6 = arith.constant 0 : index
    %5 = vector.load %arg12[%c0_5, %c0_6] : memref<40x128xf32, #tpu.memory_space<vmem>>, vector<16x128xf32>
    tpu.vector_store %arg12[%c0_5, %c0_6], %4 {strides = array<i32>} : memref<40x128xf32, #tpu.memory_space<vmem>>, vector<16x128xf32>,
    %c24 = arith.constant 24 : index
    %c0_7 = arith.constant 0 : index
    %6 = vector.load %arg12[%c24, %c0_7] : memref<40x128xf32, #tpu.memory_space<vmem>>, vector<16x128xf32>
    tpu.vector_store %arg12[%c24, %c0_7], %4 {strides = array<i32>} : memref<40x128xf32, #tpu.memory_space<vmem>>, vector<16x128xf32>,
    %7 = vector.broadcast %1 : vector<8x1xf32> to vector<8x128xf32>
    %8 = arith.mulf %3, %7 : vector<8x128xf32>
    %c16 = arith.constant 16 : index
    %c0_8 = arith.constant 0 : index
    %9 = vector.load %arg12[%c16, %c0_8] : memref<40x128xf32, #tpu.memory_space<vmem>>, vector<8x128xf32>
    tpu.vector_store %arg12[%c16, %c0_8], %8 {strides = array<i32>} : memref<40x128xf32, #tpu.memory_space<vmem>>, vector<8x128xf32>,
    %c15 = arith.constant 15 : index
    %c0_9 = arith.constant 0 : index
    %10 = vector.load %arg12[%c15, %c0_9] : memref<40x128xf32, #tpu.memory_space<vmem>>, vector<8x128xf32>
    %c0_10 = arith.constant 0 : index
    %c0_11 = arith.constant 0 : index
    %11 = vector.load %arg3[%c0_10, %c0_11] : memref<9x128xf32, #tpu.memory_space<vmem>>, vector<1x128xf32>
    %12 = vector.shape_cast %11 : vector<1x128xf32> to vector<128xf32>
    %13 = vector.shape_cast %12 : vector<128xf32> to vector<1x128xf32>
    %14 = vector.broadcast %13 : vector<1x128xf32> to vector<8x128xf32>
    %15 = arith.mulf %10, %14 : vector<8x128xf32>
    %c16_12 = arith.constant 16 : index
    %c0_13 = arith.constant 0 : index
    %16 = vector.load %arg12[%c16_12, %c0_13] : memref<40x128xf32, #tpu.memory_space<vmem>>, vector<8x128xf32>
    %c1 = arith.constant 1 : index
    %c0_14 = arith.constant 0 : index
    %17 = vector.load %arg3[%c1, %c0_14] : memref<9x128xf32, #tpu.memory_space<vmem>>, vector<1x128xf32>
    %18 = vector.shape_cast %17 : vector<1x128xf32> to vector<128xf32>
    %19 = vector.shape_cast %18 : vector<128xf32> to vector<1x128xf32>
    %20 = vector.broadcast %19 : vector<1x128xf32> to vector<8x128xf32>
    %21 = arith.mulf %16, %20 : vector<8x128xf32>
    %22 = arith.addf %15, %21 : vector<8x128xf32>
    %c17 = arith.constant 17 : index
    %c0_15 = arith.constant 0 : index
    %23 = vector.load %arg12[%c17, %c0_15] : memref<40x128xf32, #tpu.memory_space<vmem>>, vector<8x128xf32>
    %c2 = arith.constant 2 : index
    %c0_16 = arith.constant 0 : index
    %24 = vector.load %arg3[%c2, %c0_16] : memref<9x128xf32, #tpu.memory_space<vmem>>, vector<1x128xf32>
    %25 = vector.shape_cast %24 : vector<1x128xf32> to vector<128xf32>
    %26 = vector.shape_cast %25 : vector<128xf32> to vector<1x128xf32>
    %27 = vector.broadcast %26 : vector<1x128xf32> to vector<8x128xf32>
    %28 = arith.mulf %23, %27 : vector<8x128xf32>
    %29 = arith.addf %22, %28 : vector<8x128xf32>
    %c0_17 = arith.constant 0 : index
    %c0_18 = arith.constant 0 : index
    %30 = vector.load %arg4[%c0_17, %c0_18] : memref<3x128xf32, #tpu.memory_space<vmem>>, vector<1x128xf32>
    %31 = vector.shape_cast %30 : vector<1x128xf32> to vector<128xf32>
    %32 = vector.shape_cast %31 : vector<128xf32> to vector<1x128xf32>
    %33 = vector.broadcast %32 : vector<1x128xf32> to vector<8x128xf32>
    %34 = arith.addf %29, %33 : vector<8x128xf32>
    %cst_19 = arith.constant dense<0.000000e+00> : vector<8xf32>
    %35 = vector.multi_reduction <add>, %34, %cst_19 [1] : vector<8x128xf32> to vector<8xf32>
    %36 = vector.shape_cast %35 : vector<8xf32> to vector<8x1xf32>
    %cst_20 = arith.constant 1.280000e+02 : f32
    %37 = vector.broadcast %cst_20 : f32 to vector<8x1xf32>
    %38 = arith.divf %36, %37 : vector<8x1xf32>
    %39 = arith.mulf %34, %34 : vector<8x128xf32>
    %cst_21 = arith.constant dense<0.000000e+00> : vector<8xf32>
    %40 = vector.multi_reduction <add>, %39, %cst_21 [1] : vector<8x128xf32> to vector<8xf32>
    %41 = vector.shape_cast %40 : vector<8xf32> to vector<8x1xf32>
    %cst_22 = arith.constant 1.280000e+02 : f32
    %42 = vector.broadcast %cst_22 : f32 to vector<8x1xf32>
    %43 = arith.divf %41, %42 : vector<8x1xf32>
    %44 = arith.mulf %38, %38 : vector<8x1xf32>
    %45 = arith.subf %43, %44 : vector<8x1xf32>
    %46 = vector.broadcast %38 : vector<8x1xf32> to vector<8x128xf32>
    %47 = arith.subf %34, %46 : vector<8x128xf32>
    %cst_23 = arith.constant 9.99999974E-6 : f32
    %48 = vector.broadcast %cst_23 : f32 to vector<8x1xf32>
    %49 = arith.addf %45, %48 : vector<8x1xf32>
    %50 = math.rsqrt %49 : vector<8x1xf32>
    %51 = vector.broadcast %50 : vector<8x1xf32> to vector<8x128xf32>
    %52 = arith.mulf %47, %51 : vector<8x128xf32>
    %c0_24 = arith.constant 0 : index
    %c0_25 = arith.constant 0 : index
    %53 = vector.load %arg5[%c0_24, %c0_25] : memref<3x128xf32, #tpu.memory_space<vmem>>, vector<1x128xf32>
    %54 = vector.shape_cast %53 : vector<1x128xf32> to vector<128xf32>
    %55 = vector.shape_cast %54 : vector<128xf32> to vector<1x128xf32>
    %56 = vector.broadcast %55 : vector<1x128xf32> to vector<8x128xf32>
    %57 = arith.mulf %52, %56 : vector<8x128xf32>
    %c0_26 = arith.constant 0 : index
    %c0_27 = arith.constant 0 : index
    %58 = vector.load %arg6[%c0_26, %c0_27] : memref<3x128xf32, #tpu.memory_space<vmem>>, vector<1x128xf32>
    %59 = vector.shape_cast %58 : vector<1x128xf32> to vector<128xf32>
    %60 = vector.shape_cast %59 : vector<128xf32> to vector<1x128xf32>
    %61 = vector.broadcast %60 : vector<1x128xf32> to vector<8x128xf32>
    %62 = arith.addf %57, %61 : vector<8x128xf32>
    %cst_28 = arith.constant 5.000000e-01 : f32
    %63 = vector.broadcast %cst_28 : f32 to vector<8x128xf32>
    %64 = arith.mulf %63, %62 : vector<8x128xf32>
    %cst_29 = arith.constant 4.471500e-02 : f32
    %65 = vector.broadcast %cst_29 : f32 to vector<8x128xf32>
    %66 = arith.mulf %65, %62 : vector<8x128xf32>
    %67 = arith.mulf %66, %62 : vector<8x128xf32>
    %68 = arith.mulf %67, %62 : vector<8x128xf32>
    %69 = arith.addf %62, %68 : vector<8x128xf32>
    %cst_30 = arith.constant 0.797884583 : f32
    %70 = vector.broadcast %cst_30 : f32 to vector<8x128xf32>
    %71 = arith.mulf %70, %69 : vector<8x128xf32>
    %72 = math.tanh %71 : vector<8x128xf32>
    %cst_31 = arith.constant 1.000000e+00 : f32
    %73 = vector.broadcast %cst_31 : f32 to vector<8x128xf32>
    %74 = arith.addf %73, %72 : vector<8x128xf32>
    %75 = arith.mulf %64, %74 : vector<8x128xf32>
    %76 = arith.truncf %75 : vector<8x128xf32> to vector<8x128xbf16>
    %c0_32 = arith.constant 0 : index
    %c0_33 = arith.constant 0 : index
    %c0_34 = arith.constant 0 : index
    %77 = vector.load %arg7[%c0_32, %c0_33, %c0_34] : memref<3x128x128xbf16, #tpu.memory_space<vmem>>, vector<1x128x128xbf16>
    %78 = vector.shape_cast %77 : vector<1x128x128xbf16> to vector<128x128xbf16>
    %cst_35 = arith.constant dense<0.000000e+00> : vector<8x128xf32>
    %79 = tpu.matmul %76, %78, %cst_35 {dimension_numbers = #tpu.dot_dimension_numbers<[1], [0], [0], [1], [0, 0, 1, 1], [], []>} : vector<8x128xbf16>, vector<128x128xbf16>, vector<8x128xf32> -> vector<8x128xf32>
    %c0_36 = arith.constant 0 : index
    %c0_37 = arith.constant 0 : index
    %80 = vector.load %arg8[%c0_36, %c0_37] : memref<3x128xf32, #tpu.memory_space<vmem>>, vector<1x128xf32>
    %81 = vector.shape_cast %80 : vector<1x128xf32> to vector<128xf32>
    %82 = vector.shape_cast %81 : vector<128xf32> to vector<1x128xf32>
    %83 = vector.broadcast %82 : vector<1x128xf32> to vector<8x128xf32>
    %84 = arith.addf %79, %83 : vector<8x128xf32>
    %cst_38 = arith.constant dense<0.000000e+00> : vector<8xf32>
    %85 = vector.multi_reduction <add>, %84, %cst_38 [1] : vector<8x128xf32> to vector<8xf32>
    %86 = vector.shape_cast %85 : vector<8xf32> to vector<8x1xf32>
    %cst_39 = arith.constant 1.280000e+02 : f32
    %87 = vector.broadcast %cst_39 : f32 to vector<8x1xf32>
    %88 = arith.divf %86, %87 : vector<8x1xf32>
    %89 = arith.mulf %84, %84 : vector<8x128xf32>
    %cst_40 = arith.constant dense<0.000000e+00> : vector<8xf32>
    %90 = vector.multi_reduction <add>, %89, %cst_40 [1] : vector<8x128xf32> to vector<8xf32>
    %91 = vector.shape_cast %90 : vector<8xf32> to vector<8x1xf32>
    %cst_41 = arith.constant 1.280000e+02 : f32
    %92 = vector.broadcast %cst_41 : f32 to vector<8x1xf32>
    %93 = arith.divf %91, %92 : vector<8x1xf32>
    %94 = arith.mulf %88, %88 : vector<8x1xf32>
    %95 = arith.subf %93, %94 : vector<8x1xf32>
    %96 = vector.broadcast %88 : vector<8x1xf32> to vector<8x128xf32>
    %97 = arith.subf %84, %96 : vector<8x128xf32>
    %cst_42 = arith.constant 9.99999974E-6 : f32
    %98 = vector.broadcast %cst_42 : f32 to vector<8x1xf32>
    %99 = arith.addf %95, %98 : vector<8x1xf32>
    %100 = math.rsqrt %99 : vector<8x1xf32>
    %101 = vector.broadcast %100 : vector<8x1xf32> to vector<8x128xf32>
    %102 = arith.mulf %97, %101 : vector<8x128xf32>
    %c0_43 = arith.constant 0 : index
    %c0_44 = arith.constant 0 : index
    %103 = vector.load %arg9[%c0_43, %c0_44] : memref<3x128xf32, #tpu.memory_space<vmem>>, vector<1x128xf32>
    %104 = vector.shape_cast %103 : vector<1x128xf32> to vector<128xf32>
    %105 = vector.shape_cast %104 : vector<128xf32> to vector<1x128xf32>
    %106 = vector.broadcast %105 : vector<1x128xf32> to vector<8x128xf32>
    %107 = arith.mulf %102, %106 : vector<8x128xf32>
    %c0_45 = arith.constant 0 : index
    %c0_46 = arith.constant 0 : index
    %108 = vector.load %arg10[%c0_45, %c0_46] : memref<3x128xf32, #tpu.memory_space<vmem>>, vector<1x128xf32>
    %109 = vector.shape_cast %108 : vector<1x128xf32> to vector<128xf32>
    %110 = vector.shape_cast %109 : vector<128xf32> to vector<1x128xf32>
    %111 = vector.broadcast %110 : vector<1x128xf32> to vector<8x128xf32>
    %112 = arith.addf %107, %111 : vector<8x128xf32>
    %cst_47 = arith.constant 5.000000e-01 : f32
    %113 = vector.broadcast %cst_47 : f32 to vector<8x128xf32>
    %114 = arith.mulf %113, %112 : vector<8x128xf32>
    %cst_48 = arith.constant 4.471500e-02 : f32
    %115 = vector.broadcast %cst_48 : f32 to vector<8x128xf32>
    %116 = arith.mulf %115, %112 : vector<8x128xf32>
    %117 = arith.mulf %116, %112 : vector<8x128xf32>
    %118 = arith.mulf %117, %112 : vector<8x128xf32>
    %119 = arith.addf %112, %118 : vector<8x128xf32>
    %cst_49 = arith.constant 0.797884583 : f32
    %120 = vector.broadcast %cst_49 : f32 to vector<8x128xf32>
    %121 = arith.mulf %120, %119 : vector<8x128xf32>
    %122 = math.tanh %121 : vector<8x128xf32>
    %cst_50 = arith.constant 1.000000e+00 : f32
    %123 = vector.broadcast %cst_50 : f32 to vector<8x128xf32>
    %124 = arith.addf %123, %122 : vector<8x128xf32>
    %125 = arith.mulf %114, %124 : vector<8x128xf32>
    %126 = arith.addf %3, %125 : vector<8x128xf32>
    %127 = vector.broadcast %1 : vector<8x1xf32> to vector<8x128xf32>
    %128 = arith.mulf %126, %127 : vector<8x128xf32>
    %c16_51 = arith.constant 16 : index
    %c0_52 = arith.constant 0 : index
    %129 = vector.load %arg12[%c16_51, %c0_52] : memref<40x128xf32, #tpu.memory_space<vmem>>, vector<8x128xf32>
    tpu.vector_store %arg12[%c16_51, %c0_52], %128 {strides = array<i32>} : memref<40x128xf32, #tpu.memory_space<vmem>>, vector<8x128xf32>,
    %c13 = arith.constant 13 : index
    %c0_53 = arith.constant 0 : index
    %130 = vector.load %arg12[%c13, %c0_53] : memref<40x128xf32, #tpu.memory_space<vmem>>, vector<8x128xf32>
    %c3 = arith.constant 3 : index
    %c0_54 = arith.constant 0 : index
    %131 = vector.load %arg3[%c3, %c0_54] : memref<9x128xf32, #tpu.memory_space<vmem>>, vector<1x128xf32>
    %132 = vector.shape_cast %131 : vector<1x128xf32> to vector<128xf32>
    %133 = vector.shape_cast %132 : vector<128xf32> to vector<1x128xf32>
    %134 = vector.broadcast %133 : vector<1x128xf32> to vector<8x128xf32>
    %135 = arith.mulf %130, %134 : vector<8x128xf32>
    %c16_55 = arith.constant 16 : index
    %c0_56 = arith.constant 0 : index
    %136 = vector.load %arg12[%c16_55, %c0_56] : memref<40x128xf32, #tpu.memory_space<vmem>>, vector<8x128xf32>
    %c4 = arith.constant 4 : index
    %c0_57 = arith.constant 0 : index
    %137 = vector.load %arg3[%c4, %c0_57] : memref<9x128xf32, #tpu.memory_space<vmem>>, vector<1x128xf32>
    %138 = vector.shape_cast %137 : vector<1x128xf32> to vector<128xf32>
    %139 = vector.shape_cast %138 : vector<128xf32> to vector<1x128xf32>
    %140 = vector.broadcast %139 : vector<1x128xf32> to vector<8x128xf32>
    %141 = arith.mulf %136, %140 : vector<8x128xf32>
    %142 = arith.addf %135, %141 : vector<8x128xf32>
    %c19 = arith.constant 19 : index
    %c0_58 = arith.constant 0 : index
    %143 = vector.load %arg12[%c19, %c0_58] : memref<40x128xf32, #tpu.memory_space<vmem>>, vector<8x128xf32>
    %c5 = arith.constant 5 : index
    %c0_59 = arith.constant 0 : index
    %144 = vector.load %arg3[%c5, %c0_59] : memref<9x128xf32, #tpu.memory_space<vmem>>, vector<1x128xf32>
    %145 = vector.shape_cast %144 : vector<1x128xf32> to vector<128xf32>
    %146 = vector.shape_cast %145 : vector<128xf32> to vector<1x128xf32>
    %147 = vector.broadcast %146 : vector<1x128xf32> to vector<8x128xf32>
    %148 = arith.mulf %143, %147 : vector<8x128xf32>
    %149 = arith.addf %142, %148 : vector<8x128xf32>
    %c1_60 = arith.constant 1 : index
    %c0_61 = arith.constant 0 : index
    %150 = vector.load %arg4[%c1_60, %c0_61] : memref<3x128xf32, #tpu.memory_space<vmem>>, vector<1x128xf32>
    %151 = vector.shape_cast %150 : vector<1x128xf32> to vector<128xf32>
    %152 = vector.shape_cast %151 : vector<128xf32> to vector<1x128xf32>
    %153 = vector.broadcast %152 : vector<1x128xf32> to vector<8x128xf32>
    %154 = arith.addf %149, %153 : vector<8x128xf32>
    %cst_62 = arith.constant dense<0.000000e+00> : vector<8xf32>
    %155 = vector.multi_reduction <add>, %154, %cst_62 [1] : vector<8x128xf32> to vector<8xf32>
    %156 = vector.shape_cast %155 : vector<8xf32> to vector<8x1xf32>
    %cst_63 = arith.constant 1.280000e+02 : f32
    %157 = vector.broadcast %cst_63 : f32 to vector<8x1xf32>
    %158 = arith.divf %156, %157 : vector<8x1xf32>
    %159 = arith.mulf %154, %154 : vector<8x128xf32>
    %cst_64 = arith.constant dense<0.000000e+00> : vector<8xf32>
    %160 = vector.multi_reduction <add>, %159, %cst_64 [1] : vector<8x128xf32> to vector<8xf32>
    %161 = vector.shape_cast %160 : vector<8xf32> to vector<8x1xf32>
    %cst_65 = arith.constant 1.280000e+02 : f32
    %162 = vector.broadcast %cst_65 : f32 to vector<8x1xf32>
    %163 = arith.divf %161, %162 : vector<8x1xf32>
    %164 = arith.mulf %158, %158 : vector<8x1xf32>
    %165 = arith.subf %163, %164 : vector<8x1xf32>
    %166 = vector.broadcast %158 : vector<8x1xf32> to vector<8x128xf32>
    %167 = arith.subf %154, %166 : vector<8x128xf32>
    %cst_66 = arith.constant 9.99999974E-6 : f32
    %168 = vector.broadcast %cst_66 : f32 to vector<8x1xf32>
    %169 = arith.addf %165, %168 : vector<8x1xf32>
    %170 = math.rsqrt %169 : vector<8x1xf32>
    %171 = vector.broadcast %170 : vector<8x1xf32> to vector<8x128xf32>
    %172 = arith.mulf %167, %171 : vector<8x128xf32>
    %c1_67 = arith.constant 1 : index
    %c0_68 = arith.constant 0 : index
    %173 = vector.load %arg5[%c1_67, %c0_68] : memref<3x128xf32, #tpu.memory_space<vmem>>, vector<1x128xf32>
    %174 = vector.shape_cast %173 : vector<1x128xf32> to vector<128xf32>
    %175 = vector.shape_cast %174 : vector<128xf32> to vector<1x128xf32>
    %176 = vector.broadcast %175 : vector<1x128xf32> to vector<8x128xf32>
    %177 = arith.mulf %172, %176 : vector<8x128xf32>
    %c1_69 = arith.constant 1 : index
    %c0_70 = arith.constant 0 : index
    %178 = vector.load %arg6[%c1_69, %c0_70] : memref<3x128xf32, #tpu.memory_space<vmem>>, vector<1x128xf32>
    %179 = vector.shape_cast %178 : vector<1x128xf32> to vector<128xf32>
    %180 = vector.shape_cast %179 : vector<128xf32> to vector<1x128xf32>
    %181 = vector.broadcast %180 : vector<1x128xf32> to vector<8x128xf32>
    %182 = arith.addf %177, %181 : vector<8x128xf32>
    %cst_71 = arith.constant 5.000000e-01 : f32
    %183 = vector.broadcast %cst_71 : f32 to vector<8x128xf32>
    %184 = arith.mulf %183, %182 : vector<8x128xf32>
    %cst_72 = arith.constant 4.471500e-02 : f32
    %185 = vector.broadcast %cst_72 : f32 to vector<8x128xf32>
    %186 = arith.mulf %185, %182 : vector<8x128xf32>
    %187 = arith.mulf %186, %182 : vector<8x128xf32>
    %188 = arith.mulf %187, %182 : vector<8x128xf32>
    %189 = arith.addf %182, %188 : vector<8x128xf32>
    %cst_73 = arith.constant 0.797884583 : f32
    %190 = vector.broadcast %cst_73 : f32 to vector<8x128xf32>
    %191 = arith.mulf %190, %189 : vector<8x128xf32>
    %192 = math.tanh %191 : vector<8x128xf32>
    %cst_74 = arith.constant 1.000000e+00 : f32
    %193 = vector.broadcast %cst_74 : f32 to vector<8x128xf32>
    %194 = arith.addf %193, %192 : vector<8x128xf32>
    %195 = arith.mulf %184, %194 : vector<8x128xf32>
    %196 = arith.truncf %195 : vector<8x128xf32> to vector<8x128xbf16>
    %c1_75 = arith.constant 1 : index
    %c0_76 = arith.constant 0 : index
    %c0_77 = arith.constant 0 : index
    %197 = vector.load %arg7[%c1_75, %c0_76, %c0_77] : memref<3x128x128xbf16, #tpu.memory_space<vmem>>, vector<1x128x128xbf16>
    %198 = vector.shape_cast %197 : vector<1x128x128xbf16> to vector<128x128xbf16>
    %cst_78 = arith.constant dense<0.000000e+00> : vector<8x128xf32>
    %199 = tpu.matmul %196, %198, %cst_78 {dimension_numbers = #tpu.dot_dimension_numbers<[1], [0], [0], [1], [0, 0, 1, 1], [], []>} : vector<8x128xbf16>, vector<128x128xbf16>, vector<8x128xf32> -> vector<8x128xf32>
    %c1_79 = arith.constant 1 : index
    %c0_80 = arith.constant 0 : index
    %200 = vector.load %arg8[%c1_79, %c0_80] : memref<3x128xf32, #tpu.memory_space<vmem>>, vector<1x128xf32>
    %201 = vector.shape_cast %200 : vector<1x128xf32> to vector<128xf32>
    %202 = vector.shape_cast %201 : vector<128xf32> to vector<1x128xf32>
    %203 = vector.broadcast %202 : vector<1x128xf32> to vector<8x128xf32>
    %204 = arith.addf %199, %203 : vector<8x128xf32>
    %cst_81 = arith.constant dense<0.000000e+00> : vector<8xf32>
    %205 = vector.multi_reduction <add>, %204, %cst_81 [1] : vector<8x128xf32> to vector<8xf32>
    %206 = vector.shape_cast %205 : vector<8xf32> to vector<8x1xf32>
    %cst_82 = arith.constant 1.280000e+02 : f32
    %207 = vector.broadcast %cst_82 : f32 to vector<8x1xf32>
    %208 = arith.divf %206, %207 : vector<8x1xf32>
    %209 = arith.mulf %204, %204 : vector<8x128xf32>
    %cst_83 = arith.constant dense<0.000000e+00> : vector<8xf32>
    %210 = vector.multi_reduction <add>, %209, %cst_83 [1] : vector<8x128xf32> to vector<8xf32>
    %211 = vector.shape_cast %210 : vector<8xf32> to vector<8x1xf32>
    %cst_84 = arith.constant 1.280000e+02 : f32
    %212 = vector.broadcast %cst_84 : f32 to vector<8x1xf32>
    %213 = arith.divf %211, %212 : vector<8x1xf32>
    %214 = arith.mulf %208, %208 : vector<8x1xf32>
    %215 = arith.subf %213, %214 : vector<8x1xf32>
    %216 = vector.broadcast %208 : vector<8x1xf32> to vector<8x128xf32>
    %217 = arith.subf %204, %216 : vector<8x128xf32>
    %cst_85 = arith.constant 9.99999974E-6 : f32
    %218 = vector.broadcast %cst_85 : f32 to vector<8x1xf32>
    %219 = arith.addf %215, %218 : vector<8x1xf32>
    %220 = math.rsqrt %219 : vector<8x1xf32>
    %221 = vector.broadcast %220 : vector<8x1xf32> to vector<8x128xf32>
    %222 = arith.mulf %217, %221 : vector<8x128xf32>
    %c1_86 = arith.constant 1 : index
    %c0_87 = arith.constant 0 : index
    %223 = vector.load %arg9[%c1_86, %c0_87] : memref<3x128xf32, #tpu.memory_space<vmem>>, vector<1x128xf32>
    %224 = vector.shape_cast %223 : vector<1x128xf32> to vector<128xf32>
    %225 = vector.shape_cast %224 : vector<128xf32> to vector<1x128xf32>
    %226 = vector.broadcast %225 : vector<1x128xf32> to vector<8x128xf32>
    %227 = arith.mulf %222, %226 : vector<8x128xf32>
    %c1_88 = arith.constant 1 : index
    %c0_89 = arith.constant 0 : index
    %228 = vector.load %arg10[%c1_88, %c0_89] : memref<3x128xf32, #tpu.memory_space<vmem>>, vector<1x128xf32>
    %229 = vector.shape_cast %228 : vector<1x128xf32> to vector<128xf32>
    %230 = vector.shape_cast %229 : vector<128xf32> to vector<1x128xf32>
    %231 = vector.broadcast %230 : vector<1x128xf32> to vector<8x128xf32>
    %232 = arith.addf %227, %231 : vector<8x128xf32>
    %cst_90 = arith.constant 5.000000e-01 : f32
    %233 = vector.broadcast %cst_90 : f32 to vector<8x128xf32>
    %234 = arith.mulf %233, %232 : vector<8x128xf32>
    %cst_91 = arith.constant 4.471500e-02 : f32
    %235 = vector.broadcast %cst_91 : f32 to vector<8x128xf32>
    %236 = arith.mulf %235, %232 : vector<8x128xf32>
    %237 = arith.mulf %236, %232 : vector<8x128xf32>
    %238 = arith.mulf %237, %232 : vector<8x128xf32>
    %239 = arith.addf %232, %238 : vector<8x128xf32>
    %cst_92 = arith.constant 0.797884583 : f32
    %240 = vector.broadcast %cst_92 : f32 to vector<8x128xf32>
    %241 = arith.mulf %240, %239 : vector<8x128xf32>
    %242 = math.tanh %241 : vector<8x128xf32>
    %cst_93 = arith.constant 1.000000e+00 : f32
    %243 = vector.broadcast %cst_93 : f32 to vector<8x128xf32>
    %244 = arith.addf %243, %242 : vector<8x128xf32>
    %245 = arith.mulf %234, %244 : vector<8x128xf32>
    %246 = arith.addf %126, %245 : vector<8x128xf32>
    %247 = vector.broadcast %1 : vector<8x1xf32> to vector<8x128xf32>
    %248 = arith.mulf %246, %247 : vector<8x128xf32>
    %c16_94 = arith.constant 16 : index
    %c0_95 = arith.constant 0 : index
    %249 = vector.load %arg12[%c16_94, %c0_95] : memref<40x128xf32, #tpu.memory_space<vmem>>, vector<8x128xf32>
    tpu.vector_store %arg12[%c16_94, %c0_95], %248 {strides = array<i32>} : memref<40x128xf32, #tpu.memory_space<vmem>>, vector<8x128xf32>,
    %c7 = arith.constant 7 : index
    %c0_96 = arith.constant 0 : index
    %250 = vector.load %arg12[%c7, %c0_96] : memref<40x128xf32, #tpu.memory_space<vmem>>, vector<8x128xf32>
    %c6 = arith.constant 6 : index
    %c0_97 = arith.constant 0 : index
    %251 = vector.load %arg3[%c6, %c0_97] : memref<9x128xf32, #tpu.memory_space<vmem>>, vector<1x128xf32>
    %252 = vector.shape_cast %251 : vector<1x128xf32> to vector<128xf32>
    %253 = vector.shape_cast %252 : vector<128xf32> to vector<1x128xf32>
    %254 = vector.broadcast %253 : vector<1x128xf32> to vector<8x128xf32>
    %255 = arith.mulf %250, %254 : vector<8x128xf32>
    %c16_98 = arith.constant 16 : index
    %c0_99 = arith.constant 0 : index
    %256 = vector.load %arg12[%c16_98, %c0_99] : memref<40x128xf32, #tpu.memory_space<vmem>>, vector<8x128xf32>
    %c7_100 = arith.constant 7 : index
    %c0_101 = arith.constant 0 : index
    %257 = vector.load %arg3[%c7_100, %c0_101] : memref<9x128xf32, #tpu.memory_space<vmem>>, vector<1x128xf32>
    %258 = vector.shape_cast %257 : vector<1x128xf32> to vector<128xf32>
    %259 = vector.shape_cast %258 : vector<128xf32> to vector<1x128xf32>
    %260 = vector.broadcast %259 : vector<1x128xf32> to vector<8x128xf32>
    %261 = arith.mulf %256, %260 : vector<8x128xf32>
    %262 = arith.addf %255, %261 : vector<8x128xf32>
    %c25 = arith.constant 25 : index
    %c0_102 = arith.constant 0 : index
    %263 = vector.load %arg12[%c25, %c0_102] : memref<40x128xf32, #tpu.memory_space<vmem>>, vector<8x128xf32>
    %c8 = arith.constant 8 : index
    %c0_103 = arith.constant 0 : index
    %264 = vector.load %arg3[%c8, %c0_103] : memref<9x128xf32, #tpu.memory_space<vmem>>, vector<1x128xf32>
    %265 = vector.shape_cast %264 : vector<1x128xf32> to vector<128xf32>
    %266 = vector.shape_cast %265 : vector<128xf32> to vector<1x128xf32>
    %267 = vector.broadcast %266 : vector<1x128xf32> to vector<8x128xf32>
    %268 = arith.mulf %263, %267 : vector<8x128xf32>
    %269 = arith.addf %262, %268 : vector<8x128xf32>
    %c2_104 = arith.constant 2 : index
    %c0_105 = arith.constant 0 : index
    %270 = vector.load %arg4[%c2_104, %c0_105] : memref<3x128xf32, #tpu.memory_space<vmem>>, vector<1x128xf32>
    %271 = vector.shape_cast %270 : vector<1x128xf32> to vector<128xf32>
    %272 = vector.shape_cast %271 : vector<128xf32> to vector<1x128xf32>
    %273 = vector.broadcast %272 : vector<1x128xf32> to vector<8x128xf32>
    %274 = arith.addf %269, %273 : vector<8x128xf32>
    %cst_106 = arith.constant dense<0.000000e+00> : vector<8xf32>
    %275 = vector.multi_reduction <add>, %274, %cst_106 [1] : vector<8x128xf32> to vector<8xf32>
    %276 = vector.shape_cast %275 : vector<8xf32> to vector<8x1xf32>
    %cst_107 = arith.constant 1.280000e+02 : f32
    %277 = vector.broadcast %cst_107 : f32 to vector<8x1xf32>
    %278 = arith.divf %276, %277 : vector<8x1xf32>
    %279 = arith.mulf %274, %274 : vector<8x128xf32>
    %cst_108 = arith.constant dense<0.000000e+00> : vector<8xf32>
    %280 = vector.multi_reduction <add>, %279, %cst_108 [1] : vector<8x128xf32> to vector<8xf32>
    %281 = vector.shape_cast %280 : vector<8xf32> to vector<8x1xf32>
    %cst_109 = arith.constant 1.280000e+02 : f32
    %282 = vector.broadcast %cst_109 : f32 to vector<8x1xf32>
    %283 = arith.divf %281, %282 : vector<8x1xf32>
    %284 = arith.mulf %278, %278 : vector<8x1xf32>
    %285 = arith.subf %283, %284 : vector<8x1xf32>
    %286 = vector.broadcast %278 : vector<8x1xf32> to vector<8x128xf32>
    %287 = arith.subf %274, %286 : vector<8x128xf32>
    %cst_110 = arith.constant 9.99999974E-6 : f32
    %288 = vector.broadcast %cst_110 : f32 to vector<8x1xf32>
    %289 = arith.addf %285, %288 : vector<8x1xf32>
    %290 = math.rsqrt %289 : vector<8x1xf32>
    %291 = vector.broadcast %290 : vector<8x1xf32> to vector<8x128xf32>
    %292 = arith.mulf %287, %291 : vector<8x128xf32>
    %c2_111 = arith.constant 2 : index
    %c0_112 = arith.constant 0 : index
    %293 = vector.load %arg5[%c2_111, %c0_112] : memref<3x128xf32, #tpu.memory_space<vmem>>, vector<1x128xf32>
    %294 = vector.shape_cast %293 : vector<1x128xf32> to vector<128xf32>
    %295 = vector.shape_cast %294 : vector<128xf32> to vector<1x128xf32>
    %296 = vector.broadcast %295 : vector<1x128xf32> to vector<8x128xf32>
    %297 = arith.mulf %292, %296 : vector<8x128xf32>
    %c2_113 = arith.constant 2 : index
    %c0_114 = arith.constant 0 : index
    %298 = vector.load %arg6[%c2_113, %c0_114] : memref<3x128xf32, #tpu.memory_space<vmem>>, vector<1x128xf32>
    %299 = vector.shape_cast %298 : vector<1x128xf32> to vector<128xf32>
    %300 = vector.shape_cast %299 : vector<128xf32> to vector<1x128xf32>
    %301 = vector.broadcast %300 : vector<1x128xf32> to vector<8x128xf32>
    %302 = arith.addf %297, %301 : vector<8x128xf32>
    %cst_115 = arith.constant 5.000000e-01 : f32
    %303 = vector.broadcast %cst_115 : f32 to vector<8x128xf32>
    %304 = arith.mulf %303, %302 : vector<8x128xf32>
    %cst_116 = arith.constant 4.471500e-02 : f32
    %305 = vector.broadcast %cst_116 : f32 to vector<8x128xf32>
    %306 = arith.mulf %305, %302 : vector<8x128xf32>
    %307 = arith.mulf %306, %302 : vector<8x128xf32>
    %308 = arith.mulf %307, %302 : vector<8x128xf32>
    %309 = arith.addf %302, %308 : vector<8x128xf32>
    %cst_117 = arith.constant 0.797884583 : f32
    %310 = vector.broadcast %cst_117 : f32 to vector<8x128xf32>
    %311 = arith.mulf %310, %309 : vector<8x128xf32>
    %312 = math.tanh %311 : vector<8x128xf32>
    %cst_118 = arith.constant 1.000000e+00 : f32
    %313 = vector.broadcast %cst_118 : f32 to vector<8x128xf32>
    %314 = arith.addf %313, %312 : vector<8x128xf32>
    %315 = arith.mulf %304, %314 : vector<8x128xf32>
    %316 = arith.truncf %315 : vector<8x128xf32> to vector<8x128xbf16>
    %c2_119 = arith.constant 2 : index
    %c0_120 = arith.constant 0 : index
    %c0_121 = arith.constant 0 : index
    %317 = vector.load %arg7[%c2_119, %c0_120, %c0_121] : memref<3x128x128xbf16, #tpu.memory_space<vmem>>, vector<1x128x128xbf16>
    %318 = vector.shape_cast %317 : vector<1x128x128xbf16> to vector<128x128xbf16>
    %cst_122 = arith.constant dense<0.000000e+00> : vector<8x128xf32>
    %319 = tpu.matmul %316, %318, %cst_122 {dimension_numbers = #tpu.dot_dimension_numbers<[1], [0], [0], [1], [0, 0, 1, 1], [], []>} : vector<8x128xbf16>, vector<128x128xbf16>, vector<8x128xf32> -> vector<8x128xf32>
    %c2_123 = arith.constant 2 : index
    %c0_124 = arith.constant 0 : index
    %320 = vector.load %arg8[%c2_123, %c0_124] : memref<3x128xf32, #tpu.memory_space<vmem>>, vector<1x128xf32>
    %321 = vector.shape_cast %320 : vector<1x128xf32> to vector<128xf32>
    %322 = vector.shape_cast %321 : vector<128xf32> to vector<1x128xf32>
    %323 = vector.broadcast %322 : vector<1x128xf32> to vector<8x128xf32>
    %324 = arith.addf %319, %323 : vector<8x128xf32>
    %cst_125 = arith.constant dense<0.000000e+00> : vector<8xf32>
    %325 = vector.multi_reduction <add>, %324, %cst_125 [1] : vector<8x128xf32> to vector<8xf32>
    %326 = vector.shape_cast %325 : vector<8xf32> to vector<8x1xf32>
    %cst_126 = arith.constant 1.280000e+02 : f32
    %327 = vector.broadcast %cst_126 : f32 to vector<8x1xf32>
    %328 = arith.divf %326, %327 : vector<8x1xf32>
    %329 = arith.mulf %324, %324 : vector<8x128xf32>
    %cst_127 = arith.constant dense<0.000000e+00> : vector<8xf32>
    %330 = vector.multi_reduction <add>, %329, %cst_127 [1] : vector<8x128xf32> to vector<8xf32>
    %331 = vector.shape_cast %330 : vector<8xf32> to vector<8x1xf32>
    %cst_128 = arith.constant 1.280000e+02 : f32
    %332 = vector.broadcast %cst_128 : f32 to vector<8x1xf32>
    %333 = arith.divf %331, %332 : vector<8x1xf32>
    %334 = arith.mulf %328, %328 : vector<8x1xf32>
    %335 = arith.subf %333, %334 : vector<8x1xf32>
    %336 = vector.broadcast %328 : vector<8x1xf32> to vector<8x128xf32>
    %337 = arith.subf %324, %336 : vector<8x128xf32>
    %cst_129 = arith.constant 9.99999974E-6 : f32
    %338 = vector.broadcast %cst_129 : f32 to vector<8x1xf32>
    %339 = arith.addf %335, %338 : vector<8x1xf32>
    %340 = math.rsqrt %339 : vector<8x1xf32>
    %341 = vector.broadcast %340 : vector<8x1xf32> to vector<8x128xf32>
    %342 = arith.mulf %337, %341 : vector<8x128xf32>
    %c2_130 = arith.constant 2 : index
    %c0_131 = arith.constant 0 : index
    %343 = vector.load %arg9[%c2_130, %c0_131] : memref<3x128xf32, #tpu.memory_space<vmem>>, vector<1x128xf32>
    %344 = vector.shape_cast %343 : vector<1x128xf32> to vector<128xf32>
    %345 = vector.shape_cast %344 : vector<128xf32> to vector<1x128xf32>
    %346 = vector.broadcast %345 : vector<1x128xf32> to vector<8x128xf32>
    %347 = arith.mulf %342, %346 : vector<8x128xf32>
    %c2_132 = arith.constant 2 : index
    %c0_133 = arith.constant 0 : index
    %348 = vector.load %arg10[%c2_132, %c0_133] : memref<3x128xf32, #tpu.memory_space<vmem>>, vector<1x128xf32>
    %349 = vector.shape_cast %348 : vector<1x128xf32> to vector<128xf32>
    %350 = vector.shape_cast %349 : vector<128xf32> to vector<1x128xf32>
    %351 = vector.broadcast %350 : vector<1x128xf32> to vector<8x128xf32>
    %352 = arith.addf %347, %351 : vector<8x128xf32>
    %cst_134 = arith.constant 5.000000e-01 : f32
    %353 = vector.broadcast %cst_134 : f32 to vector<8x128xf32>
    %354 = arith.mulf %353, %352 : vector<8x128xf32>
    %cst_135 = arith.constant 4.471500e-02 : f32
    %355 = vector.broadcast %cst_135 : f32 to vector<8x128xf32>
    %356 = arith.mulf %355, %352 : vector<8x128xf32>
    %357 = arith.mulf %356, %352 : vector<8x128xf32>
    %358 = arith.mulf %357, %352 : vector<8x128xf32>
    %359 = arith.addf %352, %358 : vector<8x128xf32>
    %cst_136 = arith.constant 0.797884583 : f32
    %360 = vector.broadcast %cst_136 : f32 to vector<8x128xf32>
    %361 = arith.mulf %360, %359 : vector<8x128xf32>
    %362 = math.tanh %361 : vector<8x128xf32>
    %cst_137 = arith.constant 1.000000e+00 : f32
    %363 = vector.broadcast %cst_137 : f32 to vector<8x128xf32>
    %364 = arith.addf %363, %362 : vector<8x128xf32>
    %365 = arith.mulf %354, %364 : vector<8x128xf32>
    %366 = arith.addf %246, %365 : vector<8x128xf32>
    %367 = vector.broadcast %1 : vector<8x1xf32> to vector<8x128xf32>
    %368 = arith.mulf %366, %367 : vector<8x128xf32>
    %369 = arith.truncf %368 : vector<8x128xf32> to vector<8x128xbf16>
    %c0_138 = arith.constant 0 : index
    %c0_139 = arith.constant 0 : index
    %c0_140 = arith.constant 0 : index
    %370 = vector.load %arg11[%c0_138, %c0_139, %c0_140] : memref<1x8x128xbf16, #tpu.memory_space<vmem>>, vector<1x8x128xbf16>
    %371 = vector.shape_cast %370 : vector<1x8x128xbf16> to vector<8x128xbf16>
    %372 = vector.shape_cast %369 : vector<8x128xbf16> to vector<1x8x128xbf16>
    tpu.vector_store %arg11[%c0_138, %c0_139, %c0_140], %372 {strides = array<i32>} : memref<1x8x128xbf16, #tpu.memory_space<vmem>>, vector<1x8x128xbf16>,
    return
  }
  func.func @transform_0(%arg0: i32) -> (i32, i32, i32) {
    %c0_i32 = arith.constant 0 : i32
    %c0_i32_0 = arith.constant 0 : i32
    %c0_i32_1 = arith.constant 0 : i32
    return %arg0, %c0_i32, %c0_i32_0 : i32, i32, i32
  }
  func.func @transform_1(%arg0: i32) -> (i32, i32, i32) {
    %c0_i32 = arith.constant 0 : i32
    %c0_i32_0 = arith.constant 0 : i32
    %c0_i32_1 = arith.constant 0 : i32
    return %arg0, %c0_i32, %c0_i32_0 : i32, i32, i32
  }
  func.func @transform_2(%arg0: i32) -> (i32, i32) {
    %c0_i32 = arith.constant 0 : i32
    %c0_i32_0 = arith.constant 0 : i32
    %c0_i32_1 = arith.constant 0 : i32
    return %c0_i32, %c0_i32_0 : i32, i32
  }
  func.func @transform_3(%arg0: i32) -> (i32, i32) {
    %c0_i32 = arith.constant 0 : i32
    %c0_i32_0 = arith.constant 0 : i32
    %c0_i32_1 = arith.constant 0 : i32
    return %c0_i32, %c0_i32_0 : i32, i32
  }
  func.func @transform_4(%arg0: i32) -> (i32, i32) {
    %c0_i32 = arith.constant 0 : i32
    %c0_i32_0 = arith.constant 0 : i32
    %c0_i32_1 = arith.constant 0 : i32
    return %c0_i32, %c0_i32_0 : i32, i32
  }
  func.func @transform_5(%arg0: i32) -> (i32, i32) {
    %c0_i32 = arith.constant 0 : i32
    %c0_i32_0 = arith.constant 0 : i32
    %c0_i32_1 = arith.constant 0 : i32
    return %c0_i32, %c0_i32_0 : i32, i32
  }
  func.func @transform_6(%arg0: i32) -> (i32, i32, i32) {
    %c0_i32 = arith.constant 0 : i32
    %c0_i32_0 = arith.constant 0 : i32
    %c0_i32_1 = arith.constant 0 : i32
    %c0_i32_2 = arith.constant 0 : i32
    return %c0_i32, %c0_i32_0, %c0_i32_1 : i32, i32, i32
  }
  func.func @transform_7(%arg0: i32) -> (i32, i32) {
    %c0_i32 = arith.constant 0 : i32
    %c0_i32_0 = arith.constant 0 : i32
    %c0_i32_1 = arith.constant 0 : i32
    return %c0_i32, %c0_i32_0 : i32, i32
  }
  func.func @transform_8(%arg0: i32) -> (i32, i32) {
    %c0_i32 = arith.constant 0 : i32
    %c0_i32_0 = arith.constant 0 : i32
    %c0_i32_1 = arith.constant 0 : i32
    return %c0_i32, %c0_i32_0 : i32, i32
  }
  func.func @transform_9(%arg0: i32) -> (i32, i32) {
    %c0_i32 = arith.constant 0 : i32
    %c0_i32_0 = arith.constant 0 : i32
    %c0_i32_1 = arith.constant 0 : i32
    return %c0_i32, %c0_i32_0 : i32, i32
  }
  func.func @transform_10(%arg0: i32) -> (i32, i32, i32) {
    %c0_i32 = arith.constant 0 : i32
    %c0_i32_0 = arith.constant 0 : i32
    %c0_i32_1 = arith.constant 0 : i32
    return %arg0, %c0_i32, %c0_i32_0 : i32, i32, i32
  }
}

module attributes {stable_mosaic.version = 11 : i64} {
  func.func @_dds_block_kernel(%arg0: i32, %arg1: memref<1x8x128xf32, #tpu.memory_space<vmem>>, %arg2: memref<1x8x1xf32, #tpu.memory_space<vmem>>, %arg3: memref<1x8x128xf32, #tpu.memory_space<vmem>>, %arg4: memref<9x128xf32, #tpu.memory_space<vmem>>, %arg5: memref<3x128xf32, #tpu.memory_space<vmem>>, %arg6: memref<3x128xf32, #tpu.memory_space<vmem>>, %arg7: memref<3x128xf32, #tpu.memory_space<vmem>>, %arg8: memref<3x128x128xbf16, #tpu.memory_space<vmem>>, %arg9: memref<3x128xf32, #tpu.memory_space<vmem>>, %arg10: memref<3x128xf32, #tpu.memory_space<vmem>>, %arg11: memref<3x128xf32, #tpu.memory_space<vmem>>, %arg12: memref<1x8x128xbf16, #tpu.memory_space<vmem>>, %arg13: memref<40x128xf32, #tpu.memory_space<vmem>>) attributes {dimension_semantics = [#tpu.dimension_semantics<parallel>], iteration_bounds = array<i64: 2>, scalar_prefetch = 0 : i64, scratch_operands = 1 : i64, tpu.core_type = #tpu.core_type<tc>, window_params = [{transform_indices = @transform_0, window_bounds = array<i64: 1, 8, 128>}, {transform_indices = @transform_1, window_bounds = array<i64: 1, 8, 1>}, {transform_indices = @transform_2, window_bounds = array<i64: 1, 8, 128>}, {pipeline_mode = #tpu.pipeline_mode<synchronous>, transform_indices = @transform_3, window_bounds = array<i64: 9, 128>}, {pipeline_mode = #tpu.pipeline_mode<synchronous>, transform_indices = @transform_4, window_bounds = array<i64: 3, 128>}, {pipeline_mode = #tpu.pipeline_mode<synchronous>, transform_indices = @transform_5, window_bounds = array<i64: 3, 128>}, {pipeline_mode = #tpu.pipeline_mode<synchronous>, transform_indices = @transform_6, window_bounds = array<i64: 3, 128>}, {pipeline_mode = #tpu.pipeline_mode<synchronous>, transform_indices = @transform_7, window_bounds = array<i64: 3, 128, 128>}, {pipeline_mode = #tpu.pipeline_mode<synchronous>, transform_indices = @transform_8, window_bounds = array<i64: 3, 128>}, {pipeline_mode = #tpu.pipeline_mode<synchronous>, transform_indices = @transform_9, window_bounds = array<i64: 3, 128>}, {pipeline_mode = #tpu.pipeline_mode<synchronous>, transform_indices = @transform_10, window_bounds = array<i64: 3, 128>}, {transform_indices = @transform_11, window_bounds = array<i64: 1, 8, 128>}]} {
    %c0 = arith.constant 0 : index
    %c0_0 = arith.constant 0 : index
    %c0_1 = arith.constant 0 : index
    %0 = vector.load %arg2[%c0, %c0_0, %c0_1] : memref<1x8x1xf32, #tpu.memory_space<vmem>>, vector<1x8x1xf32>
    %1 = vector.shape_cast %0 : vector<1x8x1xf32> to vector<8x1xf32>
    %c0_2 = arith.constant 0 : index
    %c0_3 = arith.constant 0 : index
    %c0_4 = arith.constant 0 : index
    %2 = vector.load %arg1[%c0_2, %c0_3, %c0_4] : memref<1x8x128xf32, #tpu.memory_space<vmem>>, vector<1x8x128xf32>
    %3 = vector.shape_cast %2 : vector<1x8x128xf32> to vector<8x128xf32>
    %c0_5 = arith.constant 0 : index
    %c0_6 = arith.constant 0 : index
    %c0_7 = arith.constant 0 : index
    %4 = vector.load %arg3[%c0_5, %c0_6, %c0_7] : memref<1x8x128xf32, #tpu.memory_space<vmem>>, vector<1x8x128xf32>
    %5 = vector.shape_cast %4 : vector<1x8x128xf32> to vector<8x128xf32>
    %6 = arith.addf %3, %5 : vector<8x128xf32>
    %cst = arith.constant 0.000000e+00 : f32
    %7 = vector.broadcast %cst : f32 to vector<16x128xf32>
    %c0_8 = arith.constant 0 : index
    %c0_9 = arith.constant 0 : index
    %8 = vector.load %arg13[%c0_8, %c0_9] : memref<40x128xf32, #tpu.memory_space<vmem>>, vector<16x128xf32>
    tpu.vector_store %arg13[%c0_8, %c0_9], %7 {strides = array<i32>} : memref<40x128xf32, #tpu.memory_space<vmem>>, vector<16x128xf32>,
    %c24 = arith.constant 24 : index
    %c0_10 = arith.constant 0 : index
    %9 = vector.load %arg13[%c24, %c0_10] : memref<40x128xf32, #tpu.memory_space<vmem>>, vector<16x128xf32>
    tpu.vector_store %arg13[%c24, %c0_10], %7 {strides = array<i32>} : memref<40x128xf32, #tpu.memory_space<vmem>>, vector<16x128xf32>,
    %10 = vector.broadcast %1 : vector<8x1xf32> to vector<8x128xf32>
    %11 = arith.mulf %6, %10 : vector<8x128xf32>
    %c16 = arith.constant 16 : index
    %c0_11 = arith.constant 0 : index
    %12 = vector.load %arg13[%c16, %c0_11] : memref<40x128xf32, #tpu.memory_space<vmem>>, vector<8x128xf32>
    tpu.vector_store %arg13[%c16, %c0_11], %11 {strides = array<i32>} : memref<40x128xf32, #tpu.memory_space<vmem>>, vector<8x128xf32>,
    %c15 = arith.constant 15 : index
    %c0_12 = arith.constant 0 : index
    %13 = vector.load %arg13[%c15, %c0_12] : memref<40x128xf32, #tpu.memory_space<vmem>>, vector<8x128xf32>
    %c0_13 = arith.constant 0 : index
    %c0_14 = arith.constant 0 : index
    %14 = vector.load %arg4[%c0_13, %c0_14] : memref<9x128xf32, #tpu.memory_space<vmem>>, vector<1x128xf32>
    %15 = vector.shape_cast %14 : vector<1x128xf32> to vector<128xf32>
    %16 = vector.shape_cast %15 : vector<128xf32> to vector<1x128xf32>
    %17 = vector.broadcast %16 : vector<1x128xf32> to vector<8x128xf32>
    %18 = arith.mulf %13, %17 : vector<8x128xf32>
    %c16_15 = arith.constant 16 : index
    %c0_16 = arith.constant 0 : index
    %19 = vector.load %arg13[%c16_15, %c0_16] : memref<40x128xf32, #tpu.memory_space<vmem>>, vector<8x128xf32>
    %c1 = arith.constant 1 : index
    %c0_17 = arith.constant 0 : index
    %20 = vector.load %arg4[%c1, %c0_17] : memref<9x128xf32, #tpu.memory_space<vmem>>, vector<1x128xf32>
    %21 = vector.shape_cast %20 : vector<1x128xf32> to vector<128xf32>
    %22 = vector.shape_cast %21 : vector<128xf32> to vector<1x128xf32>
    %23 = vector.broadcast %22 : vector<1x128xf32> to vector<8x128xf32>
    %24 = arith.mulf %19, %23 : vector<8x128xf32>
    %25 = arith.addf %18, %24 : vector<8x128xf32>
    %c17 = arith.constant 17 : index
    %c0_18 = arith.constant 0 : index
    %26 = vector.load %arg13[%c17, %c0_18] : memref<40x128xf32, #tpu.memory_space<vmem>>, vector<8x128xf32>
    %c2 = arith.constant 2 : index
    %c0_19 = arith.constant 0 : index
    %27 = vector.load %arg4[%c2, %c0_19] : memref<9x128xf32, #tpu.memory_space<vmem>>, vector<1x128xf32>
    %28 = vector.shape_cast %27 : vector<1x128xf32> to vector<128xf32>
    %29 = vector.shape_cast %28 : vector<128xf32> to vector<1x128xf32>
    %30 = vector.broadcast %29 : vector<1x128xf32> to vector<8x128xf32>
    %31 = arith.mulf %26, %30 : vector<8x128xf32>
    %32 = arith.addf %25, %31 : vector<8x128xf32>
    %c0_20 = arith.constant 0 : index
    %c0_21 = arith.constant 0 : index
    %33 = vector.load %arg5[%c0_20, %c0_21] : memref<3x128xf32, #tpu.memory_space<vmem>>, vector<1x128xf32>
    %34 = vector.shape_cast %33 : vector<1x128xf32> to vector<128xf32>
    %35 = vector.shape_cast %34 : vector<128xf32> to vector<1x128xf32>
    %36 = vector.broadcast %35 : vector<1x128xf32> to vector<8x128xf32>
    %37 = arith.addf %32, %36 : vector<8x128xf32>
    %cst_22 = arith.constant dense<0.000000e+00> : vector<8xf32>
    %38 = vector.multi_reduction <add>, %37, %cst_22 [1] : vector<8x128xf32> to vector<8xf32>
    %39 = vector.shape_cast %38 : vector<8xf32> to vector<8x1xf32>
    %cst_23 = arith.constant 1.280000e+02 : f32
    %40 = vector.broadcast %cst_23 : f32 to vector<8x1xf32>
    %41 = arith.divf %39, %40 : vector<8x1xf32>
    %42 = arith.mulf %37, %37 : vector<8x128xf32>
    %cst_24 = arith.constant dense<0.000000e+00> : vector<8xf32>
    %43 = vector.multi_reduction <add>, %42, %cst_24 [1] : vector<8x128xf32> to vector<8xf32>
    %44 = vector.shape_cast %43 : vector<8xf32> to vector<8x1xf32>
    %cst_25 = arith.constant 1.280000e+02 : f32
    %45 = vector.broadcast %cst_25 : f32 to vector<8x1xf32>
    %46 = arith.divf %44, %45 : vector<8x1xf32>
    %47 = arith.mulf %41, %41 : vector<8x1xf32>
    %48 = arith.subf %46, %47 : vector<8x1xf32>
    %49 = vector.broadcast %41 : vector<8x1xf32> to vector<8x128xf32>
    %50 = arith.subf %37, %49 : vector<8x128xf32>
    %cst_26 = arith.constant 9.99999974E-6 : f32
    %51 = vector.broadcast %cst_26 : f32 to vector<8x1xf32>
    %52 = arith.addf %48, %51 : vector<8x1xf32>
    %53 = math.rsqrt %52 : vector<8x1xf32>
    %54 = vector.broadcast %53 : vector<8x1xf32> to vector<8x128xf32>
    %55 = arith.mulf %50, %54 : vector<8x128xf32>
    %c0_27 = arith.constant 0 : index
    %c0_28 = arith.constant 0 : index
    %56 = vector.load %arg6[%c0_27, %c0_28] : memref<3x128xf32, #tpu.memory_space<vmem>>, vector<1x128xf32>
    %57 = vector.shape_cast %56 : vector<1x128xf32> to vector<128xf32>
    %58 = vector.shape_cast %57 : vector<128xf32> to vector<1x128xf32>
    %59 = vector.broadcast %58 : vector<1x128xf32> to vector<8x128xf32>
    %60 = arith.mulf %55, %59 : vector<8x128xf32>
    %c0_29 = arith.constant 0 : index
    %c0_30 = arith.constant 0 : index
    %61 = vector.load %arg7[%c0_29, %c0_30] : memref<3x128xf32, #tpu.memory_space<vmem>>, vector<1x128xf32>
    %62 = vector.shape_cast %61 : vector<1x128xf32> to vector<128xf32>
    %63 = vector.shape_cast %62 : vector<128xf32> to vector<1x128xf32>
    %64 = vector.broadcast %63 : vector<1x128xf32> to vector<8x128xf32>
    %65 = arith.addf %60, %64 : vector<8x128xf32>
    %cst_31 = arith.constant 5.000000e-01 : f32
    %66 = vector.broadcast %cst_31 : f32 to vector<8x128xf32>
    %67 = arith.mulf %66, %65 : vector<8x128xf32>
    %cst_32 = arith.constant 4.471500e-02 : f32
    %68 = vector.broadcast %cst_32 : f32 to vector<8x128xf32>
    %69 = arith.mulf %68, %65 : vector<8x128xf32>
    %70 = arith.mulf %69, %65 : vector<8x128xf32>
    %71 = arith.mulf %70, %65 : vector<8x128xf32>
    %72 = arith.addf %65, %71 : vector<8x128xf32>
    %cst_33 = arith.constant 0.797884583 : f32
    %73 = vector.broadcast %cst_33 : f32 to vector<8x128xf32>
    %74 = arith.mulf %73, %72 : vector<8x128xf32>
    %75 = math.tanh %74 : vector<8x128xf32>
    %cst_34 = arith.constant 1.000000e+00 : f32
    %76 = vector.broadcast %cst_34 : f32 to vector<8x128xf32>
    %77 = arith.addf %76, %75 : vector<8x128xf32>
    %78 = arith.mulf %67, %77 : vector<8x128xf32>
    %79 = arith.truncf %78 : vector<8x128xf32> to vector<8x128xbf16>
    %c0_35 = arith.constant 0 : index
    %c0_36 = arith.constant 0 : index
    %c0_37 = arith.constant 0 : index
    %80 = vector.load %arg8[%c0_35, %c0_36, %c0_37] : memref<3x128x128xbf16, #tpu.memory_space<vmem>>, vector<1x128x128xbf16>
    %81 = vector.shape_cast %80 : vector<1x128x128xbf16> to vector<128x128xbf16>
    %cst_38 = arith.constant dense<0.000000e+00> : vector<8x128xf32>
    %82 = tpu.matmul %79, %81, %cst_38 {dimension_numbers = #tpu.dot_dimension_numbers<[1], [0], [0], [1], [0, 0, 1, 1], [], []>} : vector<8x128xbf16>, vector<128x128xbf16>, vector<8x128xf32> -> vector<8x128xf32>
    %c0_39 = arith.constant 0 : index
    %c0_40 = arith.constant 0 : index
    %83 = vector.load %arg9[%c0_39, %c0_40] : memref<3x128xf32, #tpu.memory_space<vmem>>, vector<1x128xf32>
    %84 = vector.shape_cast %83 : vector<1x128xf32> to vector<128xf32>
    %85 = vector.shape_cast %84 : vector<128xf32> to vector<1x128xf32>
    %86 = vector.broadcast %85 : vector<1x128xf32> to vector<8x128xf32>
    %87 = arith.addf %82, %86 : vector<8x128xf32>
    %cst_41 = arith.constant dense<0.000000e+00> : vector<8xf32>
    %88 = vector.multi_reduction <add>, %87, %cst_41 [1] : vector<8x128xf32> to vector<8xf32>
    %89 = vector.shape_cast %88 : vector<8xf32> to vector<8x1xf32>
    %cst_42 = arith.constant 1.280000e+02 : f32
    %90 = vector.broadcast %cst_42 : f32 to vector<8x1xf32>
    %91 = arith.divf %89, %90 : vector<8x1xf32>
    %92 = arith.mulf %87, %87 : vector<8x128xf32>
    %cst_43 = arith.constant dense<0.000000e+00> : vector<8xf32>
    %93 = vector.multi_reduction <add>, %92, %cst_43 [1] : vector<8x128xf32> to vector<8xf32>
    %94 = vector.shape_cast %93 : vector<8xf32> to vector<8x1xf32>
    %cst_44 = arith.constant 1.280000e+02 : f32
    %95 = vector.broadcast %cst_44 : f32 to vector<8x1xf32>
    %96 = arith.divf %94, %95 : vector<8x1xf32>
    %97 = arith.mulf %91, %91 : vector<8x1xf32>
    %98 = arith.subf %96, %97 : vector<8x1xf32>
    %99 = vector.broadcast %91 : vector<8x1xf32> to vector<8x128xf32>
    %100 = arith.subf %87, %99 : vector<8x128xf32>
    %cst_45 = arith.constant 9.99999974E-6 : f32
    %101 = vector.broadcast %cst_45 : f32 to vector<8x1xf32>
    %102 = arith.addf %98, %101 : vector<8x1xf32>
    %103 = math.rsqrt %102 : vector<8x1xf32>
    %104 = vector.broadcast %103 : vector<8x1xf32> to vector<8x128xf32>
    %105 = arith.mulf %100, %104 : vector<8x128xf32>
    %c0_46 = arith.constant 0 : index
    %c0_47 = arith.constant 0 : index
    %106 = vector.load %arg10[%c0_46, %c0_47] : memref<3x128xf32, #tpu.memory_space<vmem>>, vector<1x128xf32>
    %107 = vector.shape_cast %106 : vector<1x128xf32> to vector<128xf32>
    %108 = vector.shape_cast %107 : vector<128xf32> to vector<1x128xf32>
    %109 = vector.broadcast %108 : vector<1x128xf32> to vector<8x128xf32>
    %110 = arith.mulf %105, %109 : vector<8x128xf32>
    %c0_48 = arith.constant 0 : index
    %c0_49 = arith.constant 0 : index
    %111 = vector.load %arg11[%c0_48, %c0_49] : memref<3x128xf32, #tpu.memory_space<vmem>>, vector<1x128xf32>
    %112 = vector.shape_cast %111 : vector<1x128xf32> to vector<128xf32>
    %113 = vector.shape_cast %112 : vector<128xf32> to vector<1x128xf32>
    %114 = vector.broadcast %113 : vector<1x128xf32> to vector<8x128xf32>
    %115 = arith.addf %110, %114 : vector<8x128xf32>
    %cst_50 = arith.constant 5.000000e-01 : f32
    %116 = vector.broadcast %cst_50 : f32 to vector<8x128xf32>
    %117 = arith.mulf %116, %115 : vector<8x128xf32>
    %cst_51 = arith.constant 4.471500e-02 : f32
    %118 = vector.broadcast %cst_51 : f32 to vector<8x128xf32>
    %119 = arith.mulf %118, %115 : vector<8x128xf32>
    %120 = arith.mulf %119, %115 : vector<8x128xf32>
    %121 = arith.mulf %120, %115 : vector<8x128xf32>
    %122 = arith.addf %115, %121 : vector<8x128xf32>
    %cst_52 = arith.constant 0.797884583 : f32
    %123 = vector.broadcast %cst_52 : f32 to vector<8x128xf32>
    %124 = arith.mulf %123, %122 : vector<8x128xf32>
    %125 = math.tanh %124 : vector<8x128xf32>
    %cst_53 = arith.constant 1.000000e+00 : f32
    %126 = vector.broadcast %cst_53 : f32 to vector<8x128xf32>
    %127 = arith.addf %126, %125 : vector<8x128xf32>
    %128 = arith.mulf %117, %127 : vector<8x128xf32>
    %129 = arith.addf %6, %128 : vector<8x128xf32>
    %130 = vector.broadcast %1 : vector<8x1xf32> to vector<8x128xf32>
    %131 = arith.mulf %129, %130 : vector<8x128xf32>
    %c16_54 = arith.constant 16 : index
    %c0_55 = arith.constant 0 : index
    %132 = vector.load %arg13[%c16_54, %c0_55] : memref<40x128xf32, #tpu.memory_space<vmem>>, vector<8x128xf32>
    tpu.vector_store %arg13[%c16_54, %c0_55], %131 {strides = array<i32>} : memref<40x128xf32, #tpu.memory_space<vmem>>, vector<8x128xf32>,
    %c13 = arith.constant 13 : index
    %c0_56 = arith.constant 0 : index
    %133 = vector.load %arg13[%c13, %c0_56] : memref<40x128xf32, #tpu.memory_space<vmem>>, vector<8x128xf32>
    %c3 = arith.constant 3 : index
    %c0_57 = arith.constant 0 : index
    %134 = vector.load %arg4[%c3, %c0_57] : memref<9x128xf32, #tpu.memory_space<vmem>>, vector<1x128xf32>
    %135 = vector.shape_cast %134 : vector<1x128xf32> to vector<128xf32>
    %136 = vector.shape_cast %135 : vector<128xf32> to vector<1x128xf32>
    %137 = vector.broadcast %136 : vector<1x128xf32> to vector<8x128xf32>
    %138 = arith.mulf %133, %137 : vector<8x128xf32>
    %c16_58 = arith.constant 16 : index
    %c0_59 = arith.constant 0 : index
    %139 = vector.load %arg13[%c16_58, %c0_59] : memref<40x128xf32, #tpu.memory_space<vmem>>, vector<8x128xf32>
    %c4 = arith.constant 4 : index
    %c0_60 = arith.constant 0 : index
    %140 = vector.load %arg4[%c4, %c0_60] : memref<9x128xf32, #tpu.memory_space<vmem>>, vector<1x128xf32>
    %141 = vector.shape_cast %140 : vector<1x128xf32> to vector<128xf32>
    %142 = vector.shape_cast %141 : vector<128xf32> to vector<1x128xf32>
    %143 = vector.broadcast %142 : vector<1x128xf32> to vector<8x128xf32>
    %144 = arith.mulf %139, %143 : vector<8x128xf32>
    %145 = arith.addf %138, %144 : vector<8x128xf32>
    %c19 = arith.constant 19 : index
    %c0_61 = arith.constant 0 : index
    %146 = vector.load %arg13[%c19, %c0_61] : memref<40x128xf32, #tpu.memory_space<vmem>>, vector<8x128xf32>
    %c5 = arith.constant 5 : index
    %c0_62 = arith.constant 0 : index
    %147 = vector.load %arg4[%c5, %c0_62] : memref<9x128xf32, #tpu.memory_space<vmem>>, vector<1x128xf32>
    %148 = vector.shape_cast %147 : vector<1x128xf32> to vector<128xf32>
    %149 = vector.shape_cast %148 : vector<128xf32> to vector<1x128xf32>
    %150 = vector.broadcast %149 : vector<1x128xf32> to vector<8x128xf32>
    %151 = arith.mulf %146, %150 : vector<8x128xf32>
    %152 = arith.addf %145, %151 : vector<8x128xf32>
    %c1_63 = arith.constant 1 : index
    %c0_64 = arith.constant 0 : index
    %153 = vector.load %arg5[%c1_63, %c0_64] : memref<3x128xf32, #tpu.memory_space<vmem>>, vector<1x128xf32>
    %154 = vector.shape_cast %153 : vector<1x128xf32> to vector<128xf32>
    %155 = vector.shape_cast %154 : vector<128xf32> to vector<1x128xf32>
    %156 = vector.broadcast %155 : vector<1x128xf32> to vector<8x128xf32>
    %157 = arith.addf %152, %156 : vector<8x128xf32>
    %cst_65 = arith.constant dense<0.000000e+00> : vector<8xf32>
    %158 = vector.multi_reduction <add>, %157, %cst_65 [1] : vector<8x128xf32> to vector<8xf32>
    %159 = vector.shape_cast %158 : vector<8xf32> to vector<8x1xf32>
    %cst_66 = arith.constant 1.280000e+02 : f32
    %160 = vector.broadcast %cst_66 : f32 to vector<8x1xf32>
    %161 = arith.divf %159, %160 : vector<8x1xf32>
    %162 = arith.mulf %157, %157 : vector<8x128xf32>
    %cst_67 = arith.constant dense<0.000000e+00> : vector<8xf32>
    %163 = vector.multi_reduction <add>, %162, %cst_67 [1] : vector<8x128xf32> to vector<8xf32>
    %164 = vector.shape_cast %163 : vector<8xf32> to vector<8x1xf32>
    %cst_68 = arith.constant 1.280000e+02 : f32
    %165 = vector.broadcast %cst_68 : f32 to vector<8x1xf32>
    %166 = arith.divf %164, %165 : vector<8x1xf32>
    %167 = arith.mulf %161, %161 : vector<8x1xf32>
    %168 = arith.subf %166, %167 : vector<8x1xf32>
    %169 = vector.broadcast %161 : vector<8x1xf32> to vector<8x128xf32>
    %170 = arith.subf %157, %169 : vector<8x128xf32>
    %cst_69 = arith.constant 9.99999974E-6 : f32
    %171 = vector.broadcast %cst_69 : f32 to vector<8x1xf32>
    %172 = arith.addf %168, %171 : vector<8x1xf32>
    %173 = math.rsqrt %172 : vector<8x1xf32>
    %174 = vector.broadcast %173 : vector<8x1xf32> to vector<8x128xf32>
    %175 = arith.mulf %170, %174 : vector<8x128xf32>
    %c1_70 = arith.constant 1 : index
    %c0_71 = arith.constant 0 : index
    %176 = vector.load %arg6[%c1_70, %c0_71] : memref<3x128xf32, #tpu.memory_space<vmem>>, vector<1x128xf32>
    %177 = vector.shape_cast %176 : vector<1x128xf32> to vector<128xf32>
    %178 = vector.shape_cast %177 : vector<128xf32> to vector<1x128xf32>
    %179 = vector.broadcast %178 : vector<1x128xf32> to vector<8x128xf32>
    %180 = arith.mulf %175, %179 : vector<8x128xf32>
    %c1_72 = arith.constant 1 : index
    %c0_73 = arith.constant 0 : index
    %181 = vector.load %arg7[%c1_72, %c0_73] : memref<3x128xf32, #tpu.memory_space<vmem>>, vector<1x128xf32>
    %182 = vector.shape_cast %181 : vector<1x128xf32> to vector<128xf32>
    %183 = vector.shape_cast %182 : vector<128xf32> to vector<1x128xf32>
    %184 = vector.broadcast %183 : vector<1x128xf32> to vector<8x128xf32>
    %185 = arith.addf %180, %184 : vector<8x128xf32>
    %cst_74 = arith.constant 5.000000e-01 : f32
    %186 = vector.broadcast %cst_74 : f32 to vector<8x128xf32>
    %187 = arith.mulf %186, %185 : vector<8x128xf32>
    %cst_75 = arith.constant 4.471500e-02 : f32
    %188 = vector.broadcast %cst_75 : f32 to vector<8x128xf32>
    %189 = arith.mulf %188, %185 : vector<8x128xf32>
    %190 = arith.mulf %189, %185 : vector<8x128xf32>
    %191 = arith.mulf %190, %185 : vector<8x128xf32>
    %192 = arith.addf %185, %191 : vector<8x128xf32>
    %cst_76 = arith.constant 0.797884583 : f32
    %193 = vector.broadcast %cst_76 : f32 to vector<8x128xf32>
    %194 = arith.mulf %193, %192 : vector<8x128xf32>
    %195 = math.tanh %194 : vector<8x128xf32>
    %cst_77 = arith.constant 1.000000e+00 : f32
    %196 = vector.broadcast %cst_77 : f32 to vector<8x128xf32>
    %197 = arith.addf %196, %195 : vector<8x128xf32>
    %198 = arith.mulf %187, %197 : vector<8x128xf32>
    %199 = arith.truncf %198 : vector<8x128xf32> to vector<8x128xbf16>
    %c1_78 = arith.constant 1 : index
    %c0_79 = arith.constant 0 : index
    %c0_80 = arith.constant 0 : index
    %200 = vector.load %arg8[%c1_78, %c0_79, %c0_80] : memref<3x128x128xbf16, #tpu.memory_space<vmem>>, vector<1x128x128xbf16>
    %201 = vector.shape_cast %200 : vector<1x128x128xbf16> to vector<128x128xbf16>
    %cst_81 = arith.constant dense<0.000000e+00> : vector<8x128xf32>
    %202 = tpu.matmul %199, %201, %cst_81 {dimension_numbers = #tpu.dot_dimension_numbers<[1], [0], [0], [1], [0, 0, 1, 1], [], []>} : vector<8x128xbf16>, vector<128x128xbf16>, vector<8x128xf32> -> vector<8x128xf32>
    %c1_82 = arith.constant 1 : index
    %c0_83 = arith.constant 0 : index
    %203 = vector.load %arg9[%c1_82, %c0_83] : memref<3x128xf32, #tpu.memory_space<vmem>>, vector<1x128xf32>
    %204 = vector.shape_cast %203 : vector<1x128xf32> to vector<128xf32>
    %205 = vector.shape_cast %204 : vector<128xf32> to vector<1x128xf32>
    %206 = vector.broadcast %205 : vector<1x128xf32> to vector<8x128xf32>
    %207 = arith.addf %202, %206 : vector<8x128xf32>
    %cst_84 = arith.constant dense<0.000000e+00> : vector<8xf32>
    %208 = vector.multi_reduction <add>, %207, %cst_84 [1] : vector<8x128xf32> to vector<8xf32>
    %209 = vector.shape_cast %208 : vector<8xf32> to vector<8x1xf32>
    %cst_85 = arith.constant 1.280000e+02 : f32
    %210 = vector.broadcast %cst_85 : f32 to vector<8x1xf32>
    %211 = arith.divf %209, %210 : vector<8x1xf32>
    %212 = arith.mulf %207, %207 : vector<8x128xf32>
    %cst_86 = arith.constant dense<0.000000e+00> : vector<8xf32>
    %213 = vector.multi_reduction <add>, %212, %cst_86 [1] : vector<8x128xf32> to vector<8xf32>
    %214 = vector.shape_cast %213 : vector<8xf32> to vector<8x1xf32>
    %cst_87 = arith.constant 1.280000e+02 : f32
    %215 = vector.broadcast %cst_87 : f32 to vector<8x1xf32>
    %216 = arith.divf %214, %215 : vector<8x1xf32>
    %217 = arith.mulf %211, %211 : vector<8x1xf32>
    %218 = arith.subf %216, %217 : vector<8x1xf32>
    %219 = vector.broadcast %211 : vector<8x1xf32> to vector<8x128xf32>
    %220 = arith.subf %207, %219 : vector<8x128xf32>
    %cst_88 = arith.constant 9.99999974E-6 : f32
    %221 = vector.broadcast %cst_88 : f32 to vector<8x1xf32>
    %222 = arith.addf %218, %221 : vector<8x1xf32>
    %223 = math.rsqrt %222 : vector<8x1xf32>
    %224 = vector.broadcast %223 : vector<8x1xf32> to vector<8x128xf32>
    %225 = arith.mulf %220, %224 : vector<8x128xf32>
    %c1_89 = arith.constant 1 : index
    %c0_90 = arith.constant 0 : index
    %226 = vector.load %arg10[%c1_89, %c0_90] : memref<3x128xf32, #tpu.memory_space<vmem>>, vector<1x128xf32>
    %227 = vector.shape_cast %226 : vector<1x128xf32> to vector<128xf32>
    %228 = vector.shape_cast %227 : vector<128xf32> to vector<1x128xf32>
    %229 = vector.broadcast %228 : vector<1x128xf32> to vector<8x128xf32>
    %230 = arith.mulf %225, %229 : vector<8x128xf32>
    %c1_91 = arith.constant 1 : index
    %c0_92 = arith.constant 0 : index
    %231 = vector.load %arg11[%c1_91, %c0_92] : memref<3x128xf32, #tpu.memory_space<vmem>>, vector<1x128xf32>
    %232 = vector.shape_cast %231 : vector<1x128xf32> to vector<128xf32>
    %233 = vector.shape_cast %232 : vector<128xf32> to vector<1x128xf32>
    %234 = vector.broadcast %233 : vector<1x128xf32> to vector<8x128xf32>
    %235 = arith.addf %230, %234 : vector<8x128xf32>
    %cst_93 = arith.constant 5.000000e-01 : f32
    %236 = vector.broadcast %cst_93 : f32 to vector<8x128xf32>
    %237 = arith.mulf %236, %235 : vector<8x128xf32>
    %cst_94 = arith.constant 4.471500e-02 : f32
    %238 = vector.broadcast %cst_94 : f32 to vector<8x128xf32>
    %239 = arith.mulf %238, %235 : vector<8x128xf32>
    %240 = arith.mulf %239, %235 : vector<8x128xf32>
    %241 = arith.mulf %240, %235 : vector<8x128xf32>
    %242 = arith.addf %235, %241 : vector<8x128xf32>
    %cst_95 = arith.constant 0.797884583 : f32
    %243 = vector.broadcast %cst_95 : f32 to vector<8x128xf32>
    %244 = arith.mulf %243, %242 : vector<8x128xf32>
    %245 = math.tanh %244 : vector<8x128xf32>
    %cst_96 = arith.constant 1.000000e+00 : f32
    %246 = vector.broadcast %cst_96 : f32 to vector<8x128xf32>
    %247 = arith.addf %246, %245 : vector<8x128xf32>
    %248 = arith.mulf %237, %247 : vector<8x128xf32>
    %249 = arith.addf %129, %248 : vector<8x128xf32>
    %250 = vector.broadcast %1 : vector<8x1xf32> to vector<8x128xf32>
    %251 = arith.mulf %249, %250 : vector<8x128xf32>
    %c16_97 = arith.constant 16 : index
    %c0_98 = arith.constant 0 : index
    %252 = vector.load %arg13[%c16_97, %c0_98] : memref<40x128xf32, #tpu.memory_space<vmem>>, vector<8x128xf32>
    tpu.vector_store %arg13[%c16_97, %c0_98], %251 {strides = array<i32>} : memref<40x128xf32, #tpu.memory_space<vmem>>, vector<8x128xf32>,
    %c7 = arith.constant 7 : index
    %c0_99 = arith.constant 0 : index
    %253 = vector.load %arg13[%c7, %c0_99] : memref<40x128xf32, #tpu.memory_space<vmem>>, vector<8x128xf32>
    %c6 = arith.constant 6 : index
    %c0_100 = arith.constant 0 : index
    %254 = vector.load %arg4[%c6, %c0_100] : memref<9x128xf32, #tpu.memory_space<vmem>>, vector<1x128xf32>
    %255 = vector.shape_cast %254 : vector<1x128xf32> to vector<128xf32>
    %256 = vector.shape_cast %255 : vector<128xf32> to vector<1x128xf32>
    %257 = vector.broadcast %256 : vector<1x128xf32> to vector<8x128xf32>
    %258 = arith.mulf %253, %257 : vector<8x128xf32>
    %c16_101 = arith.constant 16 : index
    %c0_102 = arith.constant 0 : index
    %259 = vector.load %arg13[%c16_101, %c0_102] : memref<40x128xf32, #tpu.memory_space<vmem>>, vector<8x128xf32>
    %c7_103 = arith.constant 7 : index
    %c0_104 = arith.constant 0 : index
    %260 = vector.load %arg4[%c7_103, %c0_104] : memref<9x128xf32, #tpu.memory_space<vmem>>, vector<1x128xf32>
    %261 = vector.shape_cast %260 : vector<1x128xf32> to vector<128xf32>
    %262 = vector.shape_cast %261 : vector<128xf32> to vector<1x128xf32>
    %263 = vector.broadcast %262 : vector<1x128xf32> to vector<8x128xf32>
    %264 = arith.mulf %259, %263 : vector<8x128xf32>
    %265 = arith.addf %258, %264 : vector<8x128xf32>
    %c25 = arith.constant 25 : index
    %c0_105 = arith.constant 0 : index
    %266 = vector.load %arg13[%c25, %c0_105] : memref<40x128xf32, #tpu.memory_space<vmem>>, vector<8x128xf32>
    %c8 = arith.constant 8 : index
    %c0_106 = arith.constant 0 : index
    %267 = vector.load %arg4[%c8, %c0_106] : memref<9x128xf32, #tpu.memory_space<vmem>>, vector<1x128xf32>
    %268 = vector.shape_cast %267 : vector<1x128xf32> to vector<128xf32>
    %269 = vector.shape_cast %268 : vector<128xf32> to vector<1x128xf32>
    %270 = vector.broadcast %269 : vector<1x128xf32> to vector<8x128xf32>
    %271 = arith.mulf %266, %270 : vector<8x128xf32>
    %272 = arith.addf %265, %271 : vector<8x128xf32>
    %c2_107 = arith.constant 2 : index
    %c0_108 = arith.constant 0 : index
    %273 = vector.load %arg5[%c2_107, %c0_108] : memref<3x128xf32, #tpu.memory_space<vmem>>, vector<1x128xf32>
    %274 = vector.shape_cast %273 : vector<1x128xf32> to vector<128xf32>
    %275 = vector.shape_cast %274 : vector<128xf32> to vector<1x128xf32>
    %276 = vector.broadcast %275 : vector<1x128xf32> to vector<8x128xf32>
    %277 = arith.addf %272, %276 : vector<8x128xf32>
    %cst_109 = arith.constant dense<0.000000e+00> : vector<8xf32>
    %278 = vector.multi_reduction <add>, %277, %cst_109 [1] : vector<8x128xf32> to vector<8xf32>
    %279 = vector.shape_cast %278 : vector<8xf32> to vector<8x1xf32>
    %cst_110 = arith.constant 1.280000e+02 : f32
    %280 = vector.broadcast %cst_110 : f32 to vector<8x1xf32>
    %281 = arith.divf %279, %280 : vector<8x1xf32>
    %282 = arith.mulf %277, %277 : vector<8x128xf32>
    %cst_111 = arith.constant dense<0.000000e+00> : vector<8xf32>
    %283 = vector.multi_reduction <add>, %282, %cst_111 [1] : vector<8x128xf32> to vector<8xf32>
    %284 = vector.shape_cast %283 : vector<8xf32> to vector<8x1xf32>
    %cst_112 = arith.constant 1.280000e+02 : f32
    %285 = vector.broadcast %cst_112 : f32 to vector<8x1xf32>
    %286 = arith.divf %284, %285 : vector<8x1xf32>
    %287 = arith.mulf %281, %281 : vector<8x1xf32>
    %288 = arith.subf %286, %287 : vector<8x1xf32>
    %289 = vector.broadcast %281 : vector<8x1xf32> to vector<8x128xf32>
    %290 = arith.subf %277, %289 : vector<8x128xf32>
    %cst_113 = arith.constant 9.99999974E-6 : f32
    %291 = vector.broadcast %cst_113 : f32 to vector<8x1xf32>
    %292 = arith.addf %288, %291 : vector<8x1xf32>
    %293 = math.rsqrt %292 : vector<8x1xf32>
    %294 = vector.broadcast %293 : vector<8x1xf32> to vector<8x128xf32>
    %295 = arith.mulf %290, %294 : vector<8x128xf32>
    %c2_114 = arith.constant 2 : index
    %c0_115 = arith.constant 0 : index
    %296 = vector.load %arg6[%c2_114, %c0_115] : memref<3x128xf32, #tpu.memory_space<vmem>>, vector<1x128xf32>
    %297 = vector.shape_cast %296 : vector<1x128xf32> to vector<128xf32>
    %298 = vector.shape_cast %297 : vector<128xf32> to vector<1x128xf32>
    %299 = vector.broadcast %298 : vector<1x128xf32> to vector<8x128xf32>
    %300 = arith.mulf %295, %299 : vector<8x128xf32>
    %c2_116 = arith.constant 2 : index
    %c0_117 = arith.constant 0 : index
    %301 = vector.load %arg7[%c2_116, %c0_117] : memref<3x128xf32, #tpu.memory_space<vmem>>, vector<1x128xf32>
    %302 = vector.shape_cast %301 : vector<1x128xf32> to vector<128xf32>
    %303 = vector.shape_cast %302 : vector<128xf32> to vector<1x128xf32>
    %304 = vector.broadcast %303 : vector<1x128xf32> to vector<8x128xf32>
    %305 = arith.addf %300, %304 : vector<8x128xf32>
    %cst_118 = arith.constant 5.000000e-01 : f32
    %306 = vector.broadcast %cst_118 : f32 to vector<8x128xf32>
    %307 = arith.mulf %306, %305 : vector<8x128xf32>
    %cst_119 = arith.constant 4.471500e-02 : f32
    %308 = vector.broadcast %cst_119 : f32 to vector<8x128xf32>
    %309 = arith.mulf %308, %305 : vector<8x128xf32>
    %310 = arith.mulf %309, %305 : vector<8x128xf32>
    %311 = arith.mulf %310, %305 : vector<8x128xf32>
    %312 = arith.addf %305, %311 : vector<8x128xf32>
    %cst_120 = arith.constant 0.797884583 : f32
    %313 = vector.broadcast %cst_120 : f32 to vector<8x128xf32>
    %314 = arith.mulf %313, %312 : vector<8x128xf32>
    %315 = math.tanh %314 : vector<8x128xf32>
    %cst_121 = arith.constant 1.000000e+00 : f32
    %316 = vector.broadcast %cst_121 : f32 to vector<8x128xf32>
    %317 = arith.addf %316, %315 : vector<8x128xf32>
    %318 = arith.mulf %307, %317 : vector<8x128xf32>
    %319 = arith.truncf %318 : vector<8x128xf32> to vector<8x128xbf16>
    %c2_122 = arith.constant 2 : index
    %c0_123 = arith.constant 0 : index
    %c0_124 = arith.constant 0 : index
    %320 = vector.load %arg8[%c2_122, %c0_123, %c0_124] : memref<3x128x128xbf16, #tpu.memory_space<vmem>>, vector<1x128x128xbf16>
    %321 = vector.shape_cast %320 : vector<1x128x128xbf16> to vector<128x128xbf16>
    %cst_125 = arith.constant dense<0.000000e+00> : vector<8x128xf32>
    %322 = tpu.matmul %319, %321, %cst_125 {dimension_numbers = #tpu.dot_dimension_numbers<[1], [0], [0], [1], [0, 0, 1, 1], [], []>} : vector<8x128xbf16>, vector<128x128xbf16>, vector<8x128xf32> -> vector<8x128xf32>
    %c2_126 = arith.constant 2 : index
    %c0_127 = arith.constant 0 : index
    %323 = vector.load %arg9[%c2_126, %c0_127] : memref<3x128xf32, #tpu.memory_space<vmem>>, vector<1x128xf32>
    %324 = vector.shape_cast %323 : vector<1x128xf32> to vector<128xf32>
    %325 = vector.shape_cast %324 : vector<128xf32> to vector<1x128xf32>
    %326 = vector.broadcast %325 : vector<1x128xf32> to vector<8x128xf32>
    %327 = arith.addf %322, %326 : vector<8x128xf32>
    %cst_128 = arith.constant dense<0.000000e+00> : vector<8xf32>
    %328 = vector.multi_reduction <add>, %327, %cst_128 [1] : vector<8x128xf32> to vector<8xf32>
    %329 = vector.shape_cast %328 : vector<8xf32> to vector<8x1xf32>
    %cst_129 = arith.constant 1.280000e+02 : f32
    %330 = vector.broadcast %cst_129 : f32 to vector<8x1xf32>
    %331 = arith.divf %329, %330 : vector<8x1xf32>
    %332 = arith.mulf %327, %327 : vector<8x128xf32>
    %cst_130 = arith.constant dense<0.000000e+00> : vector<8xf32>
    %333 = vector.multi_reduction <add>, %332, %cst_130 [1] : vector<8x128xf32> to vector<8xf32>
    %334 = vector.shape_cast %333 : vector<8xf32> to vector<8x1xf32>
    %cst_131 = arith.constant 1.280000e+02 : f32
    %335 = vector.broadcast %cst_131 : f32 to vector<8x1xf32>
    %336 = arith.divf %334, %335 : vector<8x1xf32>
    %337 = arith.mulf %331, %331 : vector<8x1xf32>
    %338 = arith.subf %336, %337 : vector<8x1xf32>
    %339 = vector.broadcast %331 : vector<8x1xf32> to vector<8x128xf32>
    %340 = arith.subf %327, %339 : vector<8x128xf32>
    %cst_132 = arith.constant 9.99999974E-6 : f32
    %341 = vector.broadcast %cst_132 : f32 to vector<8x1xf32>
    %342 = arith.addf %338, %341 : vector<8x1xf32>
    %343 = math.rsqrt %342 : vector<8x1xf32>
    %344 = vector.broadcast %343 : vector<8x1xf32> to vector<8x128xf32>
    %345 = arith.mulf %340, %344 : vector<8x128xf32>
    %c2_133 = arith.constant 2 : index
    %c0_134 = arith.constant 0 : index
    %346 = vector.load %arg10[%c2_133, %c0_134] : memref<3x128xf32, #tpu.memory_space<vmem>>, vector<1x128xf32>
    %347 = vector.shape_cast %346 : vector<1x128xf32> to vector<128xf32>
    %348 = vector.shape_cast %347 : vector<128xf32> to vector<1x128xf32>
    %349 = vector.broadcast %348 : vector<1x128xf32> to vector<8x128xf32>
    %350 = arith.mulf %345, %349 : vector<8x128xf32>
    %c2_135 = arith.constant 2 : index
    %c0_136 = arith.constant 0 : index
    %351 = vector.load %arg11[%c2_135, %c0_136] : memref<3x128xf32, #tpu.memory_space<vmem>>, vector<1x128xf32>
    %352 = vector.shape_cast %351 : vector<1x128xf32> to vector<128xf32>
    %353 = vector.shape_cast %352 : vector<128xf32> to vector<1x128xf32>
    %354 = vector.broadcast %353 : vector<1x128xf32> to vector<8x128xf32>
    %355 = arith.addf %350, %354 : vector<8x128xf32>
    %cst_137 = arith.constant 5.000000e-01 : f32
    %356 = vector.broadcast %cst_137 : f32 to vector<8x128xf32>
    %357 = arith.mulf %356, %355 : vector<8x128xf32>
    %cst_138 = arith.constant 4.471500e-02 : f32
    %358 = vector.broadcast %cst_138 : f32 to vector<8x128xf32>
    %359 = arith.mulf %358, %355 : vector<8x128xf32>
    %360 = arith.mulf %359, %355 : vector<8x128xf32>
    %361 = arith.mulf %360, %355 : vector<8x128xf32>
    %362 = arith.addf %355, %361 : vector<8x128xf32>
    %cst_139 = arith.constant 0.797884583 : f32
    %363 = vector.broadcast %cst_139 : f32 to vector<8x128xf32>
    %364 = arith.mulf %363, %362 : vector<8x128xf32>
    %365 = math.tanh %364 : vector<8x128xf32>
    %cst_140 = arith.constant 1.000000e+00 : f32
    %366 = vector.broadcast %cst_140 : f32 to vector<8x128xf32>
    %367 = arith.addf %366, %365 : vector<8x128xf32>
    %368 = arith.mulf %357, %367 : vector<8x128xf32>
    %369 = arith.addf %249, %368 : vector<8x128xf32>
    %370 = vector.broadcast %1 : vector<8x1xf32> to vector<8x128xf32>
    %371 = arith.mulf %369, %370 : vector<8x128xf32>
    %372 = arith.truncf %371 : vector<8x128xf32> to vector<8x128xbf16>
    %c0_141 = arith.constant 0 : index
    %c0_142 = arith.constant 0 : index
    %c0_143 = arith.constant 0 : index
    %373 = vector.load %arg12[%c0_141, %c0_142, %c0_143] : memref<1x8x128xbf16, #tpu.memory_space<vmem>>, vector<1x8x128xbf16>
    %374 = vector.shape_cast %373 : vector<1x8x128xbf16> to vector<8x128xbf16>
    %375 = vector.shape_cast %372 : vector<8x128xbf16> to vector<1x8x128xbf16>
    tpu.vector_store %arg12[%c0_141, %c0_142, %c0_143], %375 {strides = array<i32>} : memref<1x8x128xbf16, #tpu.memory_space<vmem>>, vector<1x8x128xbf16>,
    return
  }
  func.func @transform_0(%arg0: i32) -> (i32, i32, i32) {
    %c0_i32 = arith.constant 0 : i32
    %c0_i32_0 = arith.constant 0 : i32
    %c0_i32_1 = arith.constant 0 : i32
    return %arg0, %c0_i32, %c0_i32_0 : i32, i32, i32
  }
  func.func @transform_1(%arg0: i32) -> (i32, i32, i32) {
    %c0_i32 = arith.constant 0 : i32
    %c0_i32_0 = arith.constant 0 : i32
    %c0_i32_1 = arith.constant 0 : i32
    return %arg0, %c0_i32, %c0_i32_0 : i32, i32, i32
  }
  func.func @transform_2(%arg0: i32) -> (i32, i32, i32) {
    %c0_i32 = arith.constant 0 : i32
    %c0_i32_0 = arith.constant 0 : i32
    %c0_i32_1 = arith.constant 0 : i32
    return %arg0, %c0_i32, %c0_i32_0 : i32, i32, i32
  }
  func.func @transform_3(%arg0: i32) -> (i32, i32) {
    %c0_i32 = arith.constant 0 : i32
    %c0_i32_0 = arith.constant 0 : i32
    %c0_i32_1 = arith.constant 0 : i32
    return %c0_i32, %c0_i32_0 : i32, i32
  }
  func.func @transform_4(%arg0: i32) -> (i32, i32) {
    %c0_i32 = arith.constant 0 : i32
    %c0_i32_0 = arith.constant 0 : i32
    %c0_i32_1 = arith.constant 0 : i32
    return %c0_i32, %c0_i32_0 : i32, i32
  }
  func.func @transform_5(%arg0: i32) -> (i32, i32) {
    %c0_i32 = arith.constant 0 : i32
    %c0_i32_0 = arith.constant 0 : i32
    %c0_i32_1 = arith.constant 0 : i32
    return %c0_i32, %c0_i32_0 : i32, i32
  }
  func.func @transform_6(%arg0: i32) -> (i32, i32) {
    %c0_i32 = arith.constant 0 : i32
    %c0_i32_0 = arith.constant 0 : i32
    %c0_i32_1 = arith.constant 0 : i32
    return %c0_i32, %c0_i32_0 : i32, i32
  }
  func.func @transform_7(%arg0: i32) -> (i32, i32, i32) {
    %c0_i32 = arith.constant 0 : i32
    %c0_i32_0 = arith.constant 0 : i32
    %c0_i32_1 = arith.constant 0 : i32
    %c0_i32_2 = arith.constant 0 : i32
    return %c0_i32, %c0_i32_0, %c0_i32_1 : i32, i32, i32
  }
  func.func @transform_8(%arg0: i32) -> (i32, i32) {
    %c0_i32 = arith.constant 0 : i32
    %c0_i32_0 = arith.constant 0 : i32
    %c0_i32_1 = arith.constant 0 : i32
    return %c0_i32, %c0_i32_0 : i32, i32
  }
  func.func @transform_9(%arg0: i32) -> (i32, i32) {
    %c0_i32 = arith.constant 0 : i32
    %c0_i32_0 = arith.constant 0 : i32
    %c0_i32_1 = arith.constant 0 : i32
    return %c0_i32, %c0_i32_0 : i32, i32
  }
  func.func @transform_10(%arg0: i32) -> (i32, i32) {
    %c0_i32 = arith.constant 0 : i32
    %c0_i32_0 = arith.constant 0 : i32
    %c0_i32_1 = arith.constant 0 : i32
    return %c0_i32, %c0_i32_0 : i32, i32
  }
  func.func @transform_11(%arg0: i32) -> (i32, i32, i32) {
    %c0_i32 = arith.constant 0 : i32
    %c0_i32_0 = arith.constant 0 : i32
    %c0_i32_1 = arith.constant 0 : i32
    return %arg0, %c0_i32, %c0_i32_0 : i32, i32, i32
  }
}

</mosaic_0001>

<llo_original>
// kernel: _lambda_.21
$region0: #{_lambda_.21}
  #allocation0 [shape = 'u32[]', space=smem, size = 0x4, offset = 0x4, fixed_abs, tag = 'smem constant byte address 0x4 - core index']
  #allocation1 [shape = 'u32[144,128]{1,0:T(1,128)}', space=vmem, size = 0x12000, scoped, tag = 'internal scratch']
  %s0 = inlined_call_operand.vmem [shape: f32[16,128], index: 0, kind: input, shape index: {}]
  %s1 = inlined_call_operand.vmem [shape: bf16[128,128], index: 1, kind: input, shape index: {}]
  %s2 = inlined_call_operand.vmem [shape: f32[1,128], index: 2, kind: input, shape index: {}]
  %s3 = inlined_call_operand.vmem [shape: bf16[16,128], index: 3, kind: output, shape index: {}]
  %s4 = sld [smem:[#allocation0]]
  $region45: #{_lambda_.21} parent=0
    _
  %s6 = ssub.s32 1, %s4
  %s7 = scalar_select 0, %s6, %s4
  loop: start=0, step=1, limit=4
  $region2: #{_lambda_.21} parent=0 // loop_pre_header
    _
  $region3: #{_lambda_.21} parent=0 // loop_header
    %s9 = sphi 0, %s13
    %p10 = scmp.ge.s32.totalorder %s9, 4
    %s19 = sphi 0, %s21
    %s22 = sphi 0, %s19
    %s23 = sphi 0, %s22
    %s39 = sphi 0, %s23
    %s43 = sphi 0, %s43
    %s45 = sphi 0, %s43
    %s46 = sphi 0, %s45
    %s60 = sphi 0, %s46
    %s64 = sphi 0, %s64
    %s66 = sphi 0, %s64
    %s67 = sphi 0, %s66
    %s81 = sphi 0, %s67
    %s87 = sphi 0, %s89
    %s90 = sphi 0, %s87
    %s91 = sphi 0, %s90
    %s107 = sphi 0, %s91
  $region4: #{_lambda_.21} parent=0 // loop_header_branch
    %12 = sbr.rel (%p10) target = $region8
  $region5: #{_lambda_.21} parent=0 // loop_body
    %s14 = ssub.s32 %s9, 1
    %s15 = ssub.s32 %s9, 2
    %s16 = sadd.s32 %s9, 1
    %s17 = ssub.s32 %s9, %s16
    %p18 = scmp.eq.s32.totalorder %s17, 0
    %s20 = sadd.s32 %s19, 1
    %s21 = scalar_select %p18, %s19, %s20
    %p24 = pneg %p18
    %p25 = scmp.eq.s32.totalorder %s9, 1
    %p26 = por %p24, %p25
    %p27 = scmp.ne.s32.totalorder %s19, %s22
    %p28 = scmp.eq.s32.totalorder %s9, 0
    %p29 = por %p27, %p28
    %p30 = scmp.ne.s32.totalorder %s19, %s22
    %p31 = scmp.eq.s32.totalorder %s14, 1
    %p32 = por %p30, %p31
    %p33 = scmp.ne.s32.totalorder %s22, %s23
    %p34 = scmp.eq.s32.totalorder %s14, 0
    %p35 = por %p33, %p34
    %p36 = scmp.ne.s32.totalorder %s22, %s23
    %p37 = scmp.eq.s32.totalorder %s15, 1
    %p38 = por %p36, %p37
    %p40 = scmp.ne.s32.totalorder %s23, %s39
    %p41 = scmp.eq.s32.totalorder %s15, 0
    %p42 = por %p40, %p41
    %s44 = sadd.s32 %s43, 1
    %p47 = scmp.eq.s32.totalorder %s9, 1
    %p48 = scmp.ne.s32.totalorder %s43, %s45
    %p49 = scmp.eq.s32.totalorder %s9, 0
    %p50 = por %p48, %p49
    %p51 = scmp.ne.s32.totalorder %s43, %s45
    %p52 = scmp.eq.s32.totalorder %s14, 1
    %p53 = por %p51, %p52
    %p54 = scmp.ne.s32.totalorder %s45, %s46
    %p55 = scmp.eq.s32.totalorder %s14, 0
    %p56 = por %p54, %p55
    %p57 = scmp.ne.s32.totalorder %s45, %s46
    %p58 = scmp.eq.s32.totalorder %s15, 1
    %p59 = por %p57, %p58
    %p61 = scmp.ne.s32.totalorder %s46, %s60
    %p62 = scmp.eq.s32.totalorder %s15, 0
    %p63 = por %p61, %p62
    %s65 = sadd.s32 %s64, 1
    %p68 = scmp.eq.s32.totalorder %s9, 1
    %p69 = scmp.ne.s32.totalorder %s64, %s66
    %p70 = scmp.eq.s32.totalorder %s9, 0
    %p71 = por %p69, %p70
    %p72 = scmp.ne.s32.totalorder %s64, %s66
    %p73 = scmp.eq.s32.totalorder %s14, 1
    %p74 = por %p72, %p73
    %p75 = scmp.ne.s32.totalorder %s66, %s67
    %p76 = scmp.eq.s32.totalorder %s14, 0
    %p77 = por %p75, %p76
    %p78 = scmp.ne.s32.totalorder %s66, %s67
    %p79 = scmp.eq.s32.totalorder %s15, 1
    %p80 = por %p78, %p79
    %p82 = scmp.ne.s32.totalorder %s67, %s81
    %p83 = scmp.eq.s32.totalorder %s15, 0
    %p84 = por %p82, %p83
    %s85 = ssub.s32 %s9, %s16
    %p86 = scmp.eq.s32.totalorder %s85, 0
    %s88 = sadd.s32 %s87, 1
    %s89 = scalar_select %p86, %s87, %s88
    %p92 = pneg %p86
    %p93 = scmp.eq.s32.totalorder %s9, 1
    %p94 = por %p92, %p93
    %p95 = scmp.ne.s32.totalorder %s87, %s90
    %p96 = scmp.eq.s32.totalorder %s9, 0
    %p97 = por %p95, %p96
    %p98 = scmp.ne.s32.totalorder %s87, %s90
    %p99 = scmp.eq.s32.totalorder %s14, 1
    %p100 = por %p98, %p99
    %p101 = scmp.ne.s32.totalorder %s90, %s91
    %p102 = scmp.eq.s32.totalorder %s14, 0
    %p103 = por %p101, %p102
    %p104 = scmp.ne.s32.totalorder %s90, %s91
    %p105 = scmp.eq.s32.totalorder %s15, 1
    %p106 = por %p104, %p105
    %p108 = scmp.ne.s32.totalorder %s91, %s107
    %p109 = scmp.eq.s32.totalorder %s15, 0
    %p110 = por %p108, %p109
    %p111 = scmp.le.s32.totalorder 1, %s9
    %p112 = scmp.lt.s32.totalorder %s9, 3
    %p113 = pnand %p111, %p112
    %p114 = pneg %p113
    // Predicated region
    $region9: #{_lambda_.21} parent=5 // pred_check
      _
    $region10: #{_lambda_.21} parent=5 // pred_check_branch
      %116 = sbr.rel (%p113) target = $region12
    $region11: #{_lambda_.21} parent=5 // pred_region
      %s117 = ssub.s32 %s9, 1
      // Predicated region
      $region13: #{_lambda_.21} parent=11 // pred_check
        %p118 = pneg %p56
      $region14: #{_lambda_.21} parent=11 // pred_check_branch
        %120 = sbr.rel (%p118) target = $region16
      $region15: #{_lambda_.21} parent=11 // pred_region
        _
      $region16: #{_lambda_.21} parent=11 // pred_fallthru
        _
      // Predicated region
      $region17: #{_lambda_.21} parent=11 // pred_check
        %p121 = pneg %p77
      $region18: #{_lambda_.21} parent=11 // pred_check_branch
        %123 = sbr.rel (%p121) target = $region20
      $region19: #{_lambda_.21} parent=11 // pred_region
        _
      $region20: #{_lambda_.21} parent=11 // pred_fallthru
        _
    $region12: #{_lambda_.21} parent=5 // pred_fallthru
      _
    %p124 = scmp.lt.s32.totalorder %s9, 2
    // Predicated region
    $region21: #{_lambda_.21} parent=5 // pred_check
      %p125 = pneg %p124
    $region22: #{_lambda_.21} parent=5 // pred_check_branch
      %127 = sbr.rel (%p125) target = $region24
    $region23: #{_lambda_.21} parent=5 // pred_region
      // Predicated region
      $region25: #{_lambda_.21} parent=23 // pred_check
        %p128 = pneg %p29
      $region26: #{_lambda_.21} parent=23 // pred_check_branch
        %130 = sbr.rel (%p128) target = $region28
      $region27: #{_lambda_.21} parent=23 // pred_region
        %p131 = scmp.lt.s32.totalorder %s9, 1
        %s132 = scalar_select %p131, %s9, 1
        %s133 = smul.addr %s132, 8
        %s134 = scalar_lea.vmem %s0, %s133
      $region28: #{_lambda_.21} parent=23 // pred_fallthru
        _
    $region24: #{_lambda_.21} parent=5 // pred_fallthru
      _
    %p135 = scmp.le.s32.totalorder 1, %s9
    %p136 = scmp.lt.s32.totalorder %s9, 3
    %p137 = pnand %p135, %p136
    %p138 = pneg %p137
    // Predicated region
    $region29: #{_lambda_.21} parent=5 // pred_check
      _
    $region30: #{_lambda_.21} parent=5 // pred_check_branch
      %140 = sbr.rel (%p137) target = $region32
    $region31: #{_lambda_.21} parent=5 // pred_region
      %s141 = ssub.s32 %s9, 1
      %p142 = scmp.lt.s32.totalorder %s14, 1
      %s143 = scalar_select %p142, %s14, 1
      %s144 = smul.addr %s143, 8
      %s145 = scalar_lea.vmem %s0, %s144
      %p146 = pneg %p35
      %p147 = pneg %p32
      %p148 = pneg %p56
      %p149 = pneg %p53
      %p150 = pneg %p77
      %p151 = pneg %p74
      %p152 = pneg %p103
      %p153 = pneg %p100
      %p154 = scmp.lt.s32.totalorder %s14, 1
      %s155 = scalar_select %p154, %s14, 1
      %s156 = smul.addr %s155, 4
      %s157 = scalar_lea.vmem %s3, %s156
      %p158 = scmp.lt.s32.totalorder %s14, 1
      %s159 = scalar_select %p158, %s14, 1
      %s160 = smul.addr %s159, 8
      %s161 = scalar_lea.vmem %s0, %s160
      %p162 = scmp.lt.s32.totalorder %s14, 1
      %s163 = scalar_select %p162, %s14, 1
      %s164 = smul.addr %s163, 4
      %s165 = scalar_lea.vmem %s3, %s164
      %v167 = vld [vmem:[%s161] sm:$0xff]
      %v168 = vpack.c.bf16 %v167, %v167
      %v169 = vld [vmem:[%s1] sm:$0xf]
      %v170 = vld [vmem:[%s1 + $0x4] sm:$0xf]
      %v171 = vld [vmem:[%s1 + $0x8] sm:$0xf]
      %v172 = vld [vmem:[%s1 + $0xc] sm:$0xf]
      %v173 = vld [vmem:[%s1 + $0x10] sm:$0xf]
      %v174 = vld [vmem:[%s1 + $0x14] sm:$0xf]
      %v175 = vld [vmem:[%s1 + $0x18] sm:$0xf]
      %v176 = vld [vmem:[%s1 + $0x1c] sm:$0xf]
      %v177 = vld [vmem:[%s1 + $0x20] sm:$0xf]
      %v178 = vld [vmem:[%s1 + $0x24] sm:$0xf]
      %v179 = vld [vmem:[%s1 + $0x28] sm:$0xf]
      %v180 = vld [vmem:[%s1 + $0x2c] sm:$0xf]
      %v181 = vld [vmem:[%s1 + $0x30] sm:$0xf]
      %v182 = vld [vmem:[%s1 + $0x34] sm:$0xf]
      %v183 = vld [vmem:[%s1 + $0x38] sm:$0xf]
      %v184 = vld [vmem:[%s1 + $0x3c] sm:$0xf]
      %v185 = vld [vmem:[%s2] sm:$0x1]
      %v187 = vlaneseq
      %v188 = vshrl.u32 %v187, 7
      %v189 = vsub.s32 0, %v188
      %v190 = vrot.slane %v185, %v189
      %v208 = vunpack.c.l.b16 %v169
      %v209 = vunpack.c.l.b16 %v170
      %v210 = vunpack.c.l.b16 %v171
      %v211 = vunpack.c.l.b16 %v172
      %v212 = vunpack.c.l.b16 %v173
      %v213 = vunpack.c.l.b16 %v174
      %v214 = vunpack.c.l.b16 %v175
      %v215 = vunpack.c.l.b16 %v176
      %v216 = vunpack.c.l.b16 %v177
      %v217 = vunpack.c.l.b16 %v178
      %v218 = vunpack.c.l.b16 %v179
      %v219 = vunpack.c.l.b16 %v180
      %v220 = vunpack.c.l.b16 %v181
      %v221 = vunpack.c.l.b16 %v182
      %v222 = vunpack.c.l.b16 %v183
      %v223 = vunpack.c.l.b16 %v184
      %v224 = vpack.c.b16 %v209, %v208
      %v225 = vpack.c.b16 %v211, %v210
      %v226 = vpack.c.b16 %v213, %v212
      %v227 = vpack.c.b16 %v215, %v214
      %v228 = vpack.c.b16 %v217, %v216
      %v229 = vpack.c.b16 %v219, %v218
      %v230 = vpack.c.b16 %v221, %v220
      %v231 = vpack.c.b16 %v223, %v222
      %240 = vmatprep.subr.bf16.mxu0 0
      %241 = vmatpush1.bf16.msra.mxu0 %v224
      %242 = vmatprep.subr.bf16.mxu0 0
      %243 = vmatpush1.bf16.msra.mxu0 %v225
      %244 = vmatprep.subr.bf16.mxu0 0
      %245 = vmatpush1.bf16.msra.mxu0 %v226
      %246 = vmatprep.subr.bf16.mxu0 0
      %247 = vmatpush1.bf16.msra.mxu0 %v227
      %248 = vmatprep.subr.bf16.mxu0 0
      %249 = vmatpush1.bf16.msra.mxu0 %v228
      %250 = vmatprep.subr.bf16.mxu0 0
      %251 = vmatpush1.bf16.msra.mxu0 %v229
      %252 = vmatprep.subr.bf16.mxu0 0
      %253 = vmatpush1.bf16.msra.mxu0 %v230
      %254 = vmatprep.subr.bf16.mxu0 0
      %255 = vmatpush1.bf16.msra.mxu0 %v231
      %256 = vmatprep.subr.bf16.mxu0 0
      %257 = vmatpush1.bf16.msra.mxu0 0
      %258 = vmatprep.subr.bf16.mxu0 0
      %259 = vmatpush1.bf16.msra.mxu0 0
      %260 = vmatprep.subr.bf16.mxu0 0
      %261 = vmatpush1.bf16.msra.mxu0 0
      %262 = vmatprep.subr.bf16.mxu0 0
      %263 = vmatpush1.bf16.msra.mxu0 0
      %264 = vmatprep.subr.bf16.mxu0 0
      %265 = vmatpush1.bf16.msra.mxu0 0
      %266 = vmatprep.subr.bf16.mxu0 0
      %267 = vmatpush1.bf16.msra.mxu0 0
      %268 = vmatprep.subr.bf16.mxu0 0
      %269 = vmatpush1.bf16.msra.mxu0 0
      %270 = vmatprep.subr.bf16.mxu0 0
      %271 = vmatpush1.bf16.msra.mxu0 0
      %272 = vmatprep.mubr.bf16.mxu0 0
      %273 = vmatmul.mubr.bf16.gmra.mrb[0].mxu0 %v168
      %v274 = vpop.f32.mrb[0].mxu0
      %v275 = vadd.f32 %v190, %v274
      %v276 = vpop.f32.mrb[0].mxu0
      %v277 = vpop.f32.mrb[0].mxu0
      %v278 = vpop.f32.mrb[0].mxu0
      %279 = vdwg.mxu0
      %v280 = vpack.c.bf16 %v275, %v275
      %281 = vst [vmem:[%s165] sm:$0xf] %v280
      %p282 = scmp.lt.s32.totalorder %s14, 1
      %s283 = scalar_select %p282, %s14, 1
      %s284 = smul.addr %s283, 4
      %s285 = scalar_lea.vmem %s3, %s284
      // Predicated region
      $region33: #{_lambda_.21} parent=31 // pred_check
        %p286 = pneg %p100
      $region34: #{_lambda_.21} parent=31 // pred_check_branch
        %288 = sbr.rel (%p286) target = $region36
      $region35: #{_lambda_.21} parent=31 // pred_region
        _
      $region36: #{_lambda_.21} parent=31 // pred_fallthru
        _
    $region32: #{_lambda_.21} parent=5 // pred_fallthru
      _
    %p289 = scmp.le.s32.totalorder 2, %s9
    // Predicated region
    $region37: #{_lambda_.21} parent=5 // pred_check
      %p290 = pneg %p289
    $region38: #{_lambda_.21} parent=5 // pred_check_branch
      %292 = sbr.rel (%p290) target = $region40
    $region39: #{_lambda_.21} parent=5 // pred_region
      %s293 = ssub.s32 %s9, 2
      // Predicated region
      $region41: #{_lambda_.21} parent=39 // pred_check
        %p294 = pneg %p106
      $region42: #{_lambda_.21} parent=39 // pred_check_branch
        %296 = sbr.rel (%p294) target = $region44
      $region43: #{_lambda_.21} parent=39 // pred_region
        %p297 = scmp.lt.s32.totalorder %s15, 1
        %s298 = scalar_select %p297, %s15, 1
        %s299 = smul.addr %s298, 4
        %s300 = scalar_lea.vmem %s3, %s299
      $region44: #{_lambda_.21} parent=39 // pred_fallthru
        _
    $region40: #{_lambda_.21} parent=5 // pred_fallthru
      _
  $region6: #{_lambda_.21} parent=0 // loop_footer
    %s13 = sadd.s32 1, %s9
  $region7: #{_lambda_.21} parent=0 // loop_footer_branch
    %8 = sbr.rel target = $region3
  $region8: #{_lambda_.21} parent=0 // loop_exit
    _

// kernel: _lambda_.23
$region0: #{_lambda_.23}
  #allocation0 [shape = 'u32[]', space=smem, size = 0x4, offset = 0x4, fixed_abs, tag = 'smem constant byte address 0x4 - core index']
  #allocation1 [shape = 'u32[144,128]{1,0:T(1,128)}', space=vmem, size = 0x12000, scoped, tag = 'internal scratch']
  %s0 = inlined_call_operand.vmem [shape: bf16[16,128], index: 0, kind: input, shape index: {}]
  %s1 = inlined_call_operand.vmem [shape: bf16[128,128], index: 1, kind: input, shape index: {}]
  %s2 = inlined_call_operand.vmem [shape: f32[1,128], index: 2, kind: input, shape index: {}]
  %s3 = inlined_call_operand.vmem [shape: f32[16,1], index: 3, kind: input, shape index: {}]
  %s4 = inlined_call_operand.vmem [shape: f32[16,128], index: 4, kind: output, shape index: {}]
  %s5 = sld [smem:[#allocation0]]
  $region49: #{_lambda_.23} parent=0
    _
  %s7 = ssub.s32 1, %s5
  %s8 = scalar_select 0, %s7, %s5
  loop: start=0, step=1, limit=4
  $region2: #{_lambda_.23} parent=0 // loop_pre_header
    _
  $region3: #{_lambda_.23} parent=0 // loop_header
    %s10 = sphi 0, %s14
    %p11 = scmp.ge.s32.totalorder %s10, 4
    %s20 = sphi 0, %s22
    %s23 = sphi 0, %s20
    %s24 = sphi 0, %s23
    %s40 = sphi 0, %s24
    %s44 = sphi 0, %s44
    %s46 = sphi 0, %s44
    %s47 = sphi 0, %s46
    %s61 = sphi 0, %s47
    %s65 = sphi 0, %s65
    %s67 = sphi 0, %s65
    %s68 = sphi 0, %s67
    %s82 = sphi 0, %s68
    %s88 = sphi 0, %s90
    %s91 = sphi 0, %s88
    %s92 = sphi 0, %s91
    %s108 = sphi 0, %s92
    %s114 = sphi 0, %s116
    %s117 = sphi 0, %s114
    %s118 = sphi 0, %s117
    %s134 = sphi 0, %s118
  $region4: #{_lambda_.23} parent=0 // loop_header_branch
    %13 = sbr.rel (%p11) target = $region8
  $region5: #{_lambda_.23} parent=0 // loop_body
    %s15 = ssub.s32 %s10, 1
    %s16 = ssub.s32 %s10, 2
    %s17 = sadd.s32 %s10, 1
    %s18 = ssub.s32 %s10, %s17
    %p19 = scmp.eq.s32.totalorder %s18, 0
    %s21 = sadd.s32 %s20, 1
    %s22 = scalar_select %p19, %s20, %s21
    %p25 = pneg %p19
    %p26 = scmp.eq.s32.totalorder %s10, 1
    %p27 = por %p25, %p26
    %p28 = scmp.ne.s32.totalorder %s20, %s23
    %p29 = scmp.eq.s32.totalorder %s10, 0
    %p30 = por %p28, %p29
    %p31 = scmp.ne.s32.totalorder %s20, %s23
    %p32 = scmp.eq.s32.totalorder %s15, 1
    %p33 = por %p31, %p32
    %p34 = scmp.ne.s32.totalorder %s23, %s24
    %p35 = scmp.eq.s32.totalorder %s15, 0
    %p36 = por %p34, %p35
    %p37 = scmp.ne.s32.totalorder %s23, %s24
    %p38 = scmp.eq.s32.totalorder %s16, 1
    %p39 = por %p37, %p38
    %p41 = scmp.ne.s32.totalorder %s24, %s40
    %p42 = scmp.eq.s32.totalorder %s16, 0
    %p43 = por %p41, %p42
    %s45 = sadd.s32 %s44, 1
    %p48 = scmp.eq.s32.totalorder %s10, 1
    %p49 = scmp.ne.s32.totalorder %s44, %s46
    %p50 = scmp.eq.s32.totalorder %s10, 0
    %p51 = por %p49, %p50
    %p52 = scmp.ne.s32.totalorder %s44, %s46
    %p53 = scmp.eq.s32.totalorder %s15, 1
    %p54 = por %p52, %p53
    %p55 = scmp.ne.s32.totalorder %s46, %s47
    %p56 = scmp.eq.s32.totalorder %s15, 0
    %p57 = por %p55, %p56
    %p58 = scmp.ne.s32.totalorder %s46, %s47
    %p59 = scmp.eq.s32.totalorder %s16, 1
    %p60 = por %p58, %p59
    %p62 = scmp.ne.s32.totalorder %s47, %s61
    %p63 = scmp.eq.s32.totalorder %s16, 0
    %p64 = por %p62, %p63
    %s66 = sadd.s32 %s65, 1
    %p69 = scmp.eq.s32.totalorder %s10, 1
    %p70 = scmp.ne.s32.totalorder %s65, %s67
    %p71 = scmp.eq.s32.totalorder %s10, 0
    %p72 = por %p70, %p71
    %p73 = scmp.ne.s32.totalorder %s65, %s67
    %p74 = scmp.eq.s32.totalorder %s15, 1
    %p75 = por %p73, %p74
    %p76 = scmp.ne.s32.totalorder %s67, %s68
    %p77 = scmp.eq.s32.totalorder %s15, 0
    %p78 = por %p76, %p77
    %p79 = scmp.ne.s32.totalorder %s67, %s68
    %p80 = scmp.eq.s32.totalorder %s16, 1
    %p81 = por %p79, %p80
    %p83 = scmp.ne.s32.totalorder %s68, %s82
    %p84 = scmp.eq.s32.totalorder %s16, 0
    %p85 = por %p83, %p84
    %s86 = ssub.s32 %s10, %s17
    %p87 = scmp.eq.s32.totalorder %s86, 0
    %s89 = sadd.s32 %s88, 1
    %s90 = scalar_select %p87, %s88, %s89
    %p93 = pneg %p87
    %p94 = scmp.eq.s32.totalorder %s10, 1
    %p95 = por %p93, %p94
    %p96 = scmp.ne.s32.totalorder %s88, %s91
    %p97 = scmp.eq.s32.totalorder %s10, 0
    %p98 = por %p96, %p97
    %p99 = scmp.ne.s32.totalorder %s88, %s91
    %p100 = scmp.eq.s32.totalorder %s15, 1
    %p101 = por %p99, %p100
    %p102 = scmp.ne.s32.totalorder %s91, %s92
    %p103 = scmp.eq.s32.totalorder %s15, 0
    %p104 = por %p102, %p103
    %p105 = scmp.ne.s32.totalorder %s91, %s92
    %p106 = scmp.eq.s32.totalorder %s16, 1
    %p107 = por %p105, %p106
    %p109 = scmp.ne.s32.totalorder %s92, %s108
    %p110 = scmp.eq.s32.totalorder %s16, 0
    %p111 = por %p109, %p110
    %s112 = ssub.s32 %s10, %s17
    %p113 = scmp.eq.s32.totalorder %s112, 0
    %s115 = sadd.s32 %s114, 1
    %s116 = scalar_select %p113, %s114, %s115
    %p119 = pneg %p113
    %p120 = scmp.eq.s32.totalorder %s10, 1
    %p121 = por %p119, %p120
    %p122 = scmp.ne.s32.totalorder %s114, %s117
    %p123 = scmp.eq.s32.totalorder %s10, 0
    %p124 = por %p122, %p123
    %p125 = scmp.ne.s32.totalorder %s114, %s117
    %p126 = scmp.eq.s32.totalorder %s15, 1
    %p127 = por %p125, %p126
    %p128 = scmp.ne.s32.totalorder %s117, %s118
    %p129 = scmp.eq.s32.totalorder %s15, 0
    %p130 = por %p128, %p129
    %p131 = scmp.ne.s32.totalorder %s117, %s118
    %p132 = scmp.eq.s32.totalorder %s16, 1
    %p133 = por %p131, %p132
    %p135 = scmp.ne.s32.totalorder %s118, %s134
    %p136 = scmp.eq.s32.totalorder %s16, 0
    %p137 = por %p135, %p136
    %p138 = scmp.le.s32.totalorder 1, %s10
    %p139 = scmp.lt.s32.totalorder %s10, 3
    %p140 = pnand %p138, %p139
    %p141 = pneg %p140
    // Predicated region
    $region9: #{_lambda_.23} parent=5 // pred_check
      _
    $region10: #{_lambda_.23} parent=5 // pred_check_branch
      %143 = sbr.rel (%p140) target = $region12
    $region11: #{_lambda_.23} parent=5 // pred_region
      %s144 = ssub.s32 %s10, 1
      // Predicated region
      $region13: #{_lambda_.23} parent=11 // pred_check
        %p145 = pneg %p57
      $region14: #{_lambda_.23} parent=11 // pred_check_branch
        %147 = sbr.rel (%p145) target = $region16
      $region15: #{_lambda_.23} parent=11 // pred_region
        _
      $region16: #{_lambda_.23} parent=11 // pred_fallthru
        _
      // Predicated region
      $region17: #{_lambda_.23} parent=11 // pred_check
        %p148 = pneg %p78
      $region18: #{_lambda_.23} parent=11 // pred_check_branch
        %150 = sbr.rel (%p148) target = $region20
      $region19: #{_lambda_.23} parent=11 // pred_region
        _
      $region20: #{_lambda_.23} parent=11 // pred_fallthru
        _
    $region12: #{_lambda_.23} parent=5 // pred_fallthru
      _
    %p151 = scmp.lt.s32.totalorder %s10, 2
    // Predicated region
    $region21: #{_lambda_.23} parent=5 // pred_check
      %p152 = pneg %p151
    $region22: #{_lambda_.23} parent=5 // pred_check_branch
      %154 = sbr.rel (%p152) target = $region24
    $region23: #{_lambda_.23} parent=5 // pred_region
      // Predicated region
      $region25: #{_lambda_.23} parent=23 // pred_check
        %p155 = pneg %p30
      $region26: #{_lambda_.23} parent=23 // pred_check_branch
        %157 = sbr.rel (%p155) target = $region28
      $region27: #{_lambda_.23} parent=23 // pred_region
        %p158 = scmp.lt.s32.totalorder %s10, 1
        %s159 = scalar_select %p158, %s10, 1
        %s160 = smul.addr %s159, 4
        %s161 = scalar_lea.vmem %s0, %s160
      $region28: #{_lambda_.23} parent=23 // pred_fallthru
        _
      // Predicated region
      $region29: #{_lambda_.23} parent=23 // pred_check
        %p162 = pneg %p98
      $region30: #{_lambda_.23} parent=23 // pred_check_branch
        %164 = sbr.rel (%p162) target = $region32
      $region31: #{_lambda_.23} parent=23 // pred_region
        %p165 = scmp.lt.s32.totalorder %s10, 1
        %s166 = scalar_select %p165, %s10, 1
        %s167 = smul.addr %s166, 8
        %s168 = scalar_lea.vmem %s3, %s167
      $region32: #{_lambda_.23} parent=23 // pred_fallthru
        _
    $region24: #{_lambda_.23} parent=5 // pred_fallthru
      _
    %p169 = scmp.le.s32.totalorder 1, %s10
    %p170 = scmp.lt.s32.totalorder %s10, 3
    %p171 = pnand %p169, %p170
    %p172 = pneg %p171
    // Predicated region
    $region33: #{_lambda_.23} parent=5 // pred_check
      _
    $region34: #{_lambda_.23} parent=5 // pred_check_branch
      %174 = sbr.rel (%p171) target = $region36
    $region35: #{_lambda_.23} parent=5 // pred_region
      %s175 = ssub.s32 %s10, 1
      %p176 = scmp.lt.s32.totalorder %s15, 1
      %s177 = scalar_select %p176, %s15, 1
      %s178 = smul.addr %s177, 4
      %s179 = scalar_lea.vmem %s0, %s178
      %p180 = pneg %p36
      %p181 = pneg %p33
      %p182 = pneg %p57
      %p183 = pneg %p54
      %p184 = pneg %p78
      %p185 = pneg %p75
      %p186 = scmp.lt.s32.totalorder %s15, 1
      %s187 = scalar_select %p186, %s15, 1
      %s188 = smul.addr %s187, 8
      %s189 = scalar_lea.vmem %s3, %s188
      %p190 = pneg %p104
      %p191 = pneg %p101
      %p192 = pneg %p130
      %p193 = pneg %p127
      %p194 = scmp.lt.s32.totalorder %s15, 1
      %s195 = scalar_select %p194, %s15, 1
      %s196 = smul.addr %s195, 8
      %s197 = scalar_lea.vmem %s4, %s196
      %p198 = scmp.lt.s32.totalorder %s15, 1
      %s199 = scalar_select %p198, %s15, 1
      %s200 = smul.addr %s199, 4
      %s201 = scalar_lea.vmem %s0, %s200
      %p202 = scmp.lt.s32.totalorder %s15, 1
      %s203 = scalar_select %p202, %s15, 1
      %s204 = smul.addr %s203, 8
      %s205 = scalar_lea.vmem %s3, %s204
      %p206 = scmp.lt.s32.totalorder %s15, 1
      %s207 = scalar_select %p206, %s15, 1
      %s208 = smul.addr %s207, 8
      %s209 = scalar_lea.vmem %s4, %s208
      %v211 = vld [vmem:[%s201] sm:$0xf]
      %v212 = vld [vmem:[%s1] sm:$0xf]
      %v213 = vld [vmem:[%s1 + $0x4] sm:$0xf]
      %v214 = vld [vmem:[%s1 + $0x8] sm:$0xf]
      %v215 = vld [vmem:[%s1 + $0xc] sm:$0xf]
      %v216 = vld [vmem:[%s1 + $0x10] sm:$0xf]
      %v217 = vld [vmem:[%s1 + $0x14] sm:$0xf]
      %v218 = vld [vmem:[%s1 + $0x18] sm:$0xf]
      %v219 = vld [vmem:[%s1 + $0x1c] sm:$0xf]
      %v220 = vld [vmem:[%s1 + $0x20] sm:$0xf]
      %v221 = vld [vmem:[%s1 + $0x24] sm:$0xf]
      %v222 = vld [vmem:[%s1 + $0x28] sm:$0xf]
      %v223 = vld [vmem:[%s1 + $0x2c] sm:$0xf]
      %v224 = vld [vmem:[%s1 + $0x30] sm:$0xf]
      %v225 = vld [vmem:[%s1 + $0x34] sm:$0xf]
      %v226 = vld [vmem:[%s1 + $0x38] sm:$0xf]
      %v227 = vld [vmem:[%s1 + $0x3c] sm:$0xf]
      %v228 = vld [vmem:[%s2] sm:$0x1]
      %v230 = vlaneseq
      %v231 = vshrl.u32 %v230, 7
      %v232 = vsub.s32 0, %v231
      %v233 = vrot.slane %v228, %v232
      %v251 = vunpack.c.l.b16 %v212
      %v252 = vunpack.c.l.b16 %v213
      %v253 = vunpack.c.l.b16 %v214
      %v254 = vunpack.c.l.b16 %v215
      %v255 = vunpack.c.l.b16 %v216
      %v256 = vunpack.c.l.b16 %v217
      %v257 = vunpack.c.l.b16 %v218
      %v258 = vunpack.c.l.b16 %v219
      %v259 = vunpack.c.l.b16 %v220
      %v260 = vunpack.c.l.b16 %v221
      %v261 = vunpack.c.l.b16 %v222
      %v262 = vunpack.c.l.b16 %v223
      %v263 = vunpack.c.l.b16 %v224
      %v264 = vunpack.c.l.b16 %v225
      %v265 = vunpack.c.l.b16 %v226
      %v266 = vunpack.c.l.b16 %v227
      %v267 = vpack.c.b16 %v252, %v251
      %v268 = vpack.c.b16 %v254, %v253
      %v269 = vpack.c.b16 %v256, %v255
      %v270 = vpack.c.b16 %v258, %v257
      %v271 = vpack.c.b16 %v260, %v259
      %v272 = vpack.c.b16 %v262, %v261
      %v273 = vpack.c.b16 %v264, %v263
      %v274 = vpack.c.b16 %v266, %v265
      %283 = vmatprep.subr.bf16.mxu0 0
      %284 = vmatpush1.bf16.msra.mxu0 %v267
      %285 = vmatprep.subr.bf16.mxu0 0
      %286 = vmatpush1.bf16.msra.mxu0 %v268
      %287 = vmatprep.subr.bf16.mxu0 0
      %288 = vmatpush1.bf16.msra.mxu0 %v269
      %289 = vmatprep.subr.bf16.mxu0 0
      %290 = vmatpush1.bf16.msra.mxu0 %v270
      %291 = vmatprep.subr.bf16.mxu0 0
      %292 = vmatpush1.bf16.msra.mxu0 %v271
      %293 = vmatprep.subr.bf16.mxu0 0
      %294 = vmatpush1.bf16.msra.mxu0 %v272
      %295 = vmatprep.subr.bf16.mxu0 0
      %296 = vmatpush1.bf16.msra.mxu0 %v273
      %297 = vmatprep.subr.bf16.mxu0 0
      %298 = vmatpush1.bf16.msra.mxu0 %v274
      %299 = vmatprep.subr.bf16.mxu0 0
      %300 = vmatpush1.bf16.msra.mxu0 0
      %301 = vmatprep.subr.bf16.mxu0 0
      %302 = vmatpush1.bf16.msra.mxu0 0
      %303 = vmatprep.subr.bf16.mxu0 0
      %304 = vmatpush1.bf16.msra.mxu0 0
      %305 = vmatprep.subr.bf16.mxu0 0
      %306 = vmatpush1.bf16.msra.mxu0 0
      %307 = vmatprep.subr.bf16.mxu0 0
      %308 = vmatpush1.bf16.msra.mxu0 0
      %309 = vmatprep.subr.bf16.mxu0 0
      %310 = vmatpush1.bf16.msra.mxu0 0
      %311 = vmatprep.subr.bf16.mxu0 0
      %312 = vmatpush1.bf16.msra.mxu0 0
      %313 = vmatprep.subr.bf16.mxu0 0
      %314 = vmatpush1.bf16.msra.mxu0 0
      %315 = vmatprep.mubr.bf16.mxu0 0
      %316 = vmatmul.mubr.bf16.gmra.mrb[0].mxu0 %v211
      %v317 = vpop.f32.mrb[0].mxu0
      %v318 = vadd.f32 %v233, %v317
      %v319 = vpop.f32.mrb[0].mxu0
      %v320 = vpop.f32.mrb[0].mxu0
      %v321 = vpop.f32.mrb[0].mxu0
      %322 = vdwg.mxu0
      %v323 = vld [vmem:[%s205] sm:$0xff]
      %325 = vset.pattern.permute.xlu0 0
      %326 = vperm.xlu0 %325, %v323
      %v327 = vpop.permute.xlu0 %326
      %v329 = vmul.f32 %v318, %v327
      %330 = vst [vmem:[%s209] sm:$0xff] %v329
      %p331 = scmp.lt.s32.totalorder %s15, 1
      %s332 = scalar_select %p331, %s15, 1
      %s333 = smul.addr %s332, 8
      %s334 = scalar_lea.vmem %s4, %s333
      // Predicated region
      $region37: #{_lambda_.23} parent=35 // pred_check
        %p335 = pneg %p127
      $region38: #{_lambda_.23} parent=35 // pred_check_branch
        %337 = sbr.rel (%p335) target = $region40
      $region39: #{_lambda_.23} parent=35 // pred_region
        _
      $region40: #{_lambda_.23} parent=35 // pred_fallthru
        _
    $region36: #{_lambda_.23} parent=5 // pred_fallthru
      _
    %p338 = scmp.le.s32.totalorder 2, %s10
    // Predicated region
    $region41: #{_lambda_.23} parent=5 // pred_check
      %p339 = pneg %p338
    $region42: #{_lambda_.23} parent=5 // pred_check_branch
      %341 = sbr.rel (%p339) target = $region44
    $region43: #{_lambda_.23} parent=5 // pred_region
      %s342 = ssub.s32 %s10, 2
      // Predicated region
      $region45: #{_lambda_.23} parent=43 // pred_check
        %p343 = pneg %p133
      $region46: #{_lambda_.23} parent=43 // pred_check_branch
        %345 = sbr.rel (%p343) target = $region48
      $region47: #{_lambda_.23} parent=43 // pred_region
        %p346 = scmp.lt.s32.totalorder %s16, 1
        %s347 = scalar_select %p346, %s16, 1
        %s348 = smul.addr %s347, 8
        %s349 = scalar_lea.vmem %s4, %s348
      $region48: #{_lambda_.23} parent=43 // pred_fallthru
        _
    $region44: #{_lambda_.23} parent=5 // pred_fallthru
      _
  $region6: #{_lambda_.23} parent=0 // loop_footer
    %s14 = sadd.s32 1, %s10
  $region7: #{_lambda_.23} parent=0 // loop_footer_branch
    %9 = sbr.rel target = $region3
  $region8: #{_lambda_.23} parent=0 // loop_exit
    _

// kernel: _lambda_.22
$region0: #{_lambda_.22}
  #allocation0 [shape = 'u32[]', space=smem, size = 0x4, offset = 0x4, fixed_abs, tag = 'smem constant byte address 0x4 - core index']
  #allocation1 [shape = 'u32[144,128]{1,0:T(1,128)}', space=vmem, size = 0x12000, scoped, tag = 'internal scratch']
  #allocation2 [shape = 'f32[40,128]{1,0:T(8,128)}', space=vmem, size = 0x5000, scoped, tag = 'scratch operand']
  %s0 = inlined_call_operand.vmem [shape: bf16[2,8,128], index: 0, kind: input, shape index: {}]
  %s1 = inlined_call_operand.vmem [shape: f32[2,8,1], index: 1, kind: input, shape index: {}]
  %s2 = inlined_call_operand.vmem [shape: f32[9,128], index: 2, kind: input, shape index: {}]
  %s3 = inlined_call_operand.vmem [shape: f32[3,128], index: 3, kind: input, shape index: {}]
  %s4 = inlined_call_operand.vmem [shape: f32[3,128], index: 4, kind: input, shape index: {}, may-alias: {4,8}]
  %s5 = inlined_call_operand.vmem [shape: f32[3,128], index: 5, kind: input, shape index: {}, may-alias: {5,9}]
  %s6 = inlined_call_operand.vmem [shape: bf16[3,128,128], index: 6, kind: input, shape index: {}]
  %s7 = inlined_call_operand.vmem [shape: f32[3,128], index: 7, kind: input, shape index: {}]
  %s8 = inlined_call_operand.vmem [shape: f32[3,128], index: 8, kind: input, shape index: {}, may-alias: {4,8}]
  %s9 = inlined_call_operand.vmem [shape: f32[3,128], index: 9, kind: input, shape index: {}, may-alias: {5,9}]
  %s10 = inlined_call_operand.vmem [shape: bf16[2,8,128], index: 10, kind: output, shape index: {}]
  %s11 = sld [smem:[#allocation0]]
  $region73: #{_lambda_.22} parent=0
    _
  %s13 = ssub.s32 1, %s11
  %s14 = scalar_select 0, %s13, %s11
  loop: start=0, step=1, limit=4
  $region2: #{_lambda_.22} parent=0 // loop_pre_header
    _
  $region3: #{_lambda_.22} parent=0 // loop_header
    %s16 = sphi 0, %s20
    %p17 = scmp.ge.s32.totalorder %s16, 4
    %s26 = sphi 0, %s28
    %s29 = sphi 0, %s26
    %s30 = sphi 0, %s29
    %s46 = sphi 0, %s30
    %s52 = sphi 0, %s54
    %s55 = sphi 0, %s52
    %s56 = sphi 0, %s55
    %s72 = sphi 0, %s56
    %s76 = sphi 0, %s76
    %s78 = sphi 0, %s76
    %s79 = sphi 0, %s78
    %s93 = sphi 0, %s79
    %s97 = sphi 0, %s97
    %s99 = sphi 0, %s97
    %s100 = sphi 0, %s99
    %s114 = sphi 0, %s100
    %s118 = sphi 0, %s118
    %s120 = sphi 0, %s118
    %s121 = sphi 0, %s120
    %s135 = sphi 0, %s121
    %s139 = sphi 0, %s139
    %s141 = sphi 0, %s139
    %s142 = sphi 0, %s141
    %s156 = sphi 0, %s142
    %s160 = sphi 0, %s160
    %s162 = sphi 0, %s160
    %s163 = sphi 0, %s162
    %s177 = sphi 0, %s163
    %s181 = sphi 0, %s181
    %s183 = sphi 0, %s181
    %s184 = sphi 0, %s183
    %s198 = sphi 0, %s184
    %s202 = sphi 0, %s202
    %s204 = sphi 0, %s202
    %s205 = sphi 0, %s204
    %s219 = sphi 0, %s205
    %s223 = sphi 0, %s223
    %s225 = sphi 0, %s223
    %s226 = sphi 0, %s225
    %s240 = sphi 0, %s226
    %s246 = sphi 0, %s248
    %s249 = sphi 0, %s246
    %s250 = sphi 0, %s249
    %s266 = sphi 0, %s250
  $region4: #{_lambda_.22} parent=0 // loop_header_branch
    %19 = sbr.rel (%p17) target = $region8
  $region5: #{_lambda_.22} parent=0 // loop_body
    %s21 = ssub.s32 %s16, 1
    %s22 = ssub.s32 %s16, 2
    %s23 = sadd.s32 %s16, 1
    %s24 = ssub.s32 %s16, %s23
    %p25 = scmp.eq.s32.totalorder %s24, 0
    %s27 = sadd.s32 %s26, 1
    %s28 = scalar_select %p25, %s26, %s27
    %p31 = pneg %p25
    %p32 = scmp.eq.s32.totalorder %s16, 1
    %p33 = por %p31, %p32
    %p34 = scmp.ne.s32.totalorder %s26, %s29
    %p35 = scmp.eq.s32.totalorder %s16, 0
    %p36 = por %p34, %p35
    %p37 = scmp.ne.s32.totalorder %s26, %s29
    %p38 = scmp.eq.s32.totalorder %s21, 1
    %p39 = por %p37, %p38
    %p40 = scmp.ne.s32.totalorder %s29, %s30
    %p41 = scmp.eq.s32.totalorder %s21, 0
    %p42 = por %p40, %p41
    %p43 = scmp.ne.s32.totalorder %s29, %s30
    %p44 = scmp.eq.s32.totalorder %s22, 1
    %p45 = por %p43, %p44
    %p47 = scmp.ne.s32.totalorder %s30, %s46
    %p48 = scmp.eq.s32.totalorder %s22, 0
    %p49 = por %p47, %p48
    %s50 = ssub.s32 %s16, %s23
    %p51 = scmp.eq.s32.totalorder %s50, 0
    %s53 = sadd.s32 %s52, 1
    %s54 = scalar_select %p51, %s52, %s53
    %p57 = pneg %p51
    %p58 = scmp.eq.s32.totalorder %s16, 1
    %p59 = por %p57, %p58
    %p60 = scmp.ne.s32.totalorder %s52, %s55
    %p61 = scmp.eq.s32.totalorder %s16, 0
    %p62 = por %p60, %p61
    %p63 = scmp.ne.s32.totalorder %s52, %s55
    %p64 = scmp.eq.s32.totalorder %s21, 1
    %p65 = por %p63, %p64
    %p66 = scmp.ne.s32.totalorder %s55, %s56
    %p67 = scmp.eq.s32.totalorder %s21, 0
    %p68 = por %p66, %p67
    %p69 = scmp.ne.s32.totalorder %s55, %s56
    %p70 = scmp.eq.s32.totalorder %s22, 1
    %p71 = por %p69, %p70
    %p73 = scmp.ne.s32.totalorder %s56, %s72
    %p74 = scmp.eq.s32.totalorder %s22, 0
    %p75 = por %p73, %p74
    %s77 = sadd.s32 %s76, 1
    %p80 = scmp.eq.s32.totalorder %s16, 1
    %p81 = scmp.ne.s32.totalorder %s76, %s78
    %p82 = scmp.eq.s32.totalorder %s16, 0
    %p83 = por %p81, %p82
    %p84 = scmp.ne.s32.totalorder %s76, %s78
    %p85 = scmp.eq.s32.totalorder %s21, 1
    %p86 = por %p84, %p85
    %p87 = scmp.ne.s32.totalorder %s78, %s79
    %p88 = scmp.eq.s32.totalorder %s21, 0
    %p89 = por %p87, %p88
    %p90 = scmp.ne.s32.totalorder %s78, %s79
    %p91 = scmp.eq.s32.totalorder %s22, 1
    %p92 = por %p90, %p91
    %p94 = scmp.ne.s32.totalorder %s79, %s93
    %p95 = scmp.eq.s32.totalorder %s22, 0
    %p96 = por %p94, %p95
    %s98 = sadd.s32 %s97, 1
    %p101 = scmp.eq.s32.totalorder %s16, 1
    %p102 = scmp.ne.s32.totalorder %s97, %s99
    %p103 = scmp.eq.s32.totalorder %s16, 0
    %p104 = por %p102, %p103
    %p105 = scmp.ne.s32.totalorder %s97, %s99
    %p106 = scmp.eq.s32.totalorder %s21, 1
    %p107 = por %p105, %p106
    %p108 = scmp.ne.s32.totalorder %s99, %s100
    %p109 = scmp.eq.s32.totalorder %s21, 0
    %p110 = por %p108, %p109
    %p111 = scmp.ne.s32.totalorder %s99, %s100
    %p112 = scmp.eq.s32.totalorder %s22, 1
    %p113 = por %p111, %p112
    %p115 = scmp.ne.s32.totalorder %s100, %s114
    %p116 = scmp.eq.s32.totalorder %s22, 0
    %p117 = por %p115, %p116
    %s119 = sadd.s32 %s118, 1
    %p122 = scmp.eq.s32.totalorder %s16, 1
    %p123 = scmp.ne.s32.totalorder %s118, %s120
    %p124 = scmp.eq.s32.totalorder %s16, 0
    %p125 = por %p123, %p124
    %p126 = scmp.ne.s32.totalorder %s118, %s120
    %p127 = scmp.eq.s32.totalorder %s21, 1
    %p128 = por %p126, %p127
    %p129 = scmp.ne.s32.totalorder %s120, %s121
    %p130 = scmp.eq.s32.totalorder %s21, 0
    %p131 = por %p129, %p130
    %p132 = scmp.ne.s32.totalorder %s120, %s121
    %p133 = scmp.eq.s32.totalorder %s22, 1
    %p134 = por %p132, %p133
    %p136 = scmp.ne.s32.totalorder %s121, %s135
    %p137 = scmp.eq.s32.totalorder %s22, 0
    %p138 = por %p136, %p137
    %s140 = sadd.s32 %s139, 1
    %p143 = scmp.eq.s32.totalorder %s16, 1
    %p144 = scmp.ne.s32.totalorder %s139, %s141
    %p145 = scmp.eq.s32.totalorder %s16, 0
    %p146 = por %p144, %p145
    %p147 = scmp.ne.s32.totalorder %s139, %s141
    %p148 = scmp.eq.s32.totalorder %s21, 1
    %p149 = por %p147, %p148
    %p150 = scmp.ne.s32.totalorder %s141, %s142
    %p151 = scmp.eq.s32.totalorder %s21, 0
    %p152 = por %p150, %p151
    %p153 = scmp.ne.s32.totalorder %s141, %s142
    %p154 = scmp.eq.s32.totalorder %s22, 1
    %p155 = por %p153, %p154
    %p157 = scmp.ne.s32.totalorder %s142, %s156
    %p158 = scmp.eq.s32.totalorder %s22, 0
    %p159 = por %p157, %p158
    %s161 = sadd.s32 %s160, 1
    %p164 = scmp.eq.s32.totalorder %s16, 1
    %p165 = scmp.ne.s32.totalorder %s160, %s162
    %p166 = scmp.eq.s32.totalorder %s16, 0
    %p167 = por %p165, %p166
    %p168 = scmp.ne.s32.totalorder %s160, %s162
    %p169 = scmp.eq.s32.totalorder %s21, 1
    %p170 = por %p168, %p169
    %p171 = scmp.ne.s32.totalorder %s162, %s163
    %p172 = scmp.eq.s32.totalorder %s21, 0
    %p173 = por %p171, %p172
    %p174 = scmp.ne.s32.totalorder %s162, %s163
    %p175 = scmp.eq.s32.totalorder %s22, 1
    %p176 = por %p174, %p175
    %p178 = scmp.ne.s32.totalorder %s163, %s177
    %p179 = scmp.eq.s32.totalorder %s22, 0
    %p180 = por %p178, %p179
    %s182 = sadd.s32 %s181, 1
    %p185 = scmp.eq.s32.totalorder %s16, 1
    %p186 = scmp.ne.s32.totalorder %s181, %s183
    %p187 = scmp.eq.s32.totalorder %s16, 0
    %p188 = por %p186, %p187
    %p189 = scmp.ne.s32.totalorder %s181, %s183
    %p190 = scmp.eq.s32.totalorder %s21, 1
    %p191 = por %p189, %p190
    %p192 = scmp.ne.s32.totalorder %s183, %s184
    %p193 = scmp.eq.s32.totalorder %s21, 0
    %p194 = por %p192, %p193
    %p195 = scmp.ne.s32.totalorder %s183, %s184
    %p196 = scmp.eq.s32.totalorder %s22, 1
    %p197 = por %p195, %p196
    %p199 = scmp.ne.s32.totalorder %s184, %s198
    %p200 = scmp.eq.s32.totalorder %s22, 0
    %p201 = por %p199, %p200
    %s203 = sadd.s32 %s202, 1
    %p206 = scmp.eq.s32.totalorder %s16, 1
    %p207 = scmp.ne.s32.totalorder %s202, %s204
    %p208 = scmp.eq.s32.totalorder %s16, 0
    %p209 = por %p207, %p208
    %p210 = scmp.ne.s32.totalorder %s202, %s204
    %p211 = scmp.eq.s32.totalorder %s21, 1
    %p212 = por %p210, %p211
    %p213 = scmp.ne.s32.totalorder %s204, %s205
    %p214 = scmp.eq.s32.totalorder %s21, 0
    %p215 = por %p213, %p214
    %p216 = scmp.ne.s32.totalorder %s204, %s205
    %p217 = scmp.eq.s32.totalorder %s22, 1
    %p218 = por %p216, %p217
    %p220 = scmp.ne.s32.totalorder %s205, %s219
    %p221 = scmp.eq.s32.totalorder %s22, 0
    %p222 = por %p220, %p221
    %s224 = sadd.s32 %s223, 1
    %p227 = scmp.eq.s32.totalorder %s16, 1
    %p228 = scmp.ne.s32.totalorder %s223, %s225
    %p229 = scmp.eq.s32.totalorder %s16, 0
    %p230 = por %p228, %p229
    %p231 = scmp.ne.s32.totalorder %s223, %s225
    %p232 = scmp.eq.s32.totalorder %s21, 1
    %p233 = por %p231, %p232
    %p234 = scmp.ne.s32.totalorder %s225, %s226
    %p235 = scmp.eq.s32.totalorder %s21, 0
    %p236 = por %p234, %p235
    %p237 = scmp.ne.s32.totalorder %s225, %s226
    %p238 = scmp.eq.s32.totalorder %s22, 1
    %p239 = por %p237, %p238
    %p241 = scmp.ne.s32.totalorder %s226, %s240
    %p242 = scmp.eq.s32.totalorder %s22, 0
    %p243 = por %p241, %p242
    %s244 = ssub.s32 %s16, %s23
    %p245 = scmp.eq.s32.totalorder %s244, 0
    %s247 = sadd.s32 %s246, 1
    %s248 = scalar_select %p245, %s246, %s247
    %p251 = pneg %p245
    %p252 = scmp.eq.s32.totalorder %s16, 1
    %p253 = por %p251, %p252
    %p254 = scmp.ne.s32.totalorder %s246, %s249
    %p255 = scmp.eq.s32.totalorder %s16, 0
    %p256 = por %p254, %p255
    %p257 = scmp.ne.s32.totalorder %s246, %s249
    %p258 = scmp.eq.s32.totalorder %s21, 1
    %p259 = por %p257, %p258
    %p260 = scmp.ne.s32.totalorder %s249, %s250
    %p261 = scmp.eq.s32.totalorder %s21, 0
    %p262 = por %p260, %p261
    %p263 = scmp.ne.s32.totalorder %s249, %s250
    %p264 = scmp.eq.s32.totalorder %s22, 1
    %p265 = por %p263, %p264
    %p267 = scmp.ne.s32.totalorder %s250, %s266
    %p268 = scmp.eq.s32.totalorder %s22, 0
    %p269 = por %p267, %p268
    %p270 = scmp.le.s32.totalorder 1, %s16
    %p271 = scmp.lt.s32.totalorder %s16, 3
    %p272 = pnand %p270, %p271
    %p273 = pneg %p272
    // Predicated region
    $region9: #{_lambda_.22} parent=5 // pred_check
      _
    $region10: #{_lambda_.22} parent=5 // pred_check_branch
      %275 = sbr.rel (%p272) target = $region12
    $region11: #{_lambda_.22} parent=5 // pred_region
      %s276 = ssub.s32 %s16, 1
      // Predicated region
      $region13: #{_lambda_.22} parent=11 // pred_check
        %p277 = pneg %p89
      $region14: #{_lambda_.22} parent=11 // pred_check_branch
        %279 = sbr.rel (%p277) target = $region16
      $region15: #{_lambda_.22} parent=11 // pred_region
        _
      $region16: #{_lambda_.22} parent=11 // pred_fallthru
        _
      // Predicated region
      $region17: #{_lambda_.22} parent=11 // pred_check
        %p280 = pneg %p110
      $region18: #{_lambda_.22} parent=11 // pred_check_branch
        %282 = sbr.rel (%p280) target = $region20
      $region19: #{_lambda_.22} parent=11 // pred_region
        _
      $region20: #{_lambda_.22} parent=11 // pred_fallthru
        _
      // Predicated region
      $region21: #{_lambda_.22} parent=11 // pred_check
        %p283 = pneg %p131
      $region22: #{_lambda_.22} parent=11 // pred_check_branch
        %285 = sbr.rel (%p283) target = $region24
      $region23: #{_lambda_.22} parent=11 // pred_region
        _
      $region24: #{_lambda_.22} parent=11 // pred_fallthru
        _
      // Predicated region
      $region25: #{_lambda_.22} parent=11 // pred_check
        %p286 = pneg %p152
      $region26: #{_lambda_.22} parent=11 // pred_check_branch
        %288 = sbr.rel (%p286) target = $region28
      $region27: #{_lambda_.22} parent=11 // pred_region
        _
      $region28: #{_lambda_.22} parent=11 // pred_fallthru
        _
      // Predicated region
      $region29: #{_lambda_.22} parent=11 // pred_check
        %p289 = pneg %p173
      $region30: #{_lambda_.22} parent=11 // pred_check_branch
        %291 = sbr.rel (%p289) target = $region32
      $region31: #{_lambda_.22} parent=11 // pred_region
        _
      $region32: #{_lambda_.22} parent=11 // pred_fallthru
        _
      // Predicated region
      $region33: #{_lambda_.22} parent=11 // pred_check
        %p292 = pneg %p194
      $region34: #{_lambda_.22} parent=11 // pred_check_branch
        %294 = sbr.rel (%p292) target = $region36
      $region35: #{_lambda_.22} parent=11 // pred_region
        _
      $region36: #{_lambda_.22} parent=11 // pred_fallthru
        _
      // Predicated region
      $region37: #{_lambda_.22} parent=11 // pred_check
        %p295 = pneg %p215
      $region38: #{_lambda_.22} parent=11 // pred_check_branch
        %297 = sbr.rel (%p295) target = $region40
      $region39: #{_lambda_.22} parent=11 // pred_region
        _
      $region40: #{_lambda_.22} parent=11 // pred_fallthru
        _
      // Predicated region
      $region41: #{_lambda_.22} parent=11 // pred_check
        %p298 = pneg %p236
      $region42: #{_lambda_.22} parent=11 // pred_check_branch
        %300 = sbr.rel (%p298) target = $region44
      $region43: #{_lambda_.22} parent=11 // pred_region
        _
      $region44: #{_lambda_.22} parent=11 // pred_fallthru
        _
    $region12: #{_lambda_.22} parent=5 // pred_fallthru
      _
    %p301 = scmp.lt.s32.totalorder %s16, 2
    // Predicated region
    $region45: #{_lambda_.22} parent=5 // pred_check
      %p302 = pneg %p301
    $region46: #{_lambda_.22} parent=5 // pred_check_branch
      %304 = sbr.rel (%p302) target = $region48
    $region47: #{_lambda_.22} parent=5 // pred_region
      // Predicated region
      $region49: #{_lambda_.22} parent=47 // pred_check
        %p305 = pneg %p36
      $region50: #{_lambda_.22} parent=47 // pred_check_branch
        %307 = sbr.rel (%p305) target = $region52
      $region51: #{_lambda_.22} parent=47 // pred_region
        %p308 = scmp.lt.s32.totalorder %s16, 1
        %s309 = scalar_select %p308, %s16, 1
        %s310 = smul.addr %s309, 4
        %s311 = scalar_lea.vmem %s0, %s310
      $region52: #{_lambda_.22} parent=47 // pred_fallthru
        _
      // Predicated region
      $region53: #{_lambda_.22} parent=47 // pred_check
        %p312 = pneg %p62
      $region54: #{_lambda_.22} parent=47 // pred_check_branch
        %314 = sbr.rel (%p312) target = $region56
      $region55: #{_lambda_.22} parent=47 // pred_region
        %p315 = scmp.lt.s32.totalorder %s16, 1
        %s316 = scalar_select %p315, %s16, 1
        %s317 = smul.addr %s316, 8
        %s318 = scalar_lea.vmem %s1, %s317
      $region56: #{_lambda_.22} parent=47 // pred_fallthru
        _
    $region48: #{_lambda_.22} parent=5 // pred_fallthru
      _
    %p319 = scmp.le.s32.totalorder 1, %s16
    %p320 = scmp.lt.s32.totalorder %s16, 3
    %p321 = pnand %p319, %p320
    %p322 = pneg %p321
    // Predicated region
    $region57: #{_lambda_.22} parent=5 // pred_check
      _
    $region58: #{_lambda_.22} parent=5 // pred_check_branch
      %324 = sbr.rel (%p321) target = $region60
    $region59: #{_lambda_.22} parent=5 // pred_region
      %s325 = ssub.s32 %s16, 1
      %p326 = scmp.lt.s32.totalorder %s21, 1
      %s327 = scalar_select %p326, %s21, 1
      %s328 = smul.addr %s327, 4
      %s329 = scalar_lea.vmem %s0, %s328
      %p330 = pneg %p42
      %p331 = pneg %p39
      %p332 = scmp.lt.s32.totalorder %s21, 1
      %s333 = scalar_select %p332, %s21, 1
      %s334 = smul.addr %s333, 8
      %s335 = scalar_lea.vmem %s1, %s334
      %p336 = pneg %p68
      %p337 = pneg %p65
      %p338 = pneg %p89
      %p339 = pneg %p86
      %p340 = pneg %p110
      %p341 = pneg %p107
      %p342 = pneg %p131
      %p343 = pneg %p128
      %p344 = pneg %p152
      %p345 = pneg %p149
      %p346 = pneg %p173
      %p347 = pneg %p170
      %p348 = pneg %p194
      %p349 = pneg %p191
      %p350 = pneg %p215
      %p351 = pneg %p212
      %p352 = pneg %p236
      %p353 = pneg %p233
      %p354 = pneg %p262
      %p355 = pneg %p259
      %p356 = scmp.lt.s32.totalorder %s21, 1
      %s357 = scalar_select %p356, %s21, 1
      %s358 = smul.addr %s357, 4
      %s359 = scalar_lea.vmem %s10, %s358
      %p360 = scmp.lt.s32.totalorder %s21, 1
      %s361 = scalar_select %p360, %s21, 1
      %s362 = smul.addr %s361, 4
      %s363 = scalar_lea.vmem %s0, %s362
      %p364 = scmp.lt.s32.totalorder %s21, 1
      %s365 = scalar_select %p364, %s21, 1
      %s366 = smul.addr %s365, 8
      %s367 = scalar_lea.vmem %s1, %s366
      %p368 = scmp.lt.s32.totalorder %s21, 1
      %s369 = scalar_select %p368, %s21, 1
      %s370 = smul.addr %s369, 4
      %s371 = scalar_lea.vmem %s10, %s370
      %v373 = vld [vmem:[%s367] sm:$0xff]
      %v374 = vld [vmem:[%s363] sm:$0xf]
      %v375 = vunpack.c.l.bf16 %v374
      %376 = vst [vmem:[#allocation2] sm:$0xff] 0.0
      %377 = vst [vmem:[#allocation2 + $0x8] sm:$0xff] 0.0
      %378 = vst [vmem:[#allocation2 + $0x18] sm:$0xff] 0.0
      %379 = vst [vmem:[#allocation2 + $0x20] sm:$0xff] 0.0
      %381 = vset.pattern.permute.xlu0 0
      %382 = vperm.xlu0 %381, %v373
      %v383 = vpop.permute.xlu0 %382
      %v385 = vmul.f32 %v375, %v383
      %386 = vst [vmem:[#allocation2 + $0x10] sm:$0xff] %v385
      %v387 = vld [vmem:[#allocation2 + $0xf] sm:$0xff]
      %v388 = vld [vmem:[%s2] sm:$0x1]
      %v389 = vlaneseq
      %v390 = vshrl.u32 %v389, 7
      %v391 = vsub.s32 0, %v390
      %v392 = vrot.slane %v388, %v391
      %v393 = vmul.f32 %v387, %v392
      %v394 = vld [vmem:[#allocation2 + $0x10] sm:$0xff]
      %v395 = vld [vmem:[%s2 + $0x1] sm:$0x1]
      %v396 = vlaneseq
      %v397 = vshrl.u32 %v396, 7
      %v398 = vsub.s32 0, %v397
      %v399 = vrot.slane %v395, %v398
      %v400 = vmul.f32 %v394, %v399
      %v401 = vadd.f32 %v393, %v400
      %v402 = vld [vmem:[#allocation2 + $0x11] sm:$0xff]
      %v403 = vld [vmem:[%s2 + $0x2] sm:$0x1]
      %v404 = vlaneseq
      %v405 = vshrl.u32 %v404, 7
      %v406 = vsub.s32 0, %v405
      %v407 = vrot.slane %v403, %v406
      %v408 = vmul.f32 %v402, %v407
      %v409 = vadd.f32 %v401, %v408
      %v410 = vld [vmem:[%s3] sm:$0x1]
      %v411 = vlaneseq
      %v412 = vshrl.u32 %v411, 7
      %v413 = vsub.s32 0, %v412
      %v414 = vrot.slane %v410, %v413
      %v415 = vadd.f32 %v409, %v414
      %416 = vadd.xlane.f32.xlu0 %v415
      %v417 = vpop.xlane.xlu0 %416
      %v418 = vrcp.pop 128.0
      %v419 = vmul.f32 %v417, %v418
      %v420 = vmul.f32 %v415, %v415
      %421 = vadd.xlane.f32.xlu0 %v420
      %v422 = vpop.xlane.xlu0 %421
      %v423 = vmul.f32 %v422, %v418
      %v424 = vmul.f32 %v419, %v419
      %v425 = vsub.f32 %v423, %v424
      %v426 = vsub.f32 %v415, %v419
      %v427 = vadd.f32 %v425, 1e-05
      %v428 = vrsqrt.pop %v427
      %v429 = vmul.f32 %v426, %v428
      %v430 = vld [vmem:[%s4] sm:$0x1]
      %v431 = vlaneseq
      %v432 = vshrl.u32 %v431, 7
      %v433 = vsub.s32 0, %v432
      %v434 = vrot.slane %v430, %v433
      %v435 = vmul.f32 %v429, %v434
      %v436 = vld [vmem:[%s5] sm:$0x1]
      %v437 = vlaneseq
      %v438 = vshrl.u32 %v437, 7
      %v439 = vsub.s32 0, %v438
      %v440 = vrot.slane %v436, %v439
      %v441 = vadd.f32 %v435, %v440
      %v442 = vmul.f32 %v441, 0.5
      %v443 = vmul.f32 %v441, 0.044715
      %v444 = vmul.f32 %v443, %v441
      %v445 = vmul.f32 %v444, %v441
      %v446 = vadd.f32 %v441, %v445
      %v447 = vmul.f32 %v446, 0.7978846
      %v448 = vtanh.pop %v447
      %v449 = vadd.f32 %v448, 1.0
      %v450 = vmul.f32 %v442, %v449
      %v451 = vpack.c.bf16 %v450, %v450
      %v452 = vld [vmem:[%s6] sm:$0xf]
      %v453 = vld [vmem:[%s6 + $0x4] sm:$0xf]
      %v454 = vld [vmem:[%s6 + $0x8] sm:$0xf]
      %v455 = vld [vmem:[%s6 + $0xc] sm:$0xf]
      %v456 = vld [vmem:[%s6 + $0x10] sm:$0xf]
      %v457 = vld [vmem:[%s6 + $0x14] sm:$0xf]
      %v458 = vld [vmem:[%s6 + $0x18] sm:$0xf]
      %v459 = vld [vmem:[%s6 + $0x1c] sm:$0xf]
      %v460 = vld [vmem:[%s6 + $0x20] sm:$0xf]
      %v461 = vld [vmem:[%s6 + $0x24] sm:$0xf]
      %v462 = vld [vmem:[%s6 + $0x28] sm:$0xf]
      %v463 = vld [vmem:[%s6 + $0x2c] sm:$0xf]
      %v464 = vld [vmem:[%s6 + $0x30] sm:$0xf]
      %v465 = vld [vmem:[%s6 + $0x34] sm:$0xf]
      %v466 = vld [vmem:[%s6 + $0x38] sm:$0xf]
      %v467 = vld [vmem:[%s6 + $0x3c] sm:$0xf]
      %v468 = vld [vmem:[%s7] sm:$0x1]
      %v469 = vlaneseq
      %v470 = vshrl.u32 %v469, 7
      %v471 = vsub.s32 0, %v470
      %v472 = vrot.slane %v468, %v471
      %v489 = vunpack.c.l.b16 %v452
      %v490 = vunpack.c.l.b16 %v453
      %v491 = vunpack.c.l.b16 %v454
      %v492 = vunpack.c.l.b16 %v455
      %v493 = vunpack.c.l.b16 %v456
      %v494 = vunpack.c.l.b16 %v457
      %v495 = vunpack.c.l.b16 %v458
      %v496 = vunpack.c.l.b16 %v459
      %v497 = vunpack.c.l.b16 %v460
      %v498 = vunpack.c.l.b16 %v461
      %v499 = vunpack.c.l.b16 %v462
      %v500 = vunpack.c.l.b16 %v463
      %v501 = vunpack.c.l.b16 %v464
      %v502 = vunpack.c.l.b16 %v465
      %v503 = vunpack.c.l.b16 %v466
      %v504 = vunpack.c.l.b16 %v467
      %v505 = vpack.c.b16 %v490, %v489
      %v506 = vpack.c.b16 %v492, %v491
      %v507 = vpack.c.b16 %v494, %v493
      %v508 = vpack.c.b16 %v496, %v495
      %v509 = vpack.c.b16 %v498, %v497
      %v510 = vpack.c.b16 %v500, %v499
      %v511 = vpack.c.b16 %v502, %v501
      %v512 = vpack.c.b16 %v504, %v503
      %521 = vmatprep.subr.bf16.mxu0 0
      %522 = vmatpush1.bf16.msra.mxu0 %v505
      %523 = vmatprep.subr.bf16.mxu0 0
      %524 = vmatpush1.bf16.msra.mxu0 %v506
      %525 = vmatprep.subr.bf16.mxu0 0
      %526 = vmatpush1.bf16.msra.mxu0 %v507
      %527 = vmatprep.subr.bf16.mxu0 0
      %528 = vmatpush1.bf16.msra.mxu0 %v508
      %529 = vmatprep.subr.bf16.mxu0 0
      %530 = vmatpush1.bf16.msra.mxu0 %v509
      %531 = vmatprep.subr.bf16.mxu0 0
      %532 = vmatpush1.bf16.msra.mxu0 %v510
      %533 = vmatprep.subr.bf16.mxu0 0
      %534 = vmatpush1.bf16.msra.mxu0 %v511
      %535 = vmatprep.subr.bf16.mxu0 0
      %536 = vmatpush1.bf16.msra.mxu0 %v512
      %537 = vmatprep.subr.bf16.mxu0 0
      %538 = vmatpush1.bf16.msra.mxu0 0
      %539 = vmatprep.subr.bf16.mxu0 0
      %540 = vmatpush1.bf16.msra.mxu0 0
      %541 = vmatprep.subr.bf16.mxu0 0
      %542 = vmatpush1.bf16.msra.mxu0 0
      %543 = vmatprep.subr.bf16.mxu0 0
      %544 = vmatpush1.bf16.msra.mxu0 0
      %545 = vmatprep.subr.bf16.mxu0 0
      %546 = vmatpush1.bf16.msra.mxu0 0
      %547 = vmatprep.subr.bf16.mxu0 0
      %548 = vmatpush1.bf16.msra.mxu0 0
      %549 = vmatprep.subr.bf16.mxu0 0
      %550 = vmatpush1.bf16.msra.mxu0 0
      %551 = vmatprep.subr.bf16.mxu0 0
      %552 = vmatpush1.bf16.msra.mxu0 0
      %553 = vmatprep.mubr.bf16.mxu0 0
      %554 = vmatmul.mubr.bf16.gmra.mrb[0].mxu0 %v451
      %v555 = vpop.f32.mrb[0].mxu0
      %v556 = vadd.f32 %v472, %v555
      %v557 = vpop.f32.mrb[0].mxu0
      %v558 = vpop.f32.mrb[0].mxu0
      %v559 = vpop.f32.mrb[0].mxu0
      %560 = vdwg.mxu0
      %561 = vadd.xlane.f32.xlu0 %v556
      %v562 = vpop.xlane.xlu0 %561
      %v563 = vmul.f32 %v562, %v418
      %v564 = vmul.f32 %v556, %v556
      %565 = vadd.xlane.f32.xlu0 %v564
      %v566 = vpop.xlane.xlu0 %565
      %v567 = vmul.f32 %v566, %v418
      %v568 = vmul.f32 %v563, %v563
      %v569 = vsub.f32 %v567, %v568
      %v570 = vsub.f32 %v556, %v563
      %v571 = vadd.f32 %v569, 1e-05
      %v572 = vrsqrt.pop %v571
      %v573 = vmul.f32 %v570, %v572
      %v574 = vld [vmem:[%s8] sm:$0x1]
      %v575 = vlaneseq
      %v576 = vshrl.u32 %v575, 7
      %v577 = vsub.s32 0, %v576
      %v578 = vrot.slane %v574, %v577
      %v579 = vmul.f32 %v573, %v578
      %v580 = vld [vmem:[%s9] sm:$0x1]
      %v581 = vlaneseq
      %v582 = vshrl.u32 %v581, 7
      %v583 = vsub.s32 0, %v582
      %v584 = vrot.slane %v580, %v583
      %v585 = vadd.f32 %v579, %v584
      %v586 = vmul.f32 %v585, 0.5
      %v587 = vmul.f32 %v585, 0.044715
      %v588 = vmul.f32 %v587, %v585
      %v589 = vmul.f32 %v588, %v585
      %v590 = vadd.f32 %v585, %v589
      %v591 = vmul.f32 %v590, 0.7978846
      %v592 = vtanh.pop %v591
      %v593 = vadd.f32 %v592, 1.0
      %v594 = vmul.f32 %v586, %v593
      %v595 = vadd.f32 %v375, %v594
      %v596 = vmul.f32 %v595, %v383
      %597 = vst [vmem:[#allocation2 + $0x10] sm:$0xff] %v596
      %v598 = vld [vmem:[#allocation2 + $0xd] sm:$0xff]
      %v599 = vld [vmem:[%s2 + $0x3] sm:$0x1]
      %v600 = vlaneseq
      %v601 = vshrl.u32 %v600, 7
      %v602 = vsub.s32 0, %v601
      %v603 = vrot.slane %v599, %v602
      %v604 = vmul.f32 %v598, %v603
      %v605 = vld [vmem:[#allocation2 + $0x10] sm:$0xff]
      %v606 = vld [vmem:[%s2 + $0x4] sm:$0x1]
      %v607 = vlaneseq
      %v608 = vshrl.u32 %v607, 7
      %v609 = vsub.s32 0, %v608
      %v610 = vrot.slane %v606, %v609
      %v611 = vmul.f32 %v605, %v610
      %v612 = vadd.f32 %v604, %v611
      %v613 = vld [vmem:[#allocation2 + $0x13] sm:$0xff]
      %v614 = vld [vmem:[%s2 + $0x5] sm:$0x1]
      %v615 = vlaneseq
      %v616 = vshrl.u32 %v615, 7
      %v617 = vsub.s32 0, %v616
      %v618 = vrot.slane %v614, %v617
      %v619 = vmul.f32 %v613, %v618
      %v620 = vadd.f32 %v612, %v619
      %v621 = vld [vmem:[%s3 + $0x1] sm:$0x1]
      %v622 = vlaneseq
      %v623 = vshrl.u32 %v622, 7
      %v624 = vsub.s32 0, %v623
      %v625 = vrot.slane %v621, %v624
      %v626 = vadd.f32 %v620, %v625
      %627 = vadd.xlane.f32.xlu0 %v626
      %v628 = vpop.xlane.xlu0 %627
      %v629 = vmul.f32 %v628, %v418
      %v630 = vmul.f32 %v626, %v626
      %631 = vadd.xlane.f32.xlu0 %v630
      %v632 = vpop.xlane.xlu0 %631
      %v633 = vmul.f32 %v632, %v418
      %v634 = vmul.f32 %v629, %v629
      %v635 = vsub.f32 %v633, %v634
      %v636 = vsub.f32 %v626, %v629
      %v637 = vadd.f32 %v635, 1e-05
      %v638 = vrsqrt.pop %v637
      %v639 = vmul.f32 %v636, %v638
      %v640 = vld [vmem:[%s4 + $0x1] sm:$0x1]
      %v641 = vlaneseq
      %v642 = vshrl.u32 %v641, 7
      %v643 = vsub.s32 0, %v642
      %v644 = vrot.slane %v640, %v643
      %v645 = vmul.f32 %v639, %v644
      %v646 = vld [vmem:[%s5 + $0x1] sm:$0x1]
      %v647 = vlaneseq
      %v648 = vshrl.u32 %v647, 7
      %v649 = vsub.s32 0, %v648
      %v650 = vrot.slane %v646, %v649
      %v651 = vadd.f32 %v645, %v650
      %v652 = vmul.f32 %v651, 0.5
      %v653 = vmul.f32 %v651, 0.044715
      %v654 = vmul.f32 %v653, %v651
      %v655 = vmul.f32 %v654, %v651
      %v656 = vadd.f32 %v651, %v655
      %v657 = vmul.f32 %v656, 0.7978846
      %v658 = vtanh.pop %v657
      %v659 = vadd.f32 %v658, 1.0
      %v660 = vmul.f32 %v652, %v659
      %v661 = vpack.c.bf16 %v660, %v660
      %s662 = scalar_lea.vmem %s6, 64
      %v663 = vld [vmem:[%s662] sm:$0xf]
      %v664 = vld [vmem:[%s662 + $0x4] sm:$0xf]
      %v665 = vld [vmem:[%s662 + $0x8] sm:$0xf]
      %v666 = vld [vmem:[%s662 + $0xc] sm:$0xf]
      %v667 = vld [vmem:[%s662 + $0x10] sm:$0xf]
      %v668 = vld [vmem:[%s662 + $0x14] sm:$0xf]
      %v669 = vld [vmem:[%s662 + $0x18] sm:$0xf]
      %v670 = vld [vmem:[%s662 + $0x1c] sm:$0xf]
      %v671 = vld [vmem:[%s662 + $0x20] sm:$0xf]
      %v672 = vld [vmem:[%s662 + $0x24] sm:$0xf]
      %v673 = vld [vmem:[%s662 + $0x28] sm:$0xf]
      %v674 = vld [vmem:[%s662 + $0x2c] sm:$0xf]
      %v675 = vld [vmem:[%s662 + $0x30] sm:$0xf]
      %v676 = vld [vmem:[%s662 + $0x34] sm:$0xf]
      %v677 = vld [vmem:[%s662 + $0x38] sm:$0xf]
      %v678 = vld [vmem:[%s662 + $0x3c] sm:$0xf]
      %v679 = vld [vmem:[%s7 + $0x1] sm:$0x1]
      %v680 = vlaneseq
      %v681 = vshrl.u32 %v680, 7
      %v682 = vsub.s32 0, %v681
      %v683 = vrot.slane %v679, %v682
      %v700 = vunpack.c.l.b16 %v663
      %v701 = vunpack.c.l.b16 %v664
      %v702 = vunpack.c.l.b16 %v665
      %v703 = vunpack.c.l.b16 %v666
      %v704 = vunpack.c.l.b16 %v667
      %v705 = vunpack.c.l.b16 %v668
      %v706 = vunpack.c.l.b16 %v669
      %v707 = vunpack.c.l.b16 %v670
      %v708 = vunpack.c.l.b16 %v671
      %v709 = vunpack.c.l.b16 %v672
      %v710 = vunpack.c.l.b16 %v673
      %v711 = vunpack.c.l.b16 %v674
      %v712 = vunpack.c.l.b16 %v675
      %v713 = vunpack.c.l.b16 %v676
      %v714 = vunpack.c.l.b16 %v677
      %v715 = vunpack.c.l.b16 %v678
      %v716 = vpack.c.b16 %v701, %v700
      %v717 = vpack.c.b16 %v703, %v702
      %v718 = vpack.c.b16 %v705, %v704
      %v719 = vpack.c.b16 %v707, %v706
      %v720 = vpack.c.b16 %v709, %v708
      %v721 = vpack.c.b16 %v711, %v710
      %v722 = vpack.c.b16 %v713, %v712
      %v723 = vpack.c.b16 %v715, %v714
      %732 = vmatprep.subr.bf16.mxu0 0
      %733 = vmatpush1.bf16.msra.mxu0 %v716
      %734 = vmatprep.subr.bf16.mxu0 0
      %735 = vmatpush1.bf16.msra.mxu0 %v717
      %736 = vmatprep.subr.bf16.mxu0 0
      %737 = vmatpush1.bf16.msra.mxu0 %v718
      %738 = vmatprep.subr.bf16.mxu0 0
      %739 = vmatpush1.bf16.msra.mxu0 %v719
      %740 = vmatprep.subr.bf16.mxu0 0
      %741 = vmatpush1.bf16.msra.mxu0 %v720
      %742 = vmatprep.subr.bf16.mxu0 0
      %743 = vmatpush1.bf16.msra.mxu0 %v721
      %744 = vmatprep.subr.bf16.mxu0 0
      %745 = vmatpush1.bf16.msra.mxu0 %v722
      %746 = vmatprep.subr.bf16.mxu0 0
      %747 = vmatpush1.bf16.msra.mxu0 %v723
      %748 = vmatprep.subr.bf16.mxu0 0
      %749 = vmatpush1.bf16.msra.mxu0 0
      %750 = vmatprep.subr.bf16.mxu0 0
      %751 = vmatpush1.bf16.msra.mxu0 0
      %752 = vmatprep.subr.bf16.mxu0 0
      %753 = vmatpush1.bf16.msra.mxu0 0
      %754 = vmatprep.subr.bf16.mxu0 0
      %755 = vmatpush1.bf16.msra.mxu0 0
      %756 = vmatprep.subr.bf16.mxu0 0
      %757 = vmatpush1.bf16.msra.mxu0 0
      %758 = vmatprep.subr.bf16.mxu0 0
      %759 = vmatpush1.bf16.msra.mxu0 0
      %760 = vmatprep.subr.bf16.mxu0 0
      %761 = vmatpush1.bf16.msra.mxu0 0
      %762 = vmatprep.subr.bf16.mxu0 0
      %763 = vmatpush1.bf16.msra.mxu0 0
      %764 = vmatprep.mubr.bf16.mxu0 0
      %765 = vmatmul.mubr.bf16.gmra.mrb[0].mxu0 %v661
      %v766 = vpop.f32.mrb[0].mxu0
      %v767 = vadd.f32 %v683, %v766
      %v768 = vpop.f32.mrb[0].mxu0
      %v769 = vpop.f32.mrb[0].mxu0
      %v770 = vpop.f32.mrb[0].mxu0
      %771 = vdwg.mxu0
      %772 = vadd.xlane.f32.xlu0 %v767
      %v773 = vpop.xlane.xlu0 %772
      %v774 = vmul.f32 %v773, %v418
      %v775 = vmul.f32 %v767, %v767
      %776 = vadd.xlane.f32.xlu0 %v775
      %v777 = vpop.xlane.xlu0 %776
      %v778 = vmul.f32 %v777, %v418
      %v779 = vmul.f32 %v774, %v774
      %v780 = vsub.f32 %v778, %v779
      %v781 = vsub.f32 %v767, %v774
      %v782 = vadd.f32 %v780, 1e-05
      %v783 = vrsqrt.pop %v782
      %v784 = vmul.f32 %v781, %v783
      %v785 = vld [vmem:[%s8 + $0x1] sm:$0x1]
      %v786 = vlaneseq
      %v787 = vshrl.u32 %v786, 7
      %v788 = vsub.s32 0, %v787
      %v789 = vrot.slane %v785, %v788
      %v790 = vmul.f32 %v784, %v789
      %v791 = vld [vmem:[%s9 + $0x1] sm:$0x1]
      %v792 = vlaneseq
      %v793 = vshrl.u32 %v792, 7
      %v794 = vsub.s32 0, %v793
      %v795 = vrot.slane %v791, %v794
      %v796 = vadd.f32 %v790, %v795
      %v797 = vmul.f32 %v796, 0.5
      %v798 = vmul.f32 %v796, 0.044715
      %v799 = vmul.f32 %v798, %v796
      %v800 = vmul.f32 %v799, %v796
      %v801 = vadd.f32 %v796, %v800
      %v802 = vmul.f32 %v801, 0.7978846
      %v803 = vtanh.pop %v802
      %v804 = vadd.f32 %v803, 1.0
      %v805 = vmul.f32 %v797, %v804
      %v806 = vadd.f32 %v595, %v805
      %v807 = vmul.f32 %v806, %v383
      %808 = vst [vmem:[#allocation2 + $0x10] sm:$0xff] %v807
      %v809 = vld [vmem:[#allocation2 + $0x7] sm:$0xff]
      %v810 = vld [vmem:[%s2 + $0x6] sm:$0x1]
      %v811 = vlaneseq
      %v812 = vshrl.u32 %v811, 7
      %v813 = vsub.s32 0, %v812
      %v814 = vrot.slane %v810, %v813
      %v815 = vmul.f32 %v809, %v814
      %v816 = vld [vmem:[#allocation2 + $0x10] sm:$0xff]
      %v817 = vld [vmem:[%s2 + $0x7] sm:$0x1]
      %v818 = vlaneseq
      %v819 = vshrl.u32 %v818, 7
      %v820 = vsub.s32 0, %v819
      %v821 = vrot.slane %v817, %v820
      %v822 = vmul.f32 %v816, %v821
      %v823 = vadd.f32 %v815, %v822
      %v824 = vld [vmem:[#allocation2 + $0x19] sm:$0xff]
      %v825 = vld [vmem:[%s2 + $0x8] sm:$0x1]
      %v826 = vlaneseq
      %v827 = vshrl.u32 %v826, 7
      %v828 = vsub.s32 0, %v827
      %v829 = vrot.slane %v825, %v828
      %v830 = vmul.f32 %v824, %v829
      %v831 = vadd.f32 %v823, %v830
      %v832 = vld [vmem:[%s3 + $0x2] sm:$0x1]
      %v833 = vlaneseq
      %v834 = vshrl.u32 %v833, 7
      %v835 = vsub.s32 0, %v834
      %v836 = vrot.slane %v832, %v835
      %v837 = vadd.f32 %v831, %v836
      %838 = vadd.xlane.f32.xlu0 %v837
      %v839 = vpop.xlane.xlu0 %838
      %v840 = vmul.f32 %v839, %v418
      %v841 = vmul.f32 %v837, %v837
      %842 = vadd.xlane.f32.xlu0 %v841
      %v843 = vpop.xlane.xlu0 %842
      %v844 = vmul.f32 %v843, %v418
      %v845 = vmul.f32 %v840, %v840
      %v846 = vsub.f32 %v844, %v845
      %v847 = vsub.f32 %v837, %v840
      %v848 = vadd.f32 %v846, 1e-05
      %v849 = vrsqrt.pop %v848
      %v850 = vmul.f32 %v847, %v849
      %v851 = vld [vmem:[%s4 + $0x2] sm:$0x1]
      %v852 = vlaneseq
      %v853 = vshrl.u32 %v852, 7
      %v854 = vsub.s32 0, %v853
      %v855 = vrot.slane %v851, %v854
      %v856 = vmul.f32 %v850, %v855
      %v857 = vld [vmem:[%s5 + $0x2] sm:$0x1]
      %v858 = vlaneseq
      %v859 = vshrl.u32 %v858, 7
      %v860 = vsub.s32 0, %v859
      %v861 = vrot.slane %v857, %v860
      %v862 = vadd.f32 %v856, %v861
      %v863 = vmul.f32 %v862, 0.5
      %v864 = vmul.f32 %v862, 0.044715
      %v865 = vmul.f32 %v864, %v862
      %v866 = vmul.f32 %v865, %v862
      %v867 = vadd.f32 %v862, %v866
      %v868 = vmul.f32 %v867, 0.7978846
      %v869 = vtanh.pop %v868
      %v870 = vadd.f32 %v869, 1.0
      %v871 = vmul.f32 %v863, %v870
      %v872 = vpack.c.bf16 %v871, %v871
      %s873 = scalar_lea.vmem %s6, 128
      %v874 = vld [vmem:[%s873] sm:$0xf]
      %v875 = vld [vmem:[%s873 + $0x4] sm:$0xf]
      %v876 = vld [vmem:[%s873 + $0x8] sm:$0xf]
      %v877 = vld [vmem:[%s873 + $0xc] sm:$0xf]
      %v878 = vld [vmem:[%s873 + $0x10] sm:$0xf]
      %v879 = vld [vmem:[%s873 + $0x14] sm:$0xf]
      %v880 = vld [vmem:[%s873 + $0x18] sm:$0xf]
      %v881 = vld [vmem:[%s873 + $0x1c] sm:$0xf]
      %v882 = vld [vmem:[%s873 + $0x20] sm:$0xf]
      %v883 = vld [vmem:[%s873 + $0x24] sm:$0xf]
      %v884 = vld [vmem:[%s873 + $0x28] sm:$0xf]
      %v885 = vld [vmem:[%s873 + $0x2c] sm:$0xf]
      %v886 = vld [vmem:[%s873 + $0x30] sm:$0xf]
      %v887 = vld [vmem:[%s873 + $0x34] sm:$0xf]
      %v888 = vld [vmem:[%s873 + $0x38] sm:$0xf]
      %v889 = vld [vmem:[%s873 + $0x3c] sm:$0xf]
      %v890 = vld [vmem:[%s7 + $0x2] sm:$0x1]
      %v891 = vlaneseq
      %v892 = vshrl.u32 %v891, 7
      %v893 = vsub.s32 0, %v892
      %v894 = vrot.slane %v890, %v893
      %v911 = vunpack.c.l.b16 %v874
      %v912 = vunpack.c.l.b16 %v875
      %v913 = vunpack.c.l.b16 %v876
      %v914 = vunpack.c.l.b16 %v877
      %v915 = vunpack.c.l.b16 %v878
      %v916 = vunpack.c.l.b16 %v879
      %v917 = vunpack.c.l.b16 %v880
      %v918 = vunpack.c.l.b16 %v881
      %v919 = vunpack.c.l.b16 %v882
      %v920 = vunpack.c.l.b16 %v883
      %v921 = vunpack.c.l.b16 %v884
      %v922 = vunpack.c.l.b16 %v885
      %v923 = vunpack.c.l.b16 %v886
      %v924 = vunpack.c.l.b16 %v887
      %v925 = vunpack.c.l.b16 %v888
      %v926 = vunpack.c.l.b16 %v889
      %v927 = vpack.c.b16 %v912, %v911
      %v928 = vpack.c.b16 %v914, %v913
      %v929 = vpack.c.b16 %v916, %v915
      %v930 = vpack.c.b16 %v918, %v917
      %v931 = vpack.c.b16 %v920, %v919
      %v932 = vpack.c.b16 %v922, %v921
      %v933 = vpack.c.b16 %v924, %v923
      %v934 = vpack.c.b16 %v926, %v925
      %943 = vmatprep.subr.bf16.mxu0 0
      %944 = vmatpush1.bf16.msra.mxu0 %v927
      %945 = vmatprep.subr.bf16.mxu0 0
      %946 = vmatpush1.bf16.msra.mxu0 %v928
      %947 = vmatprep.subr.bf16.mxu0 0
      %948 = vmatpush1.bf16.msra.mxu0 %v929
      %949 = vmatprep.subr.bf16.mxu0 0
      %950 = vmatpush1.bf16.msra.mxu0 %v930
      %951 = vmatprep.subr.bf16.mxu0 0
      %952 = vmatpush1.bf16.msra.mxu0 %v931
      %953 = vmatprep.subr.bf16.mxu0 0
      %954 = vmatpush1.bf16.msra.mxu0 %v932
      %955 = vmatprep.subr.bf16.mxu0 0
      %956 = vmatpush1.bf16.msra.mxu0 %v933
      %957 = vmatprep.subr.bf16.mxu0 0
      %958 = vmatpush1.bf16.msra.mxu0 %v934
      %959 = vmatprep.subr.bf16.mxu0 0
      %960 = vmatpush1.bf16.msra.mxu0 0
      %961 = vmatprep.subr.bf16.mxu0 0
      %962 = vmatpush1.bf16.msra.mxu0 0
      %963 = vmatprep.subr.bf16.mxu0 0
      %964 = vmatpush1.bf16.msra.mxu0 0
      %965 = vmatprep.subr.bf16.mxu0 0
      %966 = vmatpush1.bf16.msra.mxu0 0
      %967 = vmatprep.subr.bf16.mxu0 0
      %968 = vmatpush1.bf16.msra.mxu0 0
      %969 = vmatprep.subr.bf16.mxu0 0
      %970 = vmatpush1.bf16.msra.mxu0 0
      %971 = vmatprep.subr.bf16.mxu0 0
      %972 = vmatpush1.bf16.msra.mxu0 0
      %973 = vmatprep.subr.bf16.mxu0 0
      %974 = vmatpush1.bf16.msra.mxu0 0
      %975 = vmatprep.mubr.bf16.mxu0 0
      %976 = vmatmul.mubr.bf16.gmra.mrb[0].mxu0 %v872
      %v977 = vpop.f32.mrb[0].mxu0
      %v978 = vadd.f32 %v894, %v977
      %v979 = vpop.f32.mrb[0].mxu0
      %v980 = vpop.f32.mrb[0].mxu0
      %v981 = vpop.f32.mrb[0].mxu0
      %982 = vdwg.mxu0
      %983 = vadd.xlane.f32.xlu0 %v978
      %v984 = vpop.xlane.xlu0 %983
      %v985 = vmul.f32 %v984, %v418
      %v986 = vmul.f32 %v978, %v978
      %987 = vadd.xlane.f32.xlu0 %v986
      %v988 = vpop.xlane.xlu0 %987
      %v989 = vmul.f32 %v988, %v418
      %v990 = vmul.f32 %v985, %v985
      %v991 = vsub.f32 %v989, %v990
      %v992 = vsub.f32 %v978, %v985
      %v993 = vadd.f32 %v991, 1e-05
      %v994 = vrsqrt.pop %v993
      %v995 = vmul.f32 %v992, %v994
      %v996 = vld [vmem:[%s8 + $0x2] sm:$0x1]
      %v997 = vlaneseq
      %v998 = vshrl.u32 %v997, 7
      %v999 = vsub.s32 0, %v998
      %v1000 = vrot.slane %v996, %v999
      %v1001 = vmul.f32 %v995, %v1000
      %v1002 = vld [vmem:[%s9 + $0x2] sm:$0x1]
      %v1003 = vlaneseq
      %v1004 = vshrl.u32 %v1003, 7
      %v1005 = vsub.s32 0, %v1004
      %v1006 = vrot.slane %v1002, %v1005
      %v1007 = vadd.f32 %v1001, %v1006
      %v1008 = vmul.f32 %v1007, 0.5
      %v1009 = vmul.f32 %v1007, 0.044715
      %v1010 = vmul.f32 %v1009, %v1007
      %v1011 = vmul.f32 %v1010, %v1007
      %v1012 = vadd.f32 %v1007, %v1011
      %v1013 = vmul.f32 %v1012, 0.7978846
      %v1014 = vtanh.pop %v1013
      %v1015 = vadd.f32 %v1014, 1.0
      %v1016 = vmul.f32 %v1008, %v1015
      %v1017 = vadd.f32 %v806, %v1016
      %v1018 = vmul.f32 %v1017, %v383
      %v1019 = vpack.c.bf16 %v1018, %v1018
      %1020 = vst [vmem:[%s371] sm:$0xf] %v1019
      %p1021 = scmp.lt.s32.totalorder %s21, 1
      %s1022 = scalar_select %p1021, %s21, 1
      %s1023 = smul.addr %s1022, 4
      %s1024 = scalar_lea.vmem %s10, %s1023
      // Predicated region
      $region61: #{_lambda_.22} parent=59 // pred_check
        %p1025 = pneg %p259
      $region62: #{_lambda_.22} parent=59 // pred_check_branch
        %1027 = sbr.rel (%p1025) target = $region64
      $region63: #{_lambda_.22} parent=59 // pred_region
        _
      $region64: #{_lambda_.22} parent=59 // pred_fallthru
        _
    $region60: #{_lambda_.22} parent=5 // pred_fallthru
      _
    %p1028 = scmp.le.s32.totalorder 2, %s16
    // Predicated region
    $region65: #{_lambda_.22} parent=5 // pred_check
      %p1029 = pneg %p1028
    $region66: #{_lambda_.22} parent=5 // pred_check_branch
      %1031 = sbr.rel (%p1029) target = $region68
    $region67: #{_lambda_.22} parent=5 // pred_region
      %s1032 = ssub.s32 %s16, 2
      // Predicated region
      $region69: #{_lambda_.22} parent=67 // pred_check
        %p1033 = pneg %p265
      $region70: #{_lambda_.22} parent=67 // pred_check_branch
        %1035 = sbr.rel (%p1033) target = $region72
      $region71: #{_lambda_.22} parent=67 // pred_region
        %p1036 = scmp.lt.s32.totalorder %s22, 1
        %s1037 = scalar_select %p1036, %s22, 1
        %s1038 = smul.addr %s1037, 4
        %s1039 = scalar_lea.vmem %s10, %s1038
      $region72: #{_lambda_.22} parent=67 // pred_fallthru
        _
    $region68: #{_lambda_.22} parent=5 // pred_fallthru
      _
  $region6: #{_lambda_.22} parent=0 // loop_footer
    %s20 = sadd.s32 1, %s16
  $region7: #{_lambda_.22} parent=0 // loop_footer_branch
    %15 = sbr.rel target = $region3
  $region8: #{_lambda_.22} parent=0 // loop_exit
    _

// kernel: _lambda_.24
$region0: #{_lambda_.24}
  #allocation0 [shape = 'u32[]', space=smem, size = 0x4, offset = 0x4, fixed_abs, tag = 'smem constant byte address 0x4 - core index']
  #allocation1 [shape = 'u32[144,128]{1,0:T(1,128)}', space=vmem, size = 0x12000, scoped, tag = 'internal scratch']
  #allocation2 [shape = 'f32[40,128]{1,0:T(8,128)}', space=vmem, size = 0x5000, scoped, tag = 'scratch operand']
  %s0 = inlined_call_operand.vmem [shape: f32[2,8,128], index: 0, kind: input, shape index: {}]
  %s1 = inlined_call_operand.vmem [shape: f32[2,8,1], index: 1, kind: input, shape index: {}]
  %s2 = inlined_call_operand.vmem [shape: f32[9,128], index: 2, kind: input, shape index: {}]
  %s3 = inlined_call_operand.vmem [shape: f32[3,128], index: 3, kind: input, shape index: {}]
  %s4 = inlined_call_operand.vmem [shape: f32[3,128], index: 4, kind: input, shape index: {}, may-alias: {4,8}]
  %s5 = inlined_call_operand.vmem [shape: f32[3,128], index: 5, kind: input, shape index: {}, may-alias: {5,9}]
  %s6 = inlined_call_operand.vmem [shape: bf16[3,128,128], index: 6, kind: input, shape index: {}]
  %s7 = inlined_call_operand.vmem [shape: f32[3,128], index: 7, kind: input, shape index: {}]
  %s8 = inlined_call_operand.vmem [shape: f32[3,128], index: 8, kind: input, shape index: {}, may-alias: {4,8}]
  %s9 = inlined_call_operand.vmem [shape: f32[3,128], index: 9, kind: input, shape index: {}, may-alias: {5,9}]
  %s10 = inlined_call_operand.vmem [shape: bf16[2,8,128], index: 10, kind: output, shape index: {}]
  %s11 = sld [smem:[#allocation0]]
  $region73: #{_lambda_.24} parent=0
    _
  %s13 = ssub.s32 1, %s11
  %s14 = scalar_select 0, %s13, %s11
  loop: start=0, step=1, limit=4
  $region2: #{_lambda_.24} parent=0 // loop_pre_header
    _
  $region3: #{_lambda_.24} parent=0 // loop_header
    %s16 = sphi 0, %s20
    %p17 = scmp.ge.s32.totalorder %s16, 4
    %s26 = sphi 0, %s28
    %s29 = sphi 0, %s26
    %s30 = sphi 0, %s29
    %s46 = sphi 0, %s30
    %s52 = sphi 0, %s54
    %s55 = sphi 0, %s52
    %s56 = sphi 0, %s55
    %s72 = sphi 0, %s56
    %s76 = sphi 0, %s76
    %s78 = sphi 0, %s76
    %s79 = sphi 0, %s78
    %s93 = sphi 0, %s79
    %s97 = sphi 0, %s97
    %s99 = sphi 0, %s97
    %s100 = sphi 0, %s99
    %s114 = sphi 0, %s100
    %s118 = sphi 0, %s118
    %s120 = sphi 0, %s118
    %s121 = sphi 0, %s120
    %s135 = sphi 0, %s121
    %s139 = sphi 0, %s139
    %s141 = sphi 0, %s139
    %s142 = sphi 0, %s141
    %s156 = sphi 0, %s142
    %s160 = sphi 0, %s160
    %s162 = sphi 0, %s160
    %s163 = sphi 0, %s162
    %s177 = sphi 0, %s163
    %s181 = sphi 0, %s181
    %s183 = sphi 0, %s181
    %s184 = sphi 0, %s183
    %s198 = sphi 0, %s184
    %s202 = sphi 0, %s202
    %s204 = sphi 0, %s202
    %s205 = sphi 0, %s204
    %s219 = sphi 0, %s205
    %s223 = sphi 0, %s223
    %s225 = sphi 0, %s223
    %s226 = sphi 0, %s225
    %s240 = sphi 0, %s226
    %s246 = sphi 0, %s248
    %s249 = sphi 0, %s246
    %s250 = sphi 0, %s249
    %s266 = sphi 0, %s250
  $region4: #{_lambda_.24} parent=0 // loop_header_branch
    %19 = sbr.rel (%p17) target = $region8
  $region5: #{_lambda_.24} parent=0 // loop_body
    %s21 = ssub.s32 %s16, 1
    %s22 = ssub.s32 %s16, 2
    %s23 = sadd.s32 %s16, 1
    %s24 = ssub.s32 %s16, %s23
    %p25 = scmp.eq.s32.totalorder %s24, 0
    %s27 = sadd.s32 %s26, 1
    %s28 = scalar_select %p25, %s26, %s27
    %p31 = pneg %p25
    %p32 = scmp.eq.s32.totalorder %s16, 1
    %p33 = por %p31, %p32
    %p34 = scmp.ne.s32.totalorder %s26, %s29
    %p35 = scmp.eq.s32.totalorder %s16, 0
    %p36 = por %p34, %p35
    %p37 = scmp.ne.s32.totalorder %s26, %s29
    %p38 = scmp.eq.s32.totalorder %s21, 1
    %p39 = por %p37, %p38
    %p40 = scmp.ne.s32.totalorder %s29, %s30
    %p41 = scmp.eq.s32.totalorder %s21, 0
    %p42 = por %p40, %p41
    %p43 = scmp.ne.s32.totalorder %s29, %s30
    %p44 = scmp.eq.s32.totalorder %s22, 1
    %p45 = por %p43, %p44
    %p47 = scmp.ne.s32.totalorder %s30, %s46
    %p48 = scmp.eq.s32.totalorder %s22, 0
    %p49 = por %p47, %p48
    %s50 = ssub.s32 %s16, %s23
    %p51 = scmp.eq.s32.totalorder %s50, 0
    %s53 = sadd.s32 %s52, 1
    %s54 = scalar_select %p51, %s52, %s53
    %p57 = pneg %p51
    %p58 = scmp.eq.s32.totalorder %s16, 1
    %p59 = por %p57, %p58
    %p60 = scmp.ne.s32.totalorder %s52, %s55
    %p61 = scmp.eq.s32.totalorder %s16, 0
    %p62 = por %p60, %p61
    %p63 = scmp.ne.s32.totalorder %s52, %s55
    %p64 = scmp.eq.s32.totalorder %s21, 1
    %p65 = por %p63, %p64
    %p66 = scmp.ne.s32.totalorder %s55, %s56
    %p67 = scmp.eq.s32.totalorder %s21, 0
    %p68 = por %p66, %p67
    %p69 = scmp.ne.s32.totalorder %s55, %s56
    %p70 = scmp.eq.s32.totalorder %s22, 1
    %p71 = por %p69, %p70
    %p73 = scmp.ne.s32.totalorder %s56, %s72
    %p74 = scmp.eq.s32.totalorder %s22, 0
    %p75 = por %p73, %p74
    %s77 = sadd.s32 %s76, 1
    %p80 = scmp.eq.s32.totalorder %s16, 1
    %p81 = scmp.ne.s32.totalorder %s76, %s78
    %p82 = scmp.eq.s32.totalorder %s16, 0
    %p83 = por %p81, %p82
    %p84 = scmp.ne.s32.totalorder %s76, %s78
    %p85 = scmp.eq.s32.totalorder %s21, 1
    %p86 = por %p84, %p85
    %p87 = scmp.ne.s32.totalorder %s78, %s79
    %p88 = scmp.eq.s32.totalorder %s21, 0
    %p89 = por %p87, %p88
    %p90 = scmp.ne.s32.totalorder %s78, %s79
    %p91 = scmp.eq.s32.totalorder %s22, 1
    %p92 = por %p90, %p91
    %p94 = scmp.ne.s32.totalorder %s79, %s93
    %p95 = scmp.eq.s32.totalorder %s22, 0
    %p96 = por %p94, %p95
    %s98 = sadd.s32 %s97, 1
    %p101 = scmp.eq.s32.totalorder %s16, 1
    %p102 = scmp.ne.s32.totalorder %s97, %s99
    %p103 = scmp.eq.s32.totalorder %s16, 0
    %p104 = por %p102, %p103
    %p105 = scmp.ne.s32.totalorder %s97, %s99
    %p106 = scmp.eq.s32.totalorder %s21, 1
    %p107 = por %p105, %p106
    %p108 = scmp.ne.s32.totalorder %s99, %s100
    %p109 = scmp.eq.s32.totalorder %s21, 0
    %p110 = por %p108, %p109
    %p111 = scmp.ne.s32.totalorder %s99, %s100
    %p112 = scmp.eq.s32.totalorder %s22, 1
    %p113 = por %p111, %p112
    %p115 = scmp.ne.s32.totalorder %s100, %s114
    %p116 = scmp.eq.s32.totalorder %s22, 0
    %p117 = por %p115, %p116
    %s119 = sadd.s32 %s118, 1
    %p122 = scmp.eq.s32.totalorder %s16, 1
    %p123 = scmp.ne.s32.totalorder %s118, %s120
    %p124 = scmp.eq.s32.totalorder %s16, 0
    %p125 = por %p123, %p124
    %p126 = scmp.ne.s32.totalorder %s118, %s120
    %p127 = scmp.eq.s32.totalorder %s21, 1
    %p128 = por %p126, %p127
    %p129 = scmp.ne.s32.totalorder %s120, %s121
    %p130 = scmp.eq.s32.totalorder %s21, 0
    %p131 = por %p129, %p130
    %p132 = scmp.ne.s32.totalorder %s120, %s121
    %p133 = scmp.eq.s32.totalorder %s22, 1
    %p134 = por %p132, %p133
    %p136 = scmp.ne.s32.totalorder %s121, %s135
    %p137 = scmp.eq.s32.totalorder %s22, 0
    %p138 = por %p136, %p137
    %s140 = sadd.s32 %s139, 1
    %p143 = scmp.eq.s32.totalorder %s16, 1
    %p144 = scmp.ne.s32.totalorder %s139, %s141
    %p145 = scmp.eq.s32.totalorder %s16, 0
    %p146 = por %p144, %p145
    %p147 = scmp.ne.s32.totalorder %s139, %s141
    %p148 = scmp.eq.s32.totalorder %s21, 1
    %p149 = por %p147, %p148
    %p150 = scmp.ne.s32.totalorder %s141, %s142
    %p151 = scmp.eq.s32.totalorder %s21, 0
    %p152 = por %p150, %p151
    %p153 = scmp.ne.s32.totalorder %s141, %s142
    %p154 = scmp.eq.s32.totalorder %s22, 1
    %p155 = por %p153, %p154
    %p157 = scmp.ne.s32.totalorder %s142, %s156
    %p158 = scmp.eq.s32.totalorder %s22, 0
    %p159 = por %p157, %p158
    %s161 = sadd.s32 %s160, 1
    %p164 = scmp.eq.s32.totalorder %s16, 1
    %p165 = scmp.ne.s32.totalorder %s160, %s162
    %p166 = scmp.eq.s32.totalorder %s16, 0
    %p167 = por %p165, %p166
    %p168 = scmp.ne.s32.totalorder %s160, %s162
    %p169 = scmp.eq.s32.totalorder %s21, 1
    %p170 = por %p168, %p169
    %p171 = scmp.ne.s32.totalorder %s162, %s163
    %p172 = scmp.eq.s32.totalorder %s21, 0
    %p173 = por %p171, %p172
    %p174 = scmp.ne.s32.totalorder %s162, %s163
    %p175 = scmp.eq.s32.totalorder %s22, 1
    %p176 = por %p174, %p175
    %p178 = scmp.ne.s32.totalorder %s163, %s177
    %p179 = scmp.eq.s32.totalorder %s22, 0
    %p180 = por %p178, %p179
    %s182 = sadd.s32 %s181, 1
    %p185 = scmp.eq.s32.totalorder %s16, 1
    %p186 = scmp.ne.s32.totalorder %s181, %s183
    %p187 = scmp.eq.s32.totalorder %s16, 0
    %p188 = por %p186, %p187
    %p189 = scmp.ne.s32.totalorder %s181, %s183
    %p190 = scmp.eq.s32.totalorder %s21, 1
    %p191 = por %p189, %p190
    %p192 = scmp.ne.s32.totalorder %s183, %s184
    %p193 = scmp.eq.s32.totalorder %s21, 0
    %p194 = por %p192, %p193
    %p195 = scmp.ne.s32.totalorder %s183, %s184
    %p196 = scmp.eq.s32.totalorder %s22, 1
    %p197 = por %p195, %p196
    %p199 = scmp.ne.s32.totalorder %s184, %s198
    %p200 = scmp.eq.s32.totalorder %s22, 0
    %p201 = por %p199, %p200
    %s203 = sadd.s32 %s202, 1
    %p206 = scmp.eq.s32.totalorder %s16, 1
    %p207 = scmp.ne.s32.totalorder %s202, %s204
    %p208 = scmp.eq.s32.totalorder %s16, 0
    %p209 = por %p207, %p208
    %p210 = scmp.ne.s32.totalorder %s202, %s204
    %p211 = scmp.eq.s32.totalorder %s21, 1
    %p212 = por %p210, %p211
    %p213 = scmp.ne.s32.totalorder %s204, %s205
    %p214 = scmp.eq.s32.totalorder %s21, 0
    %p215 = por %p213, %p214
    %p216 = scmp.ne.s32.totalorder %s204, %s205
    %p217 = scmp.eq.s32.totalorder %s22, 1
    %p218 = por %p216, %p217
    %p220 = scmp.ne.s32.totalorder %s205, %s219
    %p221 = scmp.eq.s32.totalorder %s22, 0
    %p222 = por %p220, %p221
    %s224 = sadd.s32 %s223, 1
    %p227 = scmp.eq.s32.totalorder %s16, 1
    %p228 = scmp.ne.s32.totalorder %s223, %s225
    %p229 = scmp.eq.s32.totalorder %s16, 0
    %p230 = por %p228, %p229
    %p231 = scmp.ne.s32.totalorder %s223, %s225
    %p232 = scmp.eq.s32.totalorder %s21, 1
    %p233 = por %p231, %p232
    %p234 = scmp.ne.s32.totalorder %s225, %s226
    %p235 = scmp.eq.s32.totalorder %s21, 0
    %p236 = por %p234, %p235
    %p237 = scmp.ne.s32.totalorder %s225, %s226
    %p238 = scmp.eq.s32.totalorder %s22, 1
    %p239 = por %p237, %p238
    %p241 = scmp.ne.s32.totalorder %s226, %s240
    %p242 = scmp.eq.s32.totalorder %s22, 0
    %p243 = por %p241, %p242
    %s244 = ssub.s32 %s16, %s23
    %p245 = scmp.eq.s32.totalorder %s244, 0
    %s247 = sadd.s32 %s246, 1
    %s248 = scalar_select %p245, %s246, %s247
    %p251 = pneg %p245
    %p252 = scmp.eq.s32.totalorder %s16, 1
    %p253 = por %p251, %p252
    %p254 = scmp.ne.s32.totalorder %s246, %s249
    %p255 = scmp.eq.s32.totalorder %s16, 0
    %p256 = por %p254, %p255
    %p257 = scmp.ne.s32.totalorder %s246, %s249
    %p258 = scmp.eq.s32.totalorder %s21, 1
    %p259 = por %p257, %p258
    %p260 = scmp.ne.s32.totalorder %s249, %s250
    %p261 = scmp.eq.s32.totalorder %s21, 0
    %p262 = por %p260, %p261
    %p263 = scmp.ne.s32.totalorder %s249, %s250
    %p264 = scmp.eq.s32.totalorder %s22, 1
    %p265 = por %p263, %p264
    %p267 = scmp.ne.s32.totalorder %s250, %s266
    %p268 = scmp.eq.s32.totalorder %s22, 0
    %p269 = por %p267, %p268
    %p270 = scmp.le.s32.totalorder 1, %s16
    %p271 = scmp.lt.s32.totalorder %s16, 3
    %p272 = pnand %p270, %p271
    %p273 = pneg %p272
    // Predicated region
    $region9: #{_lambda_.24} parent=5 // pred_check
      _
    $region10: #{_lambda_.24} parent=5 // pred_check_branch
      %275 = sbr.rel (%p272) target = $region12
    $region11: #{_lambda_.24} parent=5 // pred_region
      %s276 = ssub.s32 %s16, 1
      // Predicated region
      $region13: #{_lambda_.24} parent=11 // pred_check
        %p277 = pneg %p89
      $region14: #{_lambda_.24} parent=11 // pred_check_branch
        %279 = sbr.rel (%p277) target = $region16
      $region15: #{_lambda_.24} parent=11 // pred_region
        _
      $region16: #{_lambda_.24} parent=11 // pred_fallthru
        _
      // Predicated region
      $region17: #{_lambda_.24} parent=11 // pred_check
        %p280 = pneg %p110
      $region18: #{_lambda_.24} parent=11 // pred_check_branch
        %282 = sbr.rel (%p280) target = $region20
      $region19: #{_lambda_.24} parent=11 // pred_region
        _
      $region20: #{_lambda_.24} parent=11 // pred_fallthru
        _
      // Predicated region
      $region21: #{_lambda_.24} parent=11 // pred_check
        %p283 = pneg %p131
      $region22: #{_lambda_.24} parent=11 // pred_check_branch
        %285 = sbr.rel (%p283) target = $region24
      $region23: #{_lambda_.24} parent=11 // pred_region
        _
      $region24: #{_lambda_.24} parent=11 // pred_fallthru
        _
      // Predicated region
      $region25: #{_lambda_.24} parent=11 // pred_check
        %p286 = pneg %p152
      $region26: #{_lambda_.24} parent=11 // pred_check_branch
        %288 = sbr.rel (%p286) target = $region28
      $region27: #{_lambda_.24} parent=11 // pred_region
        _
      $region28: #{_lambda_.24} parent=11 // pred_fallthru
        _
      // Predicated region
      $region29: #{_lambda_.24} parent=11 // pred_check
        %p289 = pneg %p173
      $region30: #{_lambda_.24} parent=11 // pred_check_branch
        %291 = sbr.rel (%p289) target = $region32
      $region31: #{_lambda_.24} parent=11 // pred_region
        _
      $region32: #{_lambda_.24} parent=11 // pred_fallthru
        _
      // Predicated region
      $region33: #{_lambda_.24} parent=11 // pred_check
        %p292 = pneg %p194
      $region34: #{_lambda_.24} parent=11 // pred_check_branch
        %294 = sbr.rel (%p292) target = $region36
      $region35: #{_lambda_.24} parent=11 // pred_region
        _
      $region36: #{_lambda_.24} parent=11 // pred_fallthru
        _
      // Predicated region
      $region37: #{_lambda_.24} parent=11 // pred_check
        %p295 = pneg %p215
      $region38: #{_lambda_.24} parent=11 // pred_check_branch
        %297 = sbr.rel (%p295) target = $region40
      $region39: #{_lambda_.24} parent=11 // pred_region
        _
      $region40: #{_lambda_.24} parent=11 // pred_fallthru
        _
      // Predicated region
      $region41: #{_lambda_.24} parent=11 // pred_check
        %p298 = pneg %p236
      $region42: #{_lambda_.24} parent=11 // pred_check_branch
        %300 = sbr.rel (%p298) target = $region44
      $region43: #{_lambda_.24} parent=11 // pred_region
        _
      $region44: #{_lambda_.24} parent=11 // pred_fallthru
        _
    $region12: #{_lambda_.24} parent=5 // pred_fallthru
      _
    %p301 = scmp.lt.s32.totalorder %s16, 2
    // Predicated region
    $region45: #{_lambda_.24} parent=5 // pred_check
      %p302 = pneg %p301
    $region46: #{_lambda_.24} parent=5 // pred_check_branch
      %304 = sbr.rel (%p302) target = $region48
    $region47: #{_lambda_.24} parent=5 // pred_region
      // Predicated region
      $region49: #{_lambda_.24} parent=47 // pred_check
        %p305 = pneg %p36
      $region50: #{_lambda_.24} parent=47 // pred_check_branch
        %307 = sbr.rel (%p305) target = $region52
      $region51: #{_lambda_.24} parent=47 // pred_region
        %p308 = scmp.lt.s32.totalorder %s16, 1
        %s309 = scalar_select %p308, %s16, 1
        %s310 = smul.addr %s309, 8
        %s311 = scalar_lea.vmem %s0, %s310
      $region52: #{_lambda_.24} parent=47 // pred_fallthru
        _
      // Predicated region
      $region53: #{_lambda_.24} parent=47 // pred_check
        %p312 = pneg %p62
      $region54: #{_lambda_.24} parent=47 // pred_check_branch
        %314 = sbr.rel (%p312) target = $region56
      $region55: #{_lambda_.24} parent=47 // pred_region
        %p315 = scmp.lt.s32.totalorder %s16, 1
        %s316 = scalar_select %p315, %s16, 1
        %s317 = smul.addr %s316, 8
        %s318 = scalar_lea.vmem %s1, %s317
      $region56: #{_lambda_.24} parent=47 // pred_fallthru
        _
    $region48: #{_lambda_.24} parent=5 // pred_fallthru
      _
    %p319 = scmp.le.s32.totalorder 1, %s16
    %p320 = scmp.lt.s32.totalorder %s16, 3
    %p321 = pnand %p319, %p320
    %p322 = pneg %p321
    // Predicated region
    $region57: #{_lambda_.24} parent=5 // pred_check
      _
    $region58: #{_lambda_.24} parent=5 // pred_check_branch
      %324 = sbr.rel (%p321) target = $region60
    $region59: #{_lambda_.24} parent=5 // pred_region
      %s325 = ssub.s32 %s16, 1
      %p326 = scmp.lt.s32.totalorder %s21, 1
      %s327 = scalar_select %p326, %s21, 1
      %s328 = smul.addr %s327, 8
      %s329 = scalar_lea.vmem %s0, %s328
      %p330 = pneg %p42
      %p331 = pneg %p39
      %p332 = scmp.lt.s32.totalorder %s21, 1
      %s333 = scalar_select %p332, %s21, 1
      %s334 = smul.addr %s333, 8
      %s335 = scalar_lea.vmem %s1, %s334
      %p336 = pneg %p68
      %p337 = pneg %p65
      %p338 = pneg %p89
      %p339 = pneg %p86
      %p340 = pneg %p110
      %p341 = pneg %p107
      %p342 = pneg %p131
      %p343 = pneg %p128
      %p344 = pneg %p152
      %p345 = pneg %p149
      %p346 = pneg %p173
      %p347 = pneg %p170
      %p348 = pneg %p194
      %p349 = pneg %p191
      %p350 = pneg %p215
      %p351 = pneg %p212
      %p352 = pneg %p236
      %p353 = pneg %p233
      %p354 = pneg %p262
      %p355 = pneg %p259
      %p356 = scmp.lt.s32.totalorder %s21, 1
      %s357 = scalar_select %p356, %s21, 1
      %s358 = smul.addr %s357, 4
      %s359 = scalar_lea.vmem %s10, %s358
      %p360 = scmp.lt.s32.totalorder %s21, 1
      %s361 = scalar_select %p360, %s21, 1
      %s362 = smul.addr %s361, 8
      %s363 = scalar_lea.vmem %s0, %s362
      %p364 = scmp.lt.s32.totalorder %s21, 1
      %s365 = scalar_select %p364, %s21, 1
      %s366 = smul.addr %s365, 8
      %s367 = scalar_lea.vmem %s1, %s366
      %p368 = scmp.lt.s32.totalorder %s21, 1
      %s369 = scalar_select %p368, %s21, 1
      %s370 = smul.addr %s369, 4
      %s371 = scalar_lea.vmem %s10, %s370
      %v373 = vld [vmem:[%s367] sm:$0xff]
      %v374 = vld [vmem:[%s363] sm:$0xff]
      %375 = vst [vmem:[#allocation2] sm:$0xff] 0.0
      %376 = vst [vmem:[#allocation2 + $0x8] sm:$0xff] 0.0
      %377 = vst [vmem:[#allocation2 + $0x18] sm:$0xff] 0.0
      %378 = vst [vmem:[#allocation2 + $0x20] sm:$0xff] 0.0
      %380 = vset.pattern.permute.xlu0 0
      %381 = vperm.xlu0 %380, %v373
      %v382 = vpop.permute.xlu0 %381
      %v384 = vmul.f32 %v374, %v382
      %385 = vst [vmem:[#allocation2 + $0x10] sm:$0xff] %v384
      %v386 = vld [vmem:[#allocation2 + $0xf] sm:$0xff]
      %v387 = vld [vmem:[%s2] sm:$0x1]
      %v388 = vlaneseq
      %v389 = vshrl.u32 %v388, 7
      %v390 = vsub.s32 0, %v389
      %v391 = vrot.slane %v387, %v390
      %v392 = vmul.f32 %v386, %v391
      %v393 = vld [vmem:[#allocation2 + $0x10] sm:$0xff]
      %v394 = vld [vmem:[%s2 + $0x1] sm:$0x1]
      %v395 = vlaneseq
      %v396 = vshrl.u32 %v395, 7
      %v397 = vsub.s32 0, %v396
      %v398 = vrot.slane %v394, %v397
      %v399 = vmul.f32 %v393, %v398
      %v400 = vadd.f32 %v392, %v399
      %v401 = vld [vmem:[#allocation2 + $0x11] sm:$0xff]
      %v402 = vld [vmem:[%s2 + $0x2] sm:$0x1]
      %v403 = vlaneseq
      %v404 = vshrl.u32 %v403, 7
      %v405 = vsub.s32 0, %v404
      %v406 = vrot.slane %v402, %v405
      %v407 = vmul.f32 %v401, %v406
      %v408 = vadd.f32 %v400, %v407
      %v409 = vld [vmem:[%s3] sm:$0x1]
      %v410 = vlaneseq
      %v411 = vshrl.u32 %v410, 7
      %v412 = vsub.s32 0, %v411
      %v413 = vrot.slane %v409, %v412
      %v414 = vadd.f32 %v408, %v413
      %415 = vadd.xlane.f32.xlu0 %v414
      %v416 = vpop.xlane.xlu0 %415
      %v417 = vrcp.pop 128.0
      %v418 = vmul.f32 %v416, %v417
      %v419 = vmul.f32 %v414, %v414
      %420 = vadd.xlane.f32.xlu0 %v419
      %v421 = vpop.xlane.xlu0 %420
      %v422 = vmul.f32 %v421, %v417
      %v423 = vmul.f32 %v418, %v418
      %v424 = vsub.f32 %v422, %v423
      %v425 = vsub.f32 %v414, %v418
      %v426 = vadd.f32 %v424, 1e-05
      %v427 = vrsqrt.pop %v426
      %v428 = vmul.f32 %v425, %v427
      %v429 = vld [vmem:[%s4] sm:$0x1]
      %v430 = vlaneseq
      %v431 = vshrl.u32 %v430, 7
      %v432 = vsub.s32 0, %v431
      %v433 = vrot.slane %v429, %v432
      %v434 = vmul.f32 %v428, %v433
      %v435 = vld [vmem:[%s5] sm:$0x1]
      %v436 = vlaneseq
      %v437 = vshrl.u32 %v436, 7
      %v438 = vsub.s32 0, %v437
      %v439 = vrot.slane %v435, %v438
      %v440 = vadd.f32 %v434, %v439
      %v441 = vmul.f32 %v440, 0.5
      %v442 = vmul.f32 %v440, 0.044715
      %v443 = vmul.f32 %v442, %v440
      %v444 = vmul.f32 %v443, %v440
      %v445 = vadd.f32 %v440, %v444
      %v446 = vmul.f32 %v445, 0.7978846
      %v447 = vtanh.pop %v446
      %v448 = vadd.f32 %v447, 1.0
      %v449 = vmul.f32 %v441, %v448
      %v450 = vpack.c.bf16 %v449, %v449
      %v451 = vld [vmem:[%s6] sm:$0xf]
      %v452 = vld [vmem:[%s6 + $0x4] sm:$0xf]
      %v453 = vld [vmem:[%s6 + $0x8] sm:$0xf]
      %v454 = vld [vmem:[%s6 + $0xc] sm:$0xf]
      %v455 = vld [vmem:[%s6 + $0x10] sm:$0xf]
      %v456 = vld [vmem:[%s6 + $0x14] sm:$0xf]
      %v457 = vld [vmem:[%s6 + $0x18] sm:$0xf]
      %v458 = vld [vmem:[%s6 + $0x1c] sm:$0xf]
      %v459 = vld [vmem:[%s6 + $0x20] sm:$0xf]
      %v460 = vld [vmem:[%s6 + $0x24] sm:$0xf]
      %v461 = vld [vmem:[%s6 + $0x28] sm:$0xf]
      %v462 = vld [vmem:[%s6 + $0x2c] sm:$0xf]
      %v463 = vld [vmem:[%s6 + $0x30] sm:$0xf]
      %v464 = vld [vmem:[%s6 + $0x34] sm:$0xf]
      %v465 = vld [vmem:[%s6 + $0x38] sm:$0xf]
      %v466 = vld [vmem:[%s6 + $0x3c] sm:$0xf]
      %v467 = vld [vmem:[%s7] sm:$0x1]
      %v468 = vlaneseq
      %v469 = vshrl.u32 %v468, 7
      %v470 = vsub.s32 0, %v469
      %v471 = vrot.slane %v467, %v470
      %v488 = vunpack.c.l.b16 %v451
      %v489 = vunpack.c.l.b16 %v452
      %v490 = vunpack.c.l.b16 %v453
      %v491 = vunpack.c.l.b16 %v454
      %v492 = vunpack.c.l.b16 %v455
      %v493 = vunpack.c.l.b16 %v456
      %v494 = vunpack.c.l.b16 %v457
      %v495 = vunpack.c.l.b16 %v458
      %v496 = vunpack.c.l.b16 %v459
      %v497 = vunpack.c.l.b16 %v460
      %v498 = vunpack.c.l.b16 %v461
      %v499 = vunpack.c.l.b16 %v462
      %v500 = vunpack.c.l.b16 %v463
      %v501 = vunpack.c.l.b16 %v464
      %v502 = vunpack.c.l.b16 %v465
      %v503 = vunpack.c.l.b16 %v466
      %v504 = vpack.c.b16 %v489, %v488
      %v505 = vpack.c.b16 %v491, %v490
      %v506 = vpack.c.b16 %v493, %v492
      %v507 = vpack.c.b16 %v495, %v494
      %v508 = vpack.c.b16 %v497, %v496
      %v509 = vpack.c.b16 %v499, %v498
      %v510 = vpack.c.b16 %v501, %v500
      %v511 = vpack.c.b16 %v503, %v502
      %520 = vmatprep.subr.bf16.mxu0 0
      %521 = vmatpush1.bf16.msra.mxu0 %v504
      %522 = vmatprep.subr.bf16.mxu0 0
      %523 = vmatpush1.bf16.msra.mxu0 %v505
      %524 = vmatprep.subr.bf16.mxu0 0
      %525 = vmatpush1.bf16.msra.mxu0 %v506
      %526 = vmatprep.subr.bf16.mxu0 0
      %527 = vmatpush1.bf16.msra.mxu0 %v507
      %528 = vmatprep.subr.bf16.mxu0 0
      %529 = vmatpush1.bf16.msra.mxu0 %v508
      %530 = vmatprep.subr.bf16.mxu0 0
      %531 = vmatpush1.bf16.msra.mxu0 %v509
      %532 = vmatprep.subr.bf16.mxu0 0
      %533 = vmatpush1.bf16.msra.mxu0 %v510
      %534 = vmatprep.subr.bf16.mxu0 0
      %535 = vmatpush1.bf16.msra.mxu0 %v511
      %536 = vmatprep.subr.bf16.mxu0 0
      %537 = vmatpush1.bf16.msra.mxu0 0
      %538 = vmatprep.subr.bf16.mxu0 0
      %539 = vmatpush1.bf16.msra.mxu0 0
      %540 = vmatprep.subr.bf16.mxu0 0
      %541 = vmatpush1.bf16.msra.mxu0 0
      %542 = vmatprep.subr.bf16.mxu0 0
      %543 = vmatpush1.bf16.msra.mxu0 0
      %544 = vmatprep.subr.bf16.mxu0 0
      %545 = vmatpush1.bf16.msra.mxu0 0
      %546 = vmatprep.subr.bf16.mxu0 0
      %547 = vmatpush1.bf16.msra.mxu0 0
      %548 = vmatprep.subr.bf16.mxu0 0
      %549 = vmatpush1.bf16.msra.mxu0 0
      %550 = vmatprep.subr.bf16.mxu0 0
      %551 = vmatpush1.bf16.msra.mxu0 0
      %552 = vmatprep.mubr.bf16.mxu0 0
      %553 = vmatmul.mubr.bf16.gmra.mrb[0].mxu0 %v450
      %v554 = vpop.f32.mrb[0].mxu0
      %v555 = vadd.f32 %v471, %v554
      %v556 = vpop.f32.mrb[0].mxu0
      %v557 = vpop.f32.mrb[0].mxu0
      %v558 = vpop.f32.mrb[0].mxu0
      %559 = vdwg.mxu0
      %560 = vadd.xlane.f32.xlu0 %v555
      %v561 = vpop.xlane.xlu0 %560
      %v562 = vmul.f32 %v561, %v417
      %v563 = vmul.f32 %v555, %v555
      %564 = vadd.xlane.f32.xlu0 %v563
      %v565 = vpop.xlane.xlu0 %564
      %v566 = vmul.f32 %v565, %v417
      %v567 = vmul.f32 %v562, %v562
      %v568 = vsub.f32 %v566, %v567
      %v569 = vsub.f32 %v555, %v562
      %v570 = vadd.f32 %v568, 1e-05
      %v571 = vrsqrt.pop %v570
      %v572 = vmul.f32 %v569, %v571
      %v573 = vld [vmem:[%s8] sm:$0x1]
      %v574 = vlaneseq
      %v575 = vshrl.u32 %v574, 7
      %v576 = vsub.s32 0, %v575
      %v577 = vrot.slane %v573, %v576
      %v578 = vmul.f32 %v572, %v577
      %v579 = vld [vmem:[%s9] sm:$0x1]
      %v580 = vlaneseq
      %v581 = vshrl.u32 %v580, 7
      %v582 = vsub.s32 0, %v581
      %v583 = vrot.slane %v579, %v582
      %v584 = vadd.f32 %v578, %v583
      %v585 = vmul.f32 %v584, 0.5
      %v586 = vmul.f32 %v584, 0.044715
      %v587 = vmul.f32 %v586, %v584
      %v588 = vmul.f32 %v587, %v584
      %v589 = vadd.f32 %v584, %v588
      %v590 = vmul.f32 %v589, 0.7978846
      %v591 = vtanh.pop %v590
      %v592 = vadd.f32 %v591, 1.0
      %v593 = vmul.f32 %v585, %v592
      %v594 = vadd.f32 %v374, %v593
      %v595 = vmul.f32 %v594, %v382
      %596 = vst [vmem:[#allocation2 + $0x10] sm:$0xff] %v595
      %v597 = vld [vmem:[#allocation2 + $0xd] sm:$0xff]
      %v598 = vld [vmem:[%s2 + $0x3] sm:$0x1]
      %v599 = vlaneseq
      %v600 = vshrl.u32 %v599, 7
      %v601 = vsub.s32 0, %v600
      %v602 = vrot.slane %v598, %v601
      %v603 = vmul.f32 %v597, %v602
      %v604 = vld [vmem:[#allocation2 + $0x10] sm:$0xff]
      %v605 = vld [vmem:[%s2 + $0x4] sm:$0x1]
      %v606 = vlaneseq
      %v607 = vshrl.u32 %v606, 7
      %v608 = vsub.s32 0, %v607
      %v609 = vrot.slane %v605, %v608
      %v610 = vmul.f32 %v604, %v609
      %v611 = vadd.f32 %v603, %v610
      %v612 = vld [vmem:[#allocation2 + $0x13] sm:$0xff]
      %v613 = vld [vmem:[%s2 + $0x5] sm:$0x1]
      %v614 = vlaneseq
      %v615 = vshrl.u32 %v614, 7
      %v616 = vsub.s32 0, %v615
      %v617 = vrot.slane %v613, %v616
      %v618 = vmul.f32 %v612, %v617
      %v619 = vadd.f32 %v611, %v618
      %v620 = vld [vmem:[%s3 + $0x1] sm:$0x1]
      %v621 = vlaneseq
      %v622 = vshrl.u32 %v621, 7
      %v623 = vsub.s32 0, %v622
      %v624 = vrot.slane %v620, %v623
      %v625 = vadd.f32 %v619, %v624
      %626 = vadd.xlane.f32.xlu0 %v625
      %v627 = vpop.xlane.xlu0 %626
      %v628 = vmul.f32 %v627, %v417
      %v629 = vmul.f32 %v625, %v625
      %630 = vadd.xlane.f32.xlu0 %v629
      %v631 = vpop.xlane.xlu0 %630
      %v632 = vmul.f32 %v631, %v417
      %v633 = vmul.f32 %v628, %v628
      %v634 = vsub.f32 %v632, %v633
      %v635 = vsub.f32 %v625, %v628
      %v636 = vadd.f32 %v634, 1e-05
      %v637 = vrsqrt.pop %v636
      %v638 = vmul.f32 %v635, %v637
      %v639 = vld [vmem:[%s4 + $0x1] sm:$0x1]
      %v640 = vlaneseq
      %v641 = vshrl.u32 %v640, 7
      %v642 = vsub.s32 0, %v641
      %v643 = vrot.slane %v639, %v642
      %v644 = vmul.f32 %v638, %v643
      %v645 = vld [vmem:[%s5 + $0x1] sm:$0x1]
      %v646 = vlaneseq
      %v647 = vshrl.u32 %v646, 7
      %v648 = vsub.s32 0, %v647
      %v649 = vrot.slane %v645, %v648
      %v650 = vadd.f32 %v644, %v649
      %v651 = vmul.f32 %v650, 0.5
      %v652 = vmul.f32 %v650, 0.044715
      %v653 = vmul.f32 %v652, %v650
      %v654 = vmul.f32 %v653, %v650
      %v655 = vadd.f32 %v650, %v654
      %v656 = vmul.f32 %v655, 0.7978846
      %v657 = vtanh.pop %v656
      %v658 = vadd.f32 %v657, 1.0
      %v659 = vmul.f32 %v651, %v658
      %v660 = vpack.c.bf16 %v659, %v659
      %s661 = scalar_lea.vmem %s6, 64
      %v662 = vld [vmem:[%s661] sm:$0xf]
      %v663 = vld [vmem:[%s661 + $0x4] sm:$0xf]
      %v664 = vld [vmem:[%s661 + $0x8] sm:$0xf]
      %v665 = vld [vmem:[%s661 + $0xc] sm:$0xf]
      %v666 = vld [vmem:[%s661 + $0x10] sm:$0xf]
      %v667 = vld [vmem:[%s661 + $0x14] sm:$0xf]
      %v668 = vld [vmem:[%s661 + $0x18] sm:$0xf]
      %v669 = vld [vmem:[%s661 + $0x1c] sm:$0xf]
      %v670 = vld [vmem:[%s661 + $0x20] sm:$0xf]
      %v671 = vld [vmem:[%s661 + $0x24] sm:$0xf]
      %v672 = vld [vmem:[%s661 + $0x28] sm:$0xf]
      %v673 = vld [vmem:[%s661 + $0x2c] sm:$0xf]
      %v674 = vld [vmem:[%s661 + $0x30] sm:$0xf]
      %v675 = vld [vmem:[%s661 + $0x34] sm:$0xf]
      %v676 = vld [vmem:[%s661 + $0x38] sm:$0xf]
      %v677 = vld [vmem:[%s661 + $0x3c] sm:$0xf]
      %v678 = vld [vmem:[%s7 + $0x1] sm:$0x1]
      %v679 = vlaneseq
      %v680 = vshrl.u32 %v679, 7
      %v681 = vsub.s32 0, %v680
      %v682 = vrot.slane %v678, %v681
      %v699 = vunpack.c.l.b16 %v662
      %v700 = vunpack.c.l.b16 %v663
      %v701 = vunpack.c.l.b16 %v664
      %v702 = vunpack.c.l.b16 %v665
      %v703 = vunpack.c.l.b16 %v666
      %v704 = vunpack.c.l.b16 %v667
      %v705 = vunpack.c.l.b16 %v668
      %v706 = vunpack.c.l.b16 %v669
      %v707 = vunpack.c.l.b16 %v670
      %v708 = vunpack.c.l.b16 %v671
      %v709 = vunpack.c.l.b16 %v672
      %v710 = vunpack.c.l.b16 %v673
      %v711 = vunpack.c.l.b16 %v674
      %v712 = vunpack.c.l.b16 %v675
      %v713 = vunpack.c.l.b16 %v676
      %v714 = vunpack.c.l.b16 %v677
      %v715 = vpack.c.b16 %v700, %v699
      %v716 = vpack.c.b16 %v702, %v701
      %v717 = vpack.c.b16 %v704, %v703
      %v718 = vpack.c.b16 %v706, %v705
      %v719 = vpack.c.b16 %v708, %v707
      %v720 = vpack.c.b16 %v710, %v709
      %v721 = vpack.c.b16 %v712, %v711
      %v722 = vpack.c.b16 %v714, %v713
      %731 = vmatprep.subr.bf16.mxu0 0
      %732 = vmatpush1.bf16.msra.mxu0 %v715
      %733 = vmatprep.subr.bf16.mxu0 0
      %734 = vmatpush1.bf16.msra.mxu0 %v716
      %735 = vmatprep.subr.bf16.mxu0 0
      %736 = vmatpush1.bf16.msra.mxu0 %v717
      %737 = vmatprep.subr.bf16.mxu0 0
      %738 = vmatpush1.bf16.msra.mxu0 %v718
      %739 = vmatprep.subr.bf16.mxu0 0
      %740 = vmatpush1.bf16.msra.mxu0 %v719
      %741 = vmatprep.subr.bf16.mxu0 0
      %742 = vmatpush1.bf16.msra.mxu0 %v720
      %743 = vmatprep.subr.bf16.mxu0 0
      %744 = vmatpush1.bf16.msra.mxu0 %v721
      %745 = vmatprep.subr.bf16.mxu0 0
      %746 = vmatpush1.bf16.msra.mxu0 %v722
      %747 = vmatprep.subr.bf16.mxu0 0
      %748 = vmatpush1.bf16.msra.mxu0 0
      %749 = vmatprep.subr.bf16.mxu0 0
      %750 = vmatpush1.bf16.msra.mxu0 0
      %751 = vmatprep.subr.bf16.mxu0 0
      %752 = vmatpush1.bf16.msra.mxu0 0
      %753 = vmatprep.subr.bf16.mxu0 0
      %754 = vmatpush1.bf16.msra.mxu0 0
      %755 = vmatprep.subr.bf16.mxu0 0
      %756 = vmatpush1.bf16.msra.mxu0 0
      %757 = vmatprep.subr.bf16.mxu0 0
      %758 = vmatpush1.bf16.msra.mxu0 0
      %759 = vmatprep.subr.bf16.mxu0 0
      %760 = vmatpush1.bf16.msra.mxu0 0
      %761 = vmatprep.subr.bf16.mxu0 0
      %762 = vmatpush1.bf16.msra.mxu0 0
      %763 = vmatprep.mubr.bf16.mxu0 0
      %764 = vmatmul.mubr.bf16.gmra.mrb[0].mxu0 %v660
      %v765 = vpop.f32.mrb[0].mxu0
      %v766 = vadd.f32 %v682, %v765
      %v767 = vpop.f32.mrb[0].mxu0
      %v768 = vpop.f32.mrb[0].mxu0
      %v769 = vpop.f32.mrb[0].mxu0
      %770 = vdwg.mxu0
      %771 = vadd.xlane.f32.xlu0 %v766
      %v772 = vpop.xlane.xlu0 %771
      %v773 = vmul.f32 %v772, %v417
      %v774 = vmul.f32 %v766, %v766
      %775 = vadd.xlane.f32.xlu0 %v774
      %v776 = vpop.xlane.xlu0 %775
      %v777 = vmul.f32 %v776, %v417
      %v778 = vmul.f32 %v773, %v773
      %v779 = vsub.f32 %v777, %v778
      %v780 = vsub.f32 %v766, %v773
      %v781 = vadd.f32 %v779, 1e-05
      %v782 = vrsqrt.pop %v781
      %v783 = vmul.f32 %v780, %v782
      %v784 = vld [vmem:[%s8 + $0x1] sm:$0x1]
      %v785 = vlaneseq
      %v786 = vshrl.u32 %v785, 7
      %v787 = vsub.s32 0, %v786
      %v788 = vrot.slane %v784, %v787
      %v789 = vmul.f32 %v783, %v788
      %v790 = vld [vmem:[%s9 + $0x1] sm:$0x1]
      %v791 = vlaneseq
      %v792 = vshrl.u32 %v791, 7
      %v793 = vsub.s32 0, %v792
      %v794 = vrot.slane %v790, %v793
      %v795 = vadd.f32 %v789, %v794
      %v796 = vmul.f32 %v795, 0.5
      %v797 = vmul.f32 %v795, 0.044715
      %v798 = vmul.f32 %v797, %v795
      %v799 = vmul.f32 %v798, %v795
      %v800 = vadd.f32 %v795, %v799
      %v801 = vmul.f32 %v800, 0.7978846
      %v802 = vtanh.pop %v801
      %v803 = vadd.f32 %v802, 1.0
      %v804 = vmul.f32 %v796, %v803
      %v805 = vadd.f32 %v594, %v804
      %v806 = vmul.f32 %v805, %v382
      %807 = vst [vmem:[#allocation2 + $0x10] sm:$0xff] %v806
      %v808 = vld [vmem:[#allocation2 + $0x7] sm:$0xff]
      %v809 = vld [vmem:[%s2 + $0x6] sm:$0x1]
      %v810 = vlaneseq
      %v811 = vshrl.u32 %v810, 7
      %v812 = vsub.s32 0, %v811
      %v813 = vrot.slane %v809, %v812
      %v814 = vmul.f32 %v808, %v813
      %v815 = vld [vmem:[#allocation2 + $0x10] sm:$0xff]
      %v816 = vld [vmem:[%s2 + $0x7] sm:$0x1]
      %v817 = vlaneseq
      %v818 = vshrl.u32 %v817, 7
      %v819 = vsub.s32 0, %v818
      %v820 = vrot.slane %v816, %v819
      %v821 = vmul.f32 %v815, %v820
      %v822 = vadd.f32 %v814, %v821
      %v823 = vld [vmem:[#allocation2 + $0x19] sm:$0xff]
      %v824 = vld [vmem:[%s2 + $0x8] sm:$0x1]
      %v825 = vlaneseq
      %v826 = vshrl.u32 %v825, 7
      %v827 = vsub.s32 0, %v826
      %v828 = vrot.slane %v824, %v827
      %v829 = vmul.f32 %v823, %v828
      %v830 = vadd.f32 %v822, %v829
      %v831 = vld [vmem:[%s3 + $0x2] sm:$0x1]
      %v832 = vlaneseq
      %v833 = vshrl.u32 %v832, 7
      %v834 = vsub.s32 0, %v833
      %v835 = vrot.slane %v831, %v834
      %v836 = vadd.f32 %v830, %v835
      %837 = vadd.xlane.f32.xlu0 %v836
      %v838 = vpop.xlane.xlu0 %837
      %v839 = vmul.f32 %v838, %v417
      %v840 = vmul.f32 %v836, %v836
      %841 = vadd.xlane.f32.xlu0 %v840
      %v842 = vpop.xlane.xlu0 %841
      %v843 = vmul.f32 %v842, %v417
      %v844 = vmul.f32 %v839, %v839
      %v845 = vsub.f32 %v843, %v844
      %v846 = vsub.f32 %v836, %v839
      %v847 = vadd.f32 %v845, 1e-05
      %v848 = vrsqrt.pop %v847
      %v849 = vmul.f32 %v846, %v848
      %v850 = vld [vmem:[%s4 + $0x2] sm:$0x1]
      %v851 = vlaneseq
      %v852 = vshrl.u32 %v851, 7
      %v853 = vsub.s32 0, %v852
      %v854 = vrot.slane %v850, %v853
      %v855 = vmul.f32 %v849, %v854
      %v856 = vld [vmem:[%s5 + $0x2] sm:$0x1]
      %v857 = vlaneseq
      %v858 = vshrl.u32 %v857, 7
      %v859 = vsub.s32 0, %v858
      %v860 = vrot.slane %v856, %v859
      %v861 = vadd.f32 %v855, %v860
      %v862 = vmul.f32 %v861, 0.5
      %v863 = vmul.f32 %v861, 0.044715
      %v864 = vmul.f32 %v863, %v861
      %v865 = vmul.f32 %v864, %v861
      %v866 = vadd.f32 %v861, %v865
      %v867 = vmul.f32 %v866, 0.7978846
      %v868 = vtanh.pop %v867
      %v869 = vadd.f32 %v868, 1.0
      %v870 = vmul.f32 %v862, %v869
      %v871 = vpack.c.bf16 %v870, %v870
      %s872 = scalar_lea.vmem %s6, 128
      %v873 = vld [vmem:[%s872] sm:$0xf]
      %v874 = vld [vmem:[%s872 + $0x4] sm:$0xf]
      %v875 = vld [vmem:[%s872 + $0x8] sm:$0xf]
      %v876 = vld [vmem:[%s872 + $0xc] sm:$0xf]
      %v877 = vld [vmem:[%s872 + $0x10] sm:$0xf]
      %v878 = vld [vmem:[%s872 + $0x14] sm:$0xf]
      %v879 = vld [vmem:[%s872 + $0x18] sm:$0xf]
      %v880 = vld [vmem:[%s872 + $0x1c] sm:$0xf]
      %v881 = vld [vmem:[%s872 + $0x20] sm:$0xf]
      %v882 = vld [vmem:[%s872 + $0x24] sm:$0xf]
      %v883 = vld [vmem:[%s872 + $0x28] sm:$0xf]
      %v884 = vld [vmem:[%s872 + $0x2c] sm:$0xf]
      %v885 = vld [vmem:[%s872 + $0x30] sm:$0xf]
      %v886 = vld [vmem:[%s872 + $0x34] sm:$0xf]
      %v887 = vld [vmem:[%s872 + $0x38] sm:$0xf]
      %v888 = vld [vmem:[%s872 + $0x3c] sm:$0xf]
      %v889 = vld [vmem:[%s7 + $0x2] sm:$0x1]
      %v890 = vlaneseq
      %v891 = vshrl.u32 %v890, 7
      %v892 = vsub.s32 0, %v891
      %v893 = vrot.slane %v889, %v892
      %v910 = vunpack.c.l.b16 %v873
      %v911 = vunpack.c.l.b16 %v874
      %v912 = vunpack.c.l.b16 %v875
      %v913 = vunpack.c.l.b16 %v876
      %v914 = vunpack.c.l.b16 %v877
      %v915 = vunpack.c.l.b16 %v878
      %v916 = vunpack.c.l.b16 %v879
      %v917 = vunpack.c.l.b16 %v880
      %v918 = vunpack.c.l.b16 %v881
      %v919 = vunpack.c.l.b16 %v882
      %v920 = vunpack.c.l.b16 %v883
      %v921 = vunpack.c.l.b16 %v884
      %v922 = vunpack.c.l.b16 %v885
      %v923 = vunpack.c.l.b16 %v886
      %v924 = vunpack.c.l.b16 %v887
      %v925 = vunpack.c.l.b16 %v888
      %v926 = vpack.c.b16 %v911, %v910
      %v927 = vpack.c.b16 %v913, %v912
      %v928 = vpack.c.b16 %v915, %v914
      %v929 = vpack.c.b16 %v917, %v916
      %v930 = vpack.c.b16 %v919, %v918
      %v931 = vpack.c.b16 %v921, %v920
      %v932 = vpack.c.b16 %v923, %v922
      %v933 = vpack.c.b16 %v925, %v924
      %942 = vmatprep.subr.bf16.mxu0 0
      %943 = vmatpush1.bf16.msra.mxu0 %v926
      %944 = vmatprep.subr.bf16.mxu0 0
      %945 = vmatpush1.bf16.msra.mxu0 %v927
      %946 = vmatprep.subr.bf16.mxu0 0
      %947 = vmatpush1.bf16.msra.mxu0 %v928
      %948 = vmatprep.subr.bf16.mxu0 0
      %949 = vmatpush1.bf16.msra.mxu0 %v929
      %950 = vmatprep.subr.bf16.mxu0 0
      %951 = vmatpush1.bf16.msra.mxu0 %v930
      %952 = vmatprep.subr.bf16.mxu0 0
      %953 = vmatpush1.bf16.msra.mxu0 %v931
      %954 = vmatprep.subr.bf16.mxu0 0
      %955 = vmatpush1.bf16.msra.mxu0 %v932
      %956 = vmatprep.subr.bf16.mxu0 0
      %957 = vmatpush1.bf16.msra.mxu0 %v933
      %958 = vmatprep.subr.bf16.mxu0 0
      %959 = vmatpush1.bf16.msra.mxu0 0
      %960 = vmatprep.subr.bf16.mxu0 0
      %961 = vmatpush1.bf16.msra.mxu0 0
      %962 = vmatprep.subr.bf16.mxu0 0
      %963 = vmatpush1.bf16.msra.mxu0 0
      %964 = vmatprep.subr.bf16.mxu0 0
      %965 = vmatpush1.bf16.msra.mxu0 0
      %966 = vmatprep.subr.bf16.mxu0 0
      %967 = vmatpush1.bf16.msra.mxu0 0
      %968 = vmatprep.subr.bf16.mxu0 0
      %969 = vmatpush1.bf16.msra.mxu0 0
      %970 = vmatprep.subr.bf16.mxu0 0
      %971 = vmatpush1.bf16.msra.mxu0 0
      %972 = vmatprep.subr.bf16.mxu0 0
      %973 = vmatpush1.bf16.msra.mxu0 0
      %974 = vmatprep.mubr.bf16.mxu0 0
      %975 = vmatmul.mubr.bf16.gmra.mrb[0].mxu0 %v871
      %v976 = vpop.f32.mrb[0].mxu0
      %v977 = vadd.f32 %v893, %v976
      %v978 = vpop.f32.mrb[0].mxu0
      %v979 = vpop.f32.mrb[0].mxu0
      %v980 = vpop.f32.mrb[0].mxu0
      %981 = vdwg.mxu0
      %982 = vadd.xlane.f32.xlu0 %v977
      %v983 = vpop.xlane.xlu0 %982
      %v984 = vmul.f32 %v983, %v417
      %v985 = vmul.f32 %v977, %v977
      %986 = vadd.xlane.f32.xlu0 %v985
      %v987 = vpop.xlane.xlu0 %986
      %v988 = vmul.f32 %v987, %v417
      %v989 = vmul.f32 %v984, %v984
      %v990 = vsub.f32 %v988, %v989
      %v991 = vsub.f32 %v977, %v984
      %v992 = vadd.f32 %v990, 1e-05
      %v993 = vrsqrt.pop %v992
      %v994 = vmul.f32 %v991, %v993
      %v995 = vld [vmem:[%s8 + $0x2] sm:$0x1]
      %v996 = vlaneseq
      %v997 = vshrl.u32 %v996, 7
      %v998 = vsub.s32 0, %v997
      %v999 = vrot.slane %v995, %v998
      %v1000 = vmul.f32 %v994, %v999
      %v1001 = vld [vmem:[%s9 + $0x2] sm:$0x1]
      %v1002 = vlaneseq
      %v1003 = vshrl.u32 %v1002, 7
      %v1004 = vsub.s32 0, %v1003
      %v1005 = vrot.slane %v1001, %v1004
      %v1006 = vadd.f32 %v1000, %v1005
      %v1007 = vmul.f32 %v1006, 0.5
      %v1008 = vmul.f32 %v1006, 0.044715
      %v1009 = vmul.f32 %v1008, %v1006
      %v1010 = vmul.f32 %v1009, %v1006
      %v1011 = vadd.f32 %v1006, %v1010
      %v1012 = vmul.f32 %v1011, 0.7978846
      %v1013 = vtanh.pop %v1012
      %v1014 = vadd.f32 %v1013, 1.0
      %v1015 = vmul.f32 %v1007, %v1014
      %v1016 = vadd.f32 %v805, %v1015
      %v1017 = vmul.f32 %v1016, %v382
      %v1018 = vpack.c.bf16 %v1017, %v1017
      %1019 = vst [vmem:[%s371] sm:$0xf] %v1018
      %p1020 = scmp.lt.s32.totalorder %s21, 1
      %s1021 = scalar_select %p1020, %s21, 1
      %s1022 = smul.addr %s1021, 4
      %s1023 = scalar_lea.vmem %s10, %s1022
      // Predicated region
      $region61: #{_lambda_.24} parent=59 // pred_check
        %p1024 = pneg %p259
      $region62: #{_lambda_.24} parent=59 // pred_check_branch
        %1026 = sbr.rel (%p1024) target = $region64
      $region63: #{_lambda_.24} parent=59 // pred_region
        _
      $region64: #{_lambda_.24} parent=59 // pred_fallthru
        _
    $region60: #{_lambda_.24} parent=5 // pred_fallthru
      _
    %p1027 = scmp.le.s32.totalorder 2, %s16
    // Predicated region
    $region65: #{_lambda_.24} parent=5 // pred_check
      %p1028 = pneg %p1027
    $region66: #{_lambda_.24} parent=5 // pred_check_branch
      %1030 = sbr.rel (%p1028) target = $region68
    $region67: #{_lambda_.24} parent=5 // pred_region
      %s1031 = ssub.s32 %s16, 2
      // Predicated region
      $region69: #{_lambda_.24} parent=67 // pred_check
        %p1032 = pneg %p265
      $region70: #{_lambda_.24} parent=67 // pred_check_branch
        %1034 = sbr.rel (%p1032) target = $region72
      $region71: #{_lambda_.24} parent=67 // pred_region
        %p1035 = scmp.lt.s32.totalorder %s22, 1
        %s1036 = scalar_select %p1035, %s22, 1
        %s1037 = smul.addr %s1036, 4
        %s1038 = scalar_lea.vmem %s10, %s1037
      $region72: #{_lambda_.24} parent=67 // pred_fallthru
        _
    $region68: #{_lambda_.24} parent=5 // pred_fallthru
      _
  $region6: #{_lambda_.24} parent=0 // loop_footer
    %s20 = sadd.s32 1, %s16
  $region7: #{_lambda_.24} parent=0 // loop_footer_branch
    %15 = sbr.rel target = $region3
  $region8: #{_lambda_.24} parent=0 // loop_exit
    _

// kernel: _lambda_.26
$region0: #{_lambda_.26}
  #allocation0 [shape = 'u32[]', space=smem, size = 0x4, offset = 0x4, fixed_abs, tag = 'smem constant byte address 0x4 - core index']
  #allocation1 [shape = 'u32[144,128]{1,0:T(1,128)}', space=vmem, size = 0x12000, scoped, tag = 'internal scratch']
  #allocation2 [shape = 'f32[40,128]{1,0:T(8,128)}', space=vmem, size = 0x5000, scoped, tag = 'scratch operand']
  %s0 = inlined_call_operand.vmem [shape: f32[2,8,128], index: 0, kind: input, shape index: {}]
  %s1 = inlined_call_operand.vmem [shape: f32[2,8,1], index: 1, kind: input, shape index: {}]
  %s2 = inlined_call_operand.vmem [shape: f32[2,8,128], index: 2, kind: input, shape index: {}]
  %s3 = inlined_call_operand.vmem [shape: f32[9,128], index: 3, kind: input, shape index: {}]
  %s4 = inlined_call_operand.vmem [shape: f32[3,128], index: 4, kind: input, shape index: {}]
  %s5 = inlined_call_operand.vmem [shape: f32[3,128], index: 5, kind: input, shape index: {}, may-alias: {5,9}]
  %s6 = inlined_call_operand.vmem [shape: f32[3,128], index: 6, kind: input, shape index: {}, may-alias: {6,10}]
  %s7 = inlined_call_operand.vmem [shape: bf16[3,128,128], index: 7, kind: input, shape index: {}]
  %s8 = inlined_call_operand.vmem [shape: f32[3,128], index: 8, kind: input, shape index: {}]
  %s9 = inlined_call_operand.vmem [shape: f32[3,128], index: 9, kind: input, shape index: {}, may-alias: {5,9}]
  %s10 = inlined_call_operand.vmem [shape: f32[3,128], index: 10, kind: input, shape index: {}, may-alias: {6,10}]
  %s11 = inlined_call_operand.vmem [shape: bf16[2,8,128], index: 11, kind: output, shape index: {}]
  %s12 = sld [smem:[#allocation0]]
  $region77: #{_lambda_.26} parent=0
    _
  %s14 = ssub.s32 1, %s12
  %s15 = scalar_select 0, %s14, %s12
  loop: start=0, step=1, limit=4
  $region2: #{_lambda_.26} parent=0 // loop_pre_header
    _
  $region3: #{_lambda_.26} parent=0 // loop_header
    %s17 = sphi 0, %s21
    %p18 = scmp.ge.s32.totalorder %s17, 4
    %s27 = sphi 0, %s29
    %s30 = sphi 0, %s27
    %s31 = sphi 0, %s30
    %s47 = sphi 0, %s31
    %s53 = sphi 0, %s55
    %s56 = sphi 0, %s53
    %s57 = sphi 0, %s56
    %s73 = sphi 0, %s57
    %s79 = sphi 0, %s81
    %s82 = sphi 0, %s79
    %s83 = sphi 0, %s82
    %s99 = sphi 0, %s83
    %s103 = sphi 0, %s103
    %s105 = sphi 0, %s103
    %s106 = sphi 0, %s105
    %s120 = sphi 0, %s106
    %s124 = sphi 0, %s124
    %s126 = sphi 0, %s124
    %s127 = sphi 0, %s126
    %s141 = sphi 0, %s127
    %s145 = sphi 0, %s145
    %s147 = sphi 0, %s145
    %s148 = sphi 0, %s147
    %s162 = sphi 0, %s148
    %s166 = sphi 0, %s166
    %s168 = sphi 0, %s166
    %s169 = sphi 0, %s168
    %s183 = sphi 0, %s169
    %s187 = sphi 0, %s187
    %s189 = sphi 0, %s187
    %s190 = sphi 0, %s189
    %s204 = sphi 0, %s190
    %s208 = sphi 0, %s208
    %s210 = sphi 0, %s208
    %s211 = sphi 0, %s210
    %s225 = sphi 0, %s211
    %s229 = sphi 0, %s229
    %s231 = sphi 0, %s229
    %s232 = sphi 0, %s231
    %s246 = sphi 0, %s232
    %s250 = sphi 0, %s250
    %s252 = sphi 0, %s250
    %s253 = sphi 0, %s252
    %s267 = sphi 0, %s253
    %s273 = sphi 0, %s275
    %s276 = sphi 0, %s273
    %s277 = sphi 0, %s276
    %s293 = sphi 0, %s277
  $region4: #{_lambda_.26} parent=0 // loop_header_branch
    %20 = sbr.rel (%p18) target = $region8
  $region5: #{_lambda_.26} parent=0 // loop_body
    %s22 = ssub.s32 %s17, 1
    %s23 = ssub.s32 %s17, 2
    %s24 = sadd.s32 %s17, 1
    %s25 = ssub.s32 %s17, %s24
    %p26 = scmp.eq.s32.totalorder %s25, 0
    %s28 = sadd.s32 %s27, 1
    %s29 = scalar_select %p26, %s27, %s28
    %p32 = pneg %p26
    %p33 = scmp.eq.s32.totalorder %s17, 1
    %p34 = por %p32, %p33
    %p35 = scmp.ne.s32.totalorder %s27, %s30
    %p36 = scmp.eq.s32.totalorder %s17, 0
    %p37 = por %p35, %p36
    %p38 = scmp.ne.s32.totalorder %s27, %s30
    %p39 = scmp.eq.s32.totalorder %s22, 1
    %p40 = por %p38, %p39
    %p41 = scmp.ne.s32.totalorder %s30, %s31
    %p42 = scmp.eq.s32.totalorder %s22, 0
    %p43 = por %p41, %p42
    %p44 = scmp.ne.s32.totalorder %s30, %s31
    %p45 = scmp.eq.s32.totalorder %s23, 1
    %p46 = por %p44, %p45
    %p48 = scmp.ne.s32.totalorder %s31, %s47
    %p49 = scmp.eq.s32.totalorder %s23, 0
    %p50 = por %p48, %p49
    %s51 = ssub.s32 %s17, %s24
    %p52 = scmp.eq.s32.totalorder %s51, 0
    %s54 = sadd.s32 %s53, 1
    %s55 = scalar_select %p52, %s53, %s54
    %p58 = pneg %p52
    %p59 = scmp.eq.s32.totalorder %s17, 1
    %p60 = por %p58, %p59
    %p61 = scmp.ne.s32.totalorder %s53, %s56
    %p62 = scmp.eq.s32.totalorder %s17, 0
    %p63 = por %p61, %p62
    %p64 = scmp.ne.s32.totalorder %s53, %s56
    %p65 = scmp.eq.s32.totalorder %s22, 1
    %p66 = por %p64, %p65
    %p67 = scmp.ne.s32.totalorder %s56, %s57
    %p68 = scmp.eq.s32.totalorder %s22, 0
    %p69 = por %p67, %p68
    %p70 = scmp.ne.s32.totalorder %s56, %s57
    %p71 = scmp.eq.s32.totalorder %s23, 1
    %p72 = por %p70, %p71
    %p74 = scmp.ne.s32.totalorder %s57, %s73
    %p75 = scmp.eq.s32.totalorder %s23, 0
    %p76 = por %p74, %p75
    %s77 = ssub.s32 %s17, %s24
    %p78 = scmp.eq.s32.totalorder %s77, 0
    %s80 = sadd.s32 %s79, 1
    %s81 = scalar_select %p78, %s79, %s80
    %p84 = pneg %p78
    %p85 = scmp.eq.s32.totalorder %s17, 1
    %p86 = por %p84, %p85
    %p87 = scmp.ne.s32.totalorder %s79, %s82
    %p88 = scmp.eq.s32.totalorder %s17, 0
    %p89 = por %p87, %p88
    %p90 = scmp.ne.s32.totalorder %s79, %s82
    %p91 = scmp.eq.s32.totalorder %s22, 1
    %p92 = por %p90, %p91
    %p93 = scmp.ne.s32.totalorder %s82, %s83
    %p94 = scmp.eq.s32.totalorder %s22, 0
    %p95 = por %p93, %p94
    %p96 = scmp.ne.s32.totalorder %s82, %s83
    %p97 = scmp.eq.s32.totalorder %s23, 1
    %p98 = por %p96, %p97
    %p100 = scmp.ne.s32.totalorder %s83, %s99
    %p101 = scmp.eq.s32.totalorder %s23, 0
    %p102 = por %p100, %p101
    %s104 = sadd.s32 %s103, 1
    %p107 = scmp.eq.s32.totalorder %s17, 1
    %p108 = scmp.ne.s32.totalorder %s103, %s105
    %p109 = scmp.eq.s32.totalorder %s17, 0
    %p110 = por %p108, %p109
    %p111 = scmp.ne.s32.totalorder %s103, %s105
    %p112 = scmp.eq.s32.totalorder %s22, 1
    %p113 = por %p111, %p112
    %p114 = scmp.ne.s32.totalorder %s105, %s106
    %p115 = scmp.eq.s32.totalorder %s22, 0
    %p116 = por %p114, %p115
    %p117 = scmp.ne.s32.totalorder %s105, %s106
    %p118 = scmp.eq.s32.totalorder %s23, 1
    %p119 = por %p117, %p118
    %p121 = scmp.ne.s32.totalorder %s106, %s120
    %p122 = scmp.eq.s32.totalorder %s23, 0
    %p123 = por %p121, %p122
    %s125 = sadd.s32 %s124, 1
    %p128 = scmp.eq.s32.totalorder %s17, 1
    %p129 = scmp.ne.s32.totalorder %s124, %s126
    %p130 = scmp.eq.s32.totalorder %s17, 0
    %p131 = por %p129, %p130
    %p132 = scmp.ne.s32.totalorder %s124, %s126
    %p133 = scmp.eq.s32.totalorder %s22, 1
    %p134 = por %p132, %p133
    %p135 = scmp.ne.s32.totalorder %s126, %s127
    %p136 = scmp.eq.s32.totalorder %s22, 0
    %p137 = por %p135, %p136
    %p138 = scmp.ne.s32.totalorder %s126, %s127
    %p139 = scmp.eq.s32.totalorder %s23, 1
    %p140 = por %p138, %p139
    %p142 = scmp.ne.s32.totalorder %s127, %s141
    %p143 = scmp.eq.s32.totalorder %s23, 0
    %p144 = por %p142, %p143
    %s146 = sadd.s32 %s145, 1
    %p149 = scmp.eq.s32.totalorder %s17, 1
    %p150 = scmp.ne.s32.totalorder %s145, %s147
    %p151 = scmp.eq.s32.totalorder %s17, 0
    %p152 = por %p150, %p151
    %p153 = scmp.ne.s32.totalorder %s145, %s147
    %p154 = scmp.eq.s32.totalorder %s22, 1
    %p155 = por %p153, %p154
    %p156 = scmp.ne.s32.totalorder %s147, %s148
    %p157 = scmp.eq.s32.totalorder %s22, 0
    %p158 = por %p156, %p157
    %p159 = scmp.ne.s32.totalorder %s147, %s148
    %p160 = scmp.eq.s32.totalorder %s23, 1
    %p161 = por %p159, %p160
    %p163 = scmp.ne.s32.totalorder %s148, %s162
    %p164 = scmp.eq.s32.totalorder %s23, 0
    %p165 = por %p163, %p164
    %s167 = sadd.s32 %s166, 1
    %p170 = scmp.eq.s32.totalorder %s17, 1
    %p171 = scmp.ne.s32.totalorder %s166, %s168
    %p172 = scmp.eq.s32.totalorder %s17, 0
    %p173 = por %p171, %p172
    %p174 = scmp.ne.s32.totalorder %s166, %s168
    %p175 = scmp.eq.s32.totalorder %s22, 1
    %p176 = por %p174, %p175
    %p177 = scmp.ne.s32.totalorder %s168, %s169
    %p178 = scmp.eq.s32.totalorder %s22, 0
    %p179 = por %p177, %p178
    %p180 = scmp.ne.s32.totalorder %s168, %s169
    %p181 = scmp.eq.s32.totalorder %s23, 1
    %p182 = por %p180, %p181
    %p184 = scmp.ne.s32.totalorder %s169, %s183
    %p185 = scmp.eq.s32.totalorder %s23, 0
    %p186 = por %p184, %p185
    %s188 = sadd.s32 %s187, 1
    %p191 = scmp.eq.s32.totalorder %s17, 1
    %p192 = scmp.ne.s32.totalorder %s187, %s189
    %p193 = scmp.eq.s32.totalorder %s17, 0
    %p194 = por %p192, %p193
    %p195 = scmp.ne.s32.totalorder %s187, %s189
    %p196 = scmp.eq.s32.totalorder %s22, 1
    %p197 = por %p195, %p196
    %p198 = scmp.ne.s32.totalorder %s189, %s190
    %p199 = scmp.eq.s32.totalorder %s22, 0
    %p200 = por %p198, %p199
    %p201 = scmp.ne.s32.totalorder %s189, %s190
    %p202 = scmp.eq.s32.totalorder %s23, 1
    %p203 = por %p201, %p202
    %p205 = scmp.ne.s32.totalorder %s190, %s204
    %p206 = scmp.eq.s32.totalorder %s23, 0
    %p207 = por %p205, %p206
    %s209 = sadd.s32 %s208, 1
    %p212 = scmp.eq.s32.totalorder %s17, 1
    %p213 = scmp.ne.s32.totalorder %s208, %s210
    %p214 = scmp.eq.s32.totalorder %s17, 0
    %p215 = por %p213, %p214
    %p216 = scmp.ne.s32.totalorder %s208, %s210
    %p217 = scmp.eq.s32.totalorder %s22, 1
    %p218 = por %p216, %p217
    %p219 = scmp.ne.s32.totalorder %s210, %s211
    %p220 = scmp.eq.s32.totalorder %s22, 0
    %p221 = por %p219, %p220
    %p222 = scmp.ne.s32.totalorder %s210, %s211
    %p223 = scmp.eq.s32.totalorder %s23, 1
    %p224 = por %p222, %p223
    %p226 = scmp.ne.s32.totalorder %s211, %s225
    %p227 = scmp.eq.s32.totalorder %s23, 0
    %p228 = por %p226, %p227
    %s230 = sadd.s32 %s229, 1
    %p233 = scmp.eq.s32.totalorder %s17, 1
    %p234 = scmp.ne.s32.totalorder %s229, %s231
    %p235 = scmp.eq.s32.totalorder %s17, 0
    %p236 = por %p234, %p235
    %p237 = scmp.ne.s32.totalorder %s229, %s231
    %p238 = scmp.eq.s32.totalorder %s22, 1
    %p239 = por %p237, %p238
    %p240 = scmp.ne.s32.totalorder %s231, %s232
    %p241 = scmp.eq.s32.totalorder %s22, 0
    %p242 = por %p240, %p241
    %p243 = scmp.ne.s32.totalorder %s231, %s232
    %p244 = scmp.eq.s32.totalorder %s23, 1
    %p245 = por %p243, %p244
    %p247 = scmp.ne.s32.totalorder %s232, %s246
    %p248 = scmp.eq.s32.totalorder %s23, 0
    %p249 = por %p247, %p248
    %s251 = sadd.s32 %s250, 1
    %p254 = scmp.eq.s32.totalorder %s17, 1
    %p255 = scmp.ne.s32.totalorder %s250, %s252
    %p256 = scmp.eq.s32.totalorder %s17, 0
    %p257 = por %p255, %p256
    %p258 = scmp.ne.s32.totalorder %s250, %s252
    %p259 = scmp.eq.s32.totalorder %s22, 1
    %p260 = por %p258, %p259
    %p261 = scmp.ne.s32.totalorder %s252, %s253
    %p262 = scmp.eq.s32.totalorder %s22, 0
    %p263 = por %p261, %p262
    %p264 = scmp.ne.s32.totalorder %s252, %s253
    %p265 = scmp.eq.s32.totalorder %s23, 1
    %p266 = por %p264, %p265
    %p268 = scmp.ne.s32.totalorder %s253, %s267
    %p269 = scmp.eq.s32.totalorder %s23, 0
    %p270 = por %p268, %p269
    %s271 = ssub.s32 %s17, %s24
    %p272 = scmp.eq.s32.totalorder %s271, 0
    %s274 = sadd.s32 %s273, 1
    %s275 = scalar_select %p272, %s273, %s274
    %p278 = pneg %p272
    %p279 = scmp.eq.s32.totalorder %s17, 1
    %p280 = por %p278, %p279
    %p281 = scmp.ne.s32.totalorder %s273, %s276
    %p282 = scmp.eq.s32.totalorder %s17, 0
    %p283 = por %p281, %p282
    %p284 = scmp.ne.s32.totalorder %s273, %s276
    %p285 = scmp.eq.s32.totalorder %s22, 1
    %p286 = por %p284, %p285
    %p287 = scmp.ne.s32.totalorder %s276, %s277
    %p288 = scmp.eq.s32.totalorder %s22, 0
    %p289 = por %p287, %p288
    %p290 = scmp.ne.s32.totalorder %s276, %s277
    %p291 = scmp.eq.s32.totalorder %s23, 1
    %p292 = por %p290, %p291
    %p294 = scmp.ne.s32.totalorder %s277, %s293
    %p295 = scmp.eq.s32.totalorder %s23, 0
    %p296 = por %p294, %p295
    %p297 = scmp.le.s32.totalorder 1, %s17
    %p298 = scmp.lt.s32.totalorder %s17, 3
    %p299 = pnand %p297, %p298
    %p300 = pneg %p299
    // Predicated region
    $region9: #{_lambda_.26} parent=5 // pred_check
      _
    $region10: #{_lambda_.26} parent=5 // pred_check_branch
      %302 = sbr.rel (%p299) target = $region12
    $region11: #{_lambda_.26} parent=5 // pred_region
      %s303 = ssub.s32 %s17, 1
      // Predicated region
      $region13: #{_lambda_.26} parent=11 // pred_check
        %p304 = pneg %p116
      $region14: #{_lambda_.26} parent=11 // pred_check_branch
        %306 = sbr.rel (%p304) target = $region16
      $region15: #{_lambda_.26} parent=11 // pred_region
        _
      $region16: #{_lambda_.26} parent=11 // pred_fallthru
        _
      // Predicated region
      $region17: #{_lambda_.26} parent=11 // pred_check
        %p307 = pneg %p137
      $region18: #{_lambda_.26} parent=11 // pred_check_branch
        %309 = sbr.rel (%p307) target = $region20
      $region19: #{_lambda_.26} parent=11 // pred_region
        _
      $region20: #{_lambda_.26} parent=11 // pred_fallthru
        _
      // Predicated region
      $region21: #{_lambda_.26} parent=11 // pred_check
        %p310 = pneg %p158
      $region22: #{_lambda_.26} parent=11 // pred_check_branch
        %312 = sbr.rel (%p310) target = $region24
      $region23: #{_lambda_.26} parent=11 // pred_region
        _
      $region24: #{_lambda_.26} parent=11 // pred_fallthru
        _
      // Predicated region
      $region25: #{_lambda_.26} parent=11 // pred_check
        %p313 = pneg %p179
      $region26: #{_lambda_.26} parent=11 // pred_check_branch
        %315 = sbr.rel (%p313) target = $region28
      $region27: #{_lambda_.26} parent=11 // pred_region
        _
      $region28: #{_lambda_.26} parent=11 // pred_fallthru
        _
      // Predicated region
      $region29: #{_lambda_.26} parent=11 // pred_check
        %p316 = pneg %p200
      $region30: #{_lambda_.26} parent=11 // pred_check_branch
        %318 = sbr.rel (%p316) target = $region32
      $region31: #{_lambda_.26} parent=11 // pred_region
        _
      $region32: #{_lambda_.26} parent=11 // pred_fallthru
        _
      // Predicated region
      $region33: #{_lambda_.26} parent=11 // pred_check
        %p319 = pneg %p221
      $region34: #{_lambda_.26} parent=11 // pred_check_branch
        %321 = sbr.rel (%p319) target = $region36
      $region35: #{_lambda_.26} parent=11 // pred_region
        _
      $region36: #{_lambda_.26} parent=11 // pred_fallthru
        _
      // Predicated region
      $region37: #{_lambda_.26} parent=11 // pred_check
        %p322 = pneg %p242
      $region38: #{_lambda_.26} parent=11 // pred_check_branch
        %324 = sbr.rel (%p322) target = $region40
      $region39: #{_lambda_.26} parent=11 // pred_region
        _
      $region40: #{_lambda_.26} parent=11 // pred_fallthru
        _
      // Predicated region
      $region41: #{_lambda_.26} parent=11 // pred_check
        %p325 = pneg %p263
      $region42: #{_lambda_.26} parent=11 // pred_check_branch
        %327 = sbr.rel (%p325) target = $region44
      $region43: #{_lambda_.26} parent=11 // pred_region
        _
      $region44: #{_lambda_.26} parent=11 // pred_fallthru
        _
    $region12: #{_lambda_.26} parent=5 // pred_fallthru
      _
    %p328 = scmp.lt.s32.totalorder %s17, 2
    // Predicated region
    $region45: #{_lambda_.26} parent=5 // pred_check
      %p329 = pneg %p328
    $region46: #{_lambda_.26} parent=5 // pred_check_branch
      %331 = sbr.rel (%p329) target = $region48
    $region47: #{_lambda_.26} parent=5 // pred_region
      // Predicated region
      $region49: #{_lambda_.26} parent=47 // pred_check
        %p332 = pneg %p37
      $region50: #{_lambda_.26} parent=47 // pred_check_branch
        %334 = sbr.rel (%p332) target = $region52
      $region51: #{_lambda_.26} parent=47 // pred_region
        %p335 = scmp.lt.s32.totalorder %s17, 1
        %s336 = scalar_select %p335, %s17, 1
        %s337 = smul.addr %s336, 8
        %s338 = scalar_lea.vmem %s0, %s337
      $region52: #{_lambda_.26} parent=47 // pred_fallthru
        _
      // Predicated region
      $region53: #{_lambda_.26} parent=47 // pred_check
        %p339 = pneg %p63
      $region54: #{_lambda_.26} parent=47 // pred_check_branch
        %341 = sbr.rel (%p339) target = $region56
      $region55: #{_lambda_.26} parent=47 // pred_region
        %p342 = scmp.lt.s32.totalorder %s17, 1
        %s343 = scalar_select %p342, %s17, 1
        %s344 = smul.addr %s343, 8
        %s345 = scalar_lea.vmem %s1, %s344
      $region56: #{_lambda_.26} parent=47 // pred_fallthru
        _
      // Predicated region
      $region57: #{_lambda_.26} parent=47 // pred_check
        %p346 = pneg %p89
      $region58: #{_lambda_.26} parent=47 // pred_check_branch
        %348 = sbr.rel (%p346) target = $region60
      $region59: #{_lambda_.26} parent=47 // pred_region
        %p349 = scmp.lt.s32.totalorder %s17, 1
        %s350 = scalar_select %p349, %s17, 1
        %s351 = smul.addr %s350, 8
        %s352 = scalar_lea.vmem %s2, %s351
      $region60: #{_lambda_.26} parent=47 // pred_fallthru
        _
    $region48: #{_lambda_.26} parent=5 // pred_fallthru
      _
    %p353 = scmp.le.s32.totalorder 1, %s17
    %p354 = scmp.lt.s32.totalorder %s17, 3
    %p355 = pnand %p353, %p354
    %p356 = pneg %p355
    // Predicated region
    $region61: #{_lambda_.26} parent=5 // pred_check
      _
    $region62: #{_lambda_.26} parent=5 // pred_check_branch
      %358 = sbr.rel (%p355) target = $region64
    $region63: #{_lambda_.26} parent=5 // pred_region
      %s359 = ssub.s32 %s17, 1
      %p360 = scmp.lt.s32.totalorder %s22, 1
      %s361 = scalar_select %p360, %s22, 1
      %s362 = smul.addr %s361, 8
      %s363 = scalar_lea.vmem %s0, %s362
      %p364 = pneg %p43
      %p365 = pneg %p40
      %p366 = scmp.lt.s32.totalorder %s22, 1
      %s367 = scalar_select %p366, %s22, 1
      %s368 = smul.addr %s367, 8
      %s369 = scalar_lea.vmem %s1, %s368
      %p370 = pneg %p69
      %p371 = pneg %p66
      %p372 = scmp.lt.s32.totalorder %s22, 1
      %s373 = scalar_select %p372, %s22, 1
      %s374 = smul.addr %s373, 8
      %s375 = scalar_lea.vmem %s2, %s374
      %p376 = pneg %p95
      %p377 = pneg %p92
      %p378 = pneg %p116
      %p379 = pneg %p113
      %p380 = pneg %p137
      %p381 = pneg %p134
      %p382 = pneg %p158
      %p383 = pneg %p155
      %p384 = pneg %p179
      %p385 = pneg %p176
      %p386 = pneg %p200
      %p387 = pneg %p197
      %p388 = pneg %p221
      %p389 = pneg %p218
      %p390 = pneg %p242
      %p391 = pneg %p239
      %p392 = pneg %p263
      %p393 = pneg %p260
      %p394 = pneg %p289
      %p395 = pneg %p286
      %p396 = scmp.lt.s32.totalorder %s22, 1
      %s397 = scalar_select %p396, %s22, 1
      %s398 = smul.addr %s397, 4
      %s399 = scalar_lea.vmem %s11, %s398
      %p400 = scmp.lt.s32.totalorder %s22, 1
      %s401 = scalar_select %p400, %s22, 1
      %s402 = smul.addr %s401, 8
      %s403 = scalar_lea.vmem %s0, %s402
      %p404 = scmp.lt.s32.totalorder %s22, 1
      %s405 = scalar_select %p404, %s22, 1
      %s406 = smul.addr %s405, 8
      %s407 = scalar_lea.vmem %s1, %s406
      %p408 = scmp.lt.s32.totalorder %s22, 1
      %s409 = scalar_select %p408, %s22, 1
      %s410 = smul.addr %s409, 8
      %s411 = scalar_lea.vmem %s2, %s410
      %p412 = scmp.lt.s32.totalorder %s22, 1
      %s413 = scalar_select %p412, %s22, 1
      %s414 = smul.addr %s413, 4
      %s415 = scalar_lea.vmem %s11, %s414
      %v417 = vld [vmem:[%s407] sm:$0xff]
      %v418 = vld [vmem:[%s403] sm:$0xff]
      %v419 = vld [vmem:[%s411] sm:$0xff]
      %v420 = vadd.f32 %v418, %v419
      %421 = vst [vmem:[#allocation2] sm:$0xff] 0.0
      %422 = vst [vmem:[#allocation2 + $0x8] sm:$0xff] 0.0
      %423 = vst [vmem:[#allocation2 + $0x18] sm:$0xff] 0.0
      %424 = vst [vmem:[#allocation2 + $0x20] sm:$0xff] 0.0
      %426 = vset.pattern.permute.xlu0 0
      %427 = vperm.xlu0 %426, %v417
      %v428 = vpop.permute.xlu0 %427
      %v430 = vmul.f32 %v420, %v428
      %431 = vst [vmem:[#allocation2 + $0x10] sm:$0xff] %v430
      %v432 = vld [vmem:[#allocation2 + $0xf] sm:$0xff]
      %v433 = vld [vmem:[%s3] sm:$0x1]
      %v434 = vlaneseq
      %v435 = vshrl.u32 %v434, 7
      %v436 = vsub.s32 0, %v435
      %v437 = vrot.slane %v433, %v436
      %v438 = vmul.f32 %v432, %v437
      %v439 = vld [vmem:[#allocation2 + $0x10] sm:$0xff]
      %v440 = vld [vmem:[%s3 + $0x1] sm:$0x1]
      %v441 = vlaneseq
      %v442 = vshrl.u32 %v441, 7
      %v443 = vsub.s32 0, %v442
      %v444 = vrot.slane %v440, %v443
      %v445 = vmul.f32 %v439, %v444
      %v446 = vadd.f32 %v438, %v445
      %v447 = vld [vmem:[#allocation2 + $0x11] sm:$0xff]
      %v448 = vld [vmem:[%s3 + $0x2] sm:$0x1]
      %v449 = vlaneseq
      %v450 = vshrl.u32 %v449, 7
      %v451 = vsub.s32 0, %v450
      %v452 = vrot.slane %v448, %v451
      %v453 = vmul.f32 %v447, %v452
      %v454 = vadd.f32 %v446, %v453
      %v455 = vld [vmem:[%s4] sm:$0x1]
      %v456 = vlaneseq
      %v457 = vshrl.u32 %v456, 7
      %v458 = vsub.s32 0, %v457
      %v459 = vrot.slane %v455, %v458
      %v460 = vadd.f32 %v454, %v459
      %461 = vadd.xlane.f32.xlu0 %v460
      %v462 = vpop.xlane.xlu0 %461
      %v463 = vrcp.pop 128.0
      %v464 = vmul.f32 %v462, %v463
      %v465 = vmul.f32 %v460, %v460
      %466 = vadd.xlane.f32.xlu0 %v465
      %v467 = vpop.xlane.xlu0 %466
      %v468 = vmul.f32 %v467, %v463
      %v469 = vmul.f32 %v464, %v464
      %v470 = vsub.f32 %v468, %v469
      %v471 = vsub.f32 %v460, %v464
      %v472 = vadd.f32 %v470, 1e-05
      %v473 = vrsqrt.pop %v472
      %v474 = vmul.f32 %v471, %v473
      %v475 = vld [vmem:[%s5] sm:$0x1]
      %v476 = vlaneseq
      %v477 = vshrl.u32 %v476, 7
      %v478 = vsub.s32 0, %v477
      %v479 = vrot.slane %v475, %v478
      %v480 = vmul.f32 %v474, %v479
      %v481 = vld [vmem:[%s6] sm:$0x1]
      %v482 = vlaneseq
      %v483 = vshrl.u32 %v482, 7
      %v484 = vsub.s32 0, %v483
      %v485 = vrot.slane %v481, %v484
      %v486 = vadd.f32 %v480, %v485
      %v487 = vmul.f32 %v486, 0.5
      %v488 = vmul.f32 %v486, 0.044715
      %v489 = vmul.f32 %v488, %v486
      %v490 = vmul.f32 %v489, %v486
      %v491 = vadd.f32 %v486, %v490
      %v492 = vmul.f32 %v491, 0.7978846
      %v493 = vtanh.pop %v492
      %v494 = vadd.f32 %v493, 1.0
      %v495 = vmul.f32 %v487, %v494
      %v496 = vpack.c.bf16 %v495, %v495
      %v497 = vld [vmem:[%s7] sm:$0xf]
      %v498 = vld [vmem:[%s7 + $0x4] sm:$0xf]
      %v499 = vld [vmem:[%s7 + $0x8] sm:$0xf]
      %v500 = vld [vmem:[%s7 + $0xc] sm:$0xf]
      %v501 = vld [vmem:[%s7 + $0x10] sm:$0xf]
      %v502 = vld [vmem:[%s7 + $0x14] sm:$0xf]
      %v503 = vld [vmem:[%s7 + $0x18] sm:$0xf]
      %v504 = vld [vmem:[%s7 + $0x1c] sm:$0xf]
      %v505 = vld [vmem:[%s7 + $0x20] sm:$0xf]
      %v506 = vld [vmem:[%s7 + $0x24] sm:$0xf]
      %v507 = vld [vmem:[%s7 + $0x28] sm:$0xf]
      %v508 = vld [vmem:[%s7 + $0x2c] sm:$0xf]
      %v509 = vld [vmem:[%s7 + $0x30] sm:$0xf]
      %v510 = vld [vmem:[%s7 + $0x34] sm:$0xf]
      %v511 = vld [vmem:[%s7 + $0x38] sm:$0xf]
      %v512 = vld [vmem:[%s7 + $0x3c] sm:$0xf]
      %v513 = vld [vmem:[%s8] sm:$0x1]
      %v514 = vlaneseq
      %v515 = vshrl.u32 %v514, 7
      %v516 = vsub.s32 0, %v515
      %v517 = vrot.slane %v513, %v516
      %v534 = vunpack.c.l.b16 %v497
      %v535 = vunpack.c.l.b16 %v498
      %v536 = vunpack.c.l.b16 %v499
      %v537 = vunpack.c.l.b16 %v500
      %v538 = vunpack.c.l.b16 %v501
      %v539 = vunpack.c.l.b16 %v502
      %v540 = vunpack.c.l.b16 %v503
      %v541 = vunpack.c.l.b16 %v504
      %v542 = vunpack.c.l.b16 %v505
      %v543 = vunpack.c.l.b16 %v506
      %v544 = vunpack.c.l.b16 %v507
      %v545 = vunpack.c.l.b16 %v508
      %v546 = vunpack.c.l.b16 %v509
      %v547 = vunpack.c.l.b16 %v510
      %v548 = vunpack.c.l.b16 %v511
      %v549 = vunpack.c.l.b16 %v512
      %v550 = vpack.c.b16 %v535, %v534
      %v551 = vpack.c.b16 %v537, %v536
      %v552 = vpack.c.b16 %v539, %v538
      %v553 = vpack.c.b16 %v541, %v540
      %v554 = vpack.c.b16 %v543, %v542
      %v555 = vpack.c.b16 %v545, %v544
      %v556 = vpack.c.b16 %v547, %v546
      %v557 = vpack.c.b16 %v549, %v548
      %566 = vmatprep.subr.bf16.mxu0 0
      %567 = vmatpush1.bf16.msra.mxu0 %v550
      %568 = vmatprep.subr.bf16.mxu0 0
      %569 = vmatpush1.bf16.msra.mxu0 %v551
      %570 = vmatprep.subr.bf16.mxu0 0
      %571 = vmatpush1.bf16.msra.mxu0 %v552
      %572 = vmatprep.subr.bf16.mxu0 0
      %573 = vmatpush1.bf16.msra.mxu0 %v553
      %574 = vmatprep.subr.bf16.mxu0 0
      %575 = vmatpush1.bf16.msra.mxu0 %v554
      %576 = vmatprep.subr.bf16.mxu0 0
      %577 = vmatpush1.bf16.msra.mxu0 %v555
      %578 = vmatprep.subr.bf16.mxu0 0
      %579 = vmatpush1.bf16.msra.mxu0 %v556
      %580 = vmatprep.subr.bf16.mxu0 0
      %581 = vmatpush1.bf16.msra.mxu0 %v557
      %582 = vmatprep.subr.bf16.mxu0 0
      %583 = vmatpush1.bf16.msra.mxu0 0
      %584 = vmatprep.subr.bf16.mxu0 0
      %585 = vmatpush1.bf16.msra.mxu0 0
      %586 = vmatprep.subr.bf16.mxu0 0
      %587 = vmatpush1.bf16.msra.mxu0 0
      %588 = vmatprep.subr.bf16.mxu0 0
      %589 = vmatpush1.bf16.msra.mxu0 0
      %590 = vmatprep.subr.bf16.mxu0 0
      %591 = vmatpush1.bf16.msra.mxu0 0
      %592 = vmatprep.subr.bf16.mxu0 0
      %593 = vmatpush1.bf16.msra.mxu0 0
      %594 = vmatprep.subr.bf16.mxu0 0
      %595 = vmatpush1.bf16.msra.mxu0 0
      %596 = vmatprep.subr.bf16.mxu0 0
      %597 = vmatpush1.bf16.msra.mxu0 0
      %598 = vmatprep.mubr.bf16.mxu0 0
      %599 = vmatmul.mubr.bf16.gmra.mrb[0].mxu0 %v496
      %v600 = vpop.f32.mrb[0].mxu0
      %v601 = vadd.f32 %v517, %v600
      %v602 = vpop.f32.mrb[0].mxu0
      %v603 = vpop.f32.mrb[0].mxu0
      %v604 = vpop.f32.mrb[0].mxu0
      %605 = vdwg.mxu0
      %606 = vadd.xlane.f32.xlu0 %v601
      %v607 = vpop.xlane.xlu0 %606
      %v608 = vmul.f32 %v607, %v463
      %v609 = vmul.f32 %v601, %v601
      %610 = vadd.xlane.f32.xlu0 %v609
      %v611 = vpop.xlane.xlu0 %610
      %v612 = vmul.f32 %v611, %v463
      %v613 = vmul.f32 %v608, %v608
      %v614 = vsub.f32 %v612, %v613
      %v615 = vsub.f32 %v601, %v608
      %v616 = vadd.f32 %v614, 1e-05
      %v617 = vrsqrt.pop %v616
      %v618 = vmul.f32 %v615, %v617
      %v619 = vld [vmem:[%s9] sm:$0x1]
      %v620 = vlaneseq
      %v621 = vshrl.u32 %v620, 7
      %v622 = vsub.s32 0, %v621
      %v623 = vrot.slane %v619, %v622
      %v624 = vmul.f32 %v618, %v623
      %v625 = vld [vmem:[%s10] sm:$0x1]
      %v626 = vlaneseq
      %v627 = vshrl.u32 %v626, 7
      %v628 = vsub.s32 0, %v627
      %v629 = vrot.slane %v625, %v628
      %v630 = vadd.f32 %v624, %v629
      %v631 = vmul.f32 %v630, 0.5
      %v632 = vmul.f32 %v630, 0.044715
      %v633 = vmul.f32 %v632, %v630
      %v634 = vmul.f32 %v633, %v630
      %v635 = vadd.f32 %v630, %v634
      %v636 = vmul.f32 %v635, 0.7978846
      %v637 = vtanh.pop %v636
      %v638 = vadd.f32 %v637, 1.0
      %v639 = vmul.f32 %v631, %v638
      %v640 = vadd.f32 %v420, %v639
      %v641 = vmul.f32 %v640, %v428
      %642 = vst [vmem:[#allocation2 + $0x10] sm:$0xff] %v641
      %v643 = vld [vmem:[#allocation2 + $0xd] sm:$0xff]
      %v644 = vld [vmem:[%s3 + $0x3] sm:$0x1]
      %v645 = vlaneseq
      %v646 = vshrl.u32 %v645, 7
      %v647 = vsub.s32 0, %v646
      %v648 = vrot.slane %v644, %v647
      %v649 = vmul.f32 %v643, %v648
      %v650 = vld [vmem:[#allocation2 + $0x10] sm:$0xff]
      %v651 = vld [vmem:[%s3 + $0x4] sm:$0x1]
      %v652 = vlaneseq
      %v653 = vshrl.u32 %v652, 7
      %v654 = vsub.s32 0, %v653
      %v655 = vrot.slane %v651, %v654
      %v656 = vmul.f32 %v650, %v655
      %v657 = vadd.f32 %v649, %v656
      %v658 = vld [vmem:[#allocation2 + $0x13] sm:$0xff]
      %v659 = vld [vmem:[%s3 + $0x5] sm:$0x1]
      %v660 = vlaneseq
      %v661 = vshrl.u32 %v660, 7
      %v662 = vsub.s32 0, %v661
      %v663 = vrot.slane %v659, %v662
      %v664 = vmul.f32 %v658, %v663
      %v665 = vadd.f32 %v657, %v664
      %v666 = vld [vmem:[%s4 + $0x1] sm:$0x1]
      %v667 = vlaneseq
      %v668 = vshrl.u32 %v667, 7
      %v669 = vsub.s32 0, %v668
      %v670 = vrot.slane %v666, %v669
      %v671 = vadd.f32 %v665, %v670
      %672 = vadd.xlane.f32.xlu0 %v671
      %v673 = vpop.xlane.xlu0 %672
      %v674 = vmul.f32 %v673, %v463
      %v675 = vmul.f32 %v671, %v671
      %676 = vadd.xlane.f32.xlu0 %v675
      %v677 = vpop.xlane.xlu0 %676
      %v678 = vmul.f32 %v677, %v463
      %v679 = vmul.f32 %v674, %v674
      %v680 = vsub.f32 %v678, %v679
      %v681 = vsub.f32 %v671, %v674
      %v682 = vadd.f32 %v680, 1e-05
      %v683 = vrsqrt.pop %v682
      %v684 = vmul.f32 %v681, %v683
      %v685 = vld [vmem:[%s5 + $0x1] sm:$0x1]
      %v686 = vlaneseq
      %v687 = vshrl.u32 %v686, 7
      %v688 = vsub.s32 0, %v687
      %v689 = vrot.slane %v685, %v688
      %v690 = vmul.f32 %v684, %v689
      %v691 = vld [vmem:[%s6 + $0x1] sm:$0x1]
      %v692 = vlaneseq
      %v693 = vshrl.u32 %v692, 7
      %v694 = vsub.s32 0, %v693
      %v695 = vrot.slane %v691, %v694
      %v696 = vadd.f32 %v690, %v695
      %v697 = vmul.f32 %v696, 0.5
      %v698 = vmul.f32 %v696, 0.044715
      %v699 = vmul.f32 %v698, %v696
      %v700 = vmul.f32 %v699, %v696
      %v701 = vadd.f32 %v696, %v700
      %v702 = vmul.f32 %v701, 0.7978846
      %v703 = vtanh.pop %v702
      %v704 = vadd.f32 %v703, 1.0
      %v705 = vmul.f32 %v697, %v704
      %v706 = vpack.c.bf16 %v705, %v705
      %s707 = scalar_lea.vmem %s7, 64
      %v708 = vld [vmem:[%s707] sm:$0xf]
      %v709 = vld [vmem:[%s707 + $0x4] sm:$0xf]
      %v710 = vld [vmem:[%s707 + $0x8] sm:$0xf]
      %v711 = vld [vmem:[%s707 + $0xc] sm:$0xf]
      %v712 = vld [vmem:[%s707 + $0x10] sm:$0xf]
      %v713 = vld [vmem:[%s707 + $0x14] sm:$0xf]
      %v714 = vld [vmem:[%s707 + $0x18] sm:$0xf]
      %v715 = vld [vmem:[%s707 + $0x1c] sm:$0xf]
      %v716 = vld [vmem:[%s707 + $0x20] sm:$0xf]
      %v717 = vld [vmem:[%s707 + $0x24] sm:$0xf]
      %v718 = vld [vmem:[%s707 + $0x28] sm:$0xf]
      %v719 = vld [vmem:[%s707 + $0x2c] sm:$0xf]
      %v720 = vld [vmem:[%s707 + $0x30] sm:$0xf]
      %v721 = vld [vmem:[%s707 + $0x34] sm:$0xf]
      %v722 = vld [vmem:[%s707 + $0x38] sm:$0xf]
      %v723 = vld [vmem:[%s707 + $0x3c] sm:$0xf]
      %v724 = vld [vmem:[%s8 + $0x1] sm:$0x1]
      %v725 = vlaneseq
      %v726 = vshrl.u32 %v725, 7
      %v727 = vsub.s32 0, %v726
      %v728 = vrot.slane %v724, %v727
      %v745 = vunpack.c.l.b16 %v708
      %v746 = vunpack.c.l.b16 %v709
      %v747 = vunpack.c.l.b16 %v710
      %v748 = vunpack.c.l.b16 %v711
      %v749 = vunpack.c.l.b16 %v712
      %v750 = vunpack.c.l.b16 %v713
      %v751 = vunpack.c.l.b16 %v714
      %v752 = vunpack.c.l.b16 %v715
      %v753 = vunpack.c.l.b16 %v716
      %v754 = vunpack.c.l.b16 %v717
      %v755 = vunpack.c.l.b16 %v718
      %v756 = vunpack.c.l.b16 %v719
      %v757 = vunpack.c.l.b16 %v720
      %v758 = vunpack.c.l.b16 %v721
      %v759 = vunpack.c.l.b16 %v722
      %v760 = vunpack.c.l.b16 %v723
      %v761 = vpack.c.b16 %v746, %v745
      %v762 = vpack.c.b16 %v748, %v747
      %v763 = vpack.c.b16 %v750, %v749
      %v764 = vpack.c.b16 %v752, %v751
      %v765 = vpack.c.b16 %v754, %v753
      %v766 = vpack.c.b16 %v756, %v755
      %v767 = vpack.c.b16 %v758, %v757
      %v768 = vpack.c.b16 %v760, %v759
      %777 = vmatprep.subr.bf16.mxu0 0
      %778 = vmatpush1.bf16.msra.mxu0 %v761
      %779 = vmatprep.subr.bf16.mxu0 0
      %780 = vmatpush1.bf16.msra.mxu0 %v762
      %781 = vmatprep.subr.bf16.mxu0 0
      %782 = vmatpush1.bf16.msra.mxu0 %v763
      %783 = vmatprep.subr.bf16.mxu0 0
      %784 = vmatpush1.bf16.msra.mxu0 %v764
      %785 = vmatprep.subr.bf16.mxu0 0
      %786 = vmatpush1.bf16.msra.mxu0 %v765
      %787 = vmatprep.subr.bf16.mxu0 0
      %788 = vmatpush1.bf16.msra.mxu0 %v766
      %789 = vmatprep.subr.bf16.mxu0 0
      %790 = vmatpush1.bf16.msra.mxu0 %v767
      %791 = vmatprep.subr.bf16.mxu0 0
      %792 = vmatpush1.bf16.msra.mxu0 %v768
      %793 = vmatprep.subr.bf16.mxu0 0
      %794 = vmatpush1.bf16.msra.mxu0 0
      %795 = vmatprep.subr.bf16.mxu0 0
      %796 = vmatpush1.bf16.msra.mxu0 0
      %797 = vmatprep.subr.bf16.mxu0 0
      %798 = vmatpush1.bf16.msra.mxu0 0
      %799 = vmatprep.subr.bf16.mxu0 0
      %800 = vmatpush1.bf16.msra.mxu0 0
      %801 = vmatprep.subr.bf16.mxu0 0
      %802 = vmatpush1.bf16.msra.mxu0 0
      %803 = vmatprep.subr.bf16.mxu0 0
      %804 = vmatpush1.bf16.msra.mxu0 0
      %805 = vmatprep.subr.bf16.mxu0 0
      %806 = vmatpush1.bf16.msra.mxu0 0
      %807 = vmatprep.subr.bf16.mxu0 0
      %808 = vmatpush1.bf16.msra.mxu0 0
      %809 = vmatprep.mubr.bf16.mxu0 0
      %810 = vmatmul.mubr.bf16.gmra.mrb[0].mxu0 %v706
      %v811 = vpop.f32.mrb[0].mxu0
      %v812 = vadd.f32 %v728, %v811
      %v813 = vpop.f32.mrb[0].mxu0
      %v814 = vpop.f32.mrb[0].mxu0
      %v815 = vpop.f32.mrb[0].mxu0
      %816 = vdwg.mxu0
      %817 = vadd.xlane.f32.xlu0 %v812
      %v818 = vpop.xlane.xlu0 %817
      %v819 = vmul.f32 %v818, %v463
      %v820 = vmul.f32 %v812, %v812
      %821 = vadd.xlane.f32.xlu0 %v820
      %v822 = vpop.xlane.xlu0 %821
      %v823 = vmul.f32 %v822, %v463
      %v824 = vmul.f32 %v819, %v819
      %v825 = vsub.f32 %v823, %v824
      %v826 = vsub.f32 %v812, %v819
      %v827 = vadd.f32 %v825, 1e-05
      %v828 = vrsqrt.pop %v827
      %v829 = vmul.f32 %v826, %v828
      %v830 = vld [vmem:[%s9 + $0x1] sm:$0x1]
      %v831 = vlaneseq
      %v832 = vshrl.u32 %v831, 7
      %v833 = vsub.s32 0, %v832
      %v834 = vrot.slane %v830, %v833
      %v835 = vmul.f32 %v829, %v834
      %v836 = vld [vmem:[%s10 + $0x1] sm:$0x1]
      %v837 = vlaneseq
      %v838 = vshrl.u32 %v837, 7
      %v839 = vsub.s32 0, %v838
      %v840 = vrot.slane %v836, %v839
      %v841 = vadd.f32 %v835, %v840
      %v842 = vmul.f32 %v841, 0.5
      %v843 = vmul.f32 %v841, 0.044715
      %v844 = vmul.f32 %v843, %v841
      %v845 = vmul.f32 %v844, %v841
      %v846 = vadd.f32 %v841, %v845
      %v847 = vmul.f32 %v846, 0.7978846
      %v848 = vtanh.pop %v847
      %v849 = vadd.f32 %v848, 1.0
      %v850 = vmul.f32 %v842, %v849
      %v851 = vadd.f32 %v640, %v850
      %v852 = vmul.f32 %v851, %v428
      %853 = vst [vmem:[#allocation2 + $0x10] sm:$0xff] %v852
      %v854 = vld [vmem:[#allocation2 + $0x7] sm:$0xff]
      %v855 = vld [vmem:[%s3 + $0x6] sm:$0x1]
      %v856 = vlaneseq
      %v857 = vshrl.u32 %v856, 7
      %v858 = vsub.s32 0, %v857
      %v859 = vrot.slane %v855, %v858
      %v860 = vmul.f32 %v854, %v859
      %v861 = vld [vmem:[#allocation2 + $0x10] sm:$0xff]
      %v862 = vld [vmem:[%s3 + $0x7] sm:$0x1]
      %v863 = vlaneseq
      %v864 = vshrl.u32 %v863, 7
      %v865 = vsub.s32 0, %v864
      %v866 = vrot.slane %v862, %v865
      %v867 = vmul.f32 %v861, %v866
      %v868 = vadd.f32 %v860, %v867
      %v869 = vld [vmem:[#allocation2 + $0x19] sm:$0xff]
      %v870 = vld [vmem:[%s3 + $0x8] sm:$0x1]
      %v871 = vlaneseq
      %v872 = vshrl.u32 %v871, 7
      %v873 = vsub.s32 0, %v872
      %v874 = vrot.slane %v870, %v873
      %v875 = vmul.f32 %v869, %v874
      %v876 = vadd.f32 %v868, %v875
      %v877 = vld [vmem:[%s4 + $0x2] sm:$0x1]
      %v878 = vlaneseq
      %v879 = vshrl.u32 %v878, 7
      %v880 = vsub.s32 0, %v879
      %v881 = vrot.slane %v877, %v880
      %v882 = vadd.f32 %v876, %v881
      %883 = vadd.xlane.f32.xlu0 %v882
      %v884 = vpop.xlane.xlu0 %883
      %v885 = vmul.f32 %v884, %v463
      %v886 = vmul.f32 %v882, %v882
      %887 = vadd.xlane.f32.xlu0 %v886
      %v888 = vpop.xlane.xlu0 %887
      %v889 = vmul.f32 %v888, %v463
      %v890 = vmul.f32 %v885, %v885
      %v891 = vsub.f32 %v889, %v890
      %v892 = vsub.f32 %v882, %v885
      %v893 = vadd.f32 %v891, 1e-05
      %v894 = vrsqrt.pop %v893
      %v895 = vmul.f32 %v892, %v894
      %v896 = vld [vmem:[%s5 + $0x2] sm:$0x1]
      %v897 = vlaneseq
      %v898 = vshrl.u32 %v897, 7
      %v899 = vsub.s32 0, %v898
      %v900 = vrot.slane %v896, %v899
      %v901 = vmul.f32 %v895, %v900
      %v902 = vld [vmem:[%s6 + $0x2] sm:$0x1]
      %v903 = vlaneseq
      %v904 = vshrl.u32 %v903, 7
      %v905 = vsub.s32 0, %v904
      %v906 = vrot.slane %v902, %v905
      %v907 = vadd.f32 %v901, %v906
      %v908 = vmul.f32 %v907, 0.5
      %v909 = vmul.f32 %v907, 0.044715
      %v910 = vmul.f32 %v909, %v907
      %v911 = vmul.f32 %v910, %v907
      %v912 = vadd.f32 %v907, %v911
      %v913 = vmul.f32 %v912, 0.7978846
      %v914 = vtanh.pop %v913
      %v915 = vadd.f32 %v914, 1.0
      %v916 = vmul.f32 %v908, %v915
      %v917 = vpack.c.bf16 %v916, %v916
      %s918 = scalar_lea.vmem %s7, 128
      %v919 = vld [vmem:[%s918] sm:$0xf]
      %v920 = vld [vmem:[%s918 + $0x4] sm:$0xf]
      %v921 = vld [vmem:[%s918 + $0x8] sm:$0xf]
      %v922 = vld [vmem:[%s918 + $0xc] sm:$0xf]
      %v923 = vld [vmem:[%s918 + $0x10] sm:$0xf]
      %v924 = vld [vmem:[%s918 + $0x14] sm:$0xf]
      %v925 = vld [vmem:[%s918 + $0x18] sm:$0xf]
      %v926 = vld [vmem:[%s918 + $0x1c] sm:$0xf]
      %v927 = vld [vmem:[%s918 + $0x20] sm:$0xf]
      %v928 = vld [vmem:[%s918 + $0x24] sm:$0xf]
      %v929 = vld [vmem:[%s918 + $0x28] sm:$0xf]
      %v930 = vld [vmem:[%s918 + $0x2c] sm:$0xf]
      %v931 = vld [vmem:[%s918 + $0x30] sm:$0xf]
      %v932 = vld [vmem:[%s918 + $0x34] sm:$0xf]
      %v933 = vld [vmem:[%s918 + $0x38] sm:$0xf]
      %v934 = vld [vmem:[%s918 + $0x3c] sm:$0xf]
      %v935 = vld [vmem:[%s8 + $0x2] sm:$0x1]
      %v936 = vlaneseq
      %v937 = vshrl.u32 %v936, 7
      %v938 = vsub.s32 0, %v937
      %v939 = vrot.slane %v935, %v938
      %v956 = vunpack.c.l.b16 %v919
      %v957 = vunpack.c.l.b16 %v920
      %v958 = vunpack.c.l.b16 %v921
      %v959 = vunpack.c.l.b16 %v922
      %v960 = vunpack.c.l.b16 %v923
      %v961 = vunpack.c.l.b16 %v924
      %v962 = vunpack.c.l.b16 %v925
      %v963 = vunpack.c.l.b16 %v926
      %v964 = vunpack.c.l.b16 %v927
      %v965 = vunpack.c.l.b16 %v928
      %v966 = vunpack.c.l.b16 %v929
      %v967 = vunpack.c.l.b16 %v930
      %v968 = vunpack.c.l.b16 %v931
      %v969 = vunpack.c.l.b16 %v932
      %v970 = vunpack.c.l.b16 %v933
      %v971 = vunpack.c.l.b16 %v934
      %v972 = vpack.c.b16 %v957, %v956
      %v973 = vpack.c.b16 %v959, %v958
      %v974 = vpack.c.b16 %v961, %v960
      %v975 = vpack.c.b16 %v963, %v962
      %v976 = vpack.c.b16 %v965, %v964
      %v977 = vpack.c.b16 %v967, %v966
      %v978 = vpack.c.b16 %v969, %v968
      %v979 = vpack.c.b16 %v971, %v970
      %988 = vmatprep.subr.bf16.mxu0 0
      %989 = vmatpush1.bf16.msra.mxu0 %v972
      %990 = vmatprep.subr.bf16.mxu0 0
      %991 = vmatpush1.bf16.msra.mxu0 %v973
      %992 = vmatprep.subr.bf16.mxu0 0
      %993 = vmatpush1.bf16.msra.mxu0 %v974
      %994 = vmatprep.subr.bf16.mxu0 0
      %995 = vmatpush1.bf16.msra.mxu0 %v975
      %996 = vmatprep.subr.bf16.mxu0 0
      %997 = vmatpush1.bf16.msra.mxu0 %v976
      %998 = vmatprep.subr.bf16.mxu0 0
      %999 = vmatpush1.bf16.msra.mxu0 %v977
      %1000 = vmatprep.subr.bf16.mxu0 0
      %1001 = vmatpush1.bf16.msra.mxu0 %v978
      %1002 = vmatprep.subr.bf16.mxu0 0
      %1003 = vmatpush1.bf16.msra.mxu0 %v979
      %1004 = vmatprep.subr.bf16.mxu0 0
      %1005 = vmatpush1.bf16.msra.mxu0 0
      %1006 = vmatprep.subr.bf16.mxu0 0
      %1007 = vmatpush1.bf16.msra.mxu0 0
      %1008 = vmatprep.subr.bf16.mxu0 0
      %1009 = vmatpush1.bf16.msra.mxu0 0
      %1010 = vmatprep.subr.bf16.mxu0 0
      %1011 = vmatpush1.bf16.msra.mxu0 0
      %1012 = vmatprep.subr.bf16.mxu0 0
      %1013 = vmatpush1.bf16.msra.mxu0 0
      %1014 = vmatprep.subr.bf16.mxu0 0
      %1015 = vmatpush1.bf16.msra.mxu0 0
      %1016 = vmatprep.subr.bf16.mxu0 0
      %1017 = vmatpush1.bf16.msra.mxu0 0
      %1018 = vmatprep.subr.bf16.mxu0 0
      %1019 = vmatpush1.bf16.msra.mxu0 0
      %1020 = vmatprep.mubr.bf16.mxu0 0
      %1021 = vmatmul.mubr.bf16.gmra.mrb[0].mxu0 %v917
      %v1022 = vpop.f32.mrb[0].mxu0
      %v1023 = vadd.f32 %v939, %v1022
      %v1024 = vpop.f32.mrb[0].mxu0
      %v1025 = vpop.f32.mrb[0].mxu0
      %v1026 = vpop.f32.mrb[0].mxu0
      %1027 = vdwg.mxu0
      %1028 = vadd.xlane.f32.xlu0 %v1023
      %v1029 = vpop.xlane.xlu0 %1028
      %v1030 = vmul.f32 %v1029, %v463
      %v1031 = vmul.f32 %v1023, %v1023
      %1032 = vadd.xlane.f32.xlu0 %v1031
      %v1033 = vpop.xlane.xlu0 %1032
      %v1034 = vmul.f32 %v1033, %v463
      %v1035 = vmul.f32 %v1030, %v1030
      %v1036 = vsub.f32 %v1034, %v1035
      %v1037 = vsub.f32 %v1023, %v1030
      %v1038 = vadd.f32 %v1036, 1e-05
      %v1039 = vrsqrt.pop %v1038
      %v1040 = vmul.f32 %v1037, %v1039
      %v1041 = vld [vmem:[%s9 + $0x2] sm:$0x1]
      %v1042 = vlaneseq
      %v1043 = vshrl.u32 %v1042, 7
      %v1044 = vsub.s32 0, %v1043
      %v1045 = vrot.slane %v1041, %v1044
      %v1046 = vmul.f32 %v1040, %v1045
      %v1047 = vld [vmem:[%s10 + $0x2] sm:$0x1]
      %v1048 = vlaneseq
      %v1049 = vshrl.u32 %v1048, 7
      %v1050 = vsub.s32 0, %v1049
      %v1051 = vrot.slane %v1047, %v1050
      %v1052 = vadd.f32 %v1046, %v1051
      %v1053 = vmul.f32 %v1052, 0.5
      %v1054 = vmul.f32 %v1052, 0.044715
      %v1055 = vmul.f32 %v1054, %v1052
      %v1056 = vmul.f32 %v1055, %v1052
      %v1057 = vadd.f32 %v1052, %v1056
      %v1058 = vmul.f32 %v1057, 0.7978846
      %v1059 = vtanh.pop %v1058
      %v1060 = vadd.f32 %v1059, 1.0
      %v1061 = vmul.f32 %v1053, %v1060
      %v1062 = vadd.f32 %v851, %v1061
      %v1063 = vmul.f32 %v1062, %v428
      %v1064 = vpack.c.bf16 %v1063, %v1063
      %1065 = vst [vmem:[%s415] sm:$0xf] %v1064
      %p1066 = scmp.lt.s32.totalorder %s22, 1
      %s1067 = scalar_select %p1066, %s22, 1
      %s1068 = smul.addr %s1067, 4
      %s1069 = scalar_lea.vmem %s11, %s1068
      // Predicated region
      $region65: #{_lambda_.26} parent=63 // pred_check
        %p1070 = pneg %p286
      $region66: #{_lambda_.26} parent=63 // pred_check_branch
        %1072 = sbr.rel (%p1070) target = $region68
      $region67: #{_lambda_.26} parent=63 // pred_region
        _
      $region68: #{_lambda_.26} parent=63 // pred_fallthru
        _
    $region64: #{_lambda_.26} parent=5 // pred_fallthru
      _
    %p1073 = scmp.le.s32.totalorder 2, %s17
    // Predicated region
    $region69: #{_lambda_.26} parent=5 // pred_check
      %p1074 = pneg %p1073
    $region70: #{_lambda_.26} parent=5 // pred_check_branch
      %1076 = sbr.rel (%p1074) target = $region72
    $region71: #{_lambda_.26} parent=5 // pred_region
      %s1077 = ssub.s32 %s17, 2
      // Predicated region
      $region73: #{_lambda_.26} parent=71 // pred_check
        %p1078 = pneg %p292
      $region74: #{_lambda_.26} parent=71 // pred_check_branch
        %1080 = sbr.rel (%p1078) target = $region76
      $region75: #{_lambda_.26} parent=71 // pred_region
        %p1081 = scmp.lt.s32.totalorder %s23, 1
        %s1082 = scalar_select %p1081, %s23, 1
        %s1083 = smul.addr %s1082, 4
        %s1084 = scalar_lea.vmem %s11, %s1083
      $region76: #{_lambda_.26} parent=71 // pred_fallthru
        _
    $region72: #{_lambda_.26} parent=5 // pred_fallthru
      _
  $region6: #{_lambda_.26} parent=0 // loop_footer
    %s21 = sadd.s32 1, %s17
  $region7: #{_lambda_.26} parent=0 // loop_footer_branch
    %16 = sbr.rel target = $region3
  $region8: #{_lambda_.26} parent=0 // loop_exit
    _

</llo_original>
